<compile_context>
chip_gen: v7x
topology: tpu7x:2x2x1
jax: 0.10.0
libtpu: 0.0.40
codegen_flags: <defaults>
</compile_context>

<pallas_src>
import numpy as np
import jax
import jax.numpy as jnp
from jax import lax
from jax.experimental import pallas as pl
from jax.experimental.pallas import tpu as pltpu

# ----------------------------- module hyper-parameters ------------------------------
HIDDEN_SIZE = 32          # backbone_args.hidden_size
EMBED_REDUCTION = 128     # embed_reduction ctor argument (-1 => no pre_reduction)
PROJ_HIDDEN = 256         # Lin2D hidden width (nn.Linear(in_feat, 256))
NUM_CLASSES = 1           # PairwiseConcat.num_classes (kernel assumes 1)

TILE = 128                # pairwise output tile (lane-dense last dim)
GROUP = 8                 # output rows streamed per inner step (one sublane group)
MM_TILE = 128             # row tile of the fused embedding matmul

MM_VMEM_BYTES = 16 * 1024 * 1024
PW_VMEM_BYTES = 32 * 1024 * 1024


def _round_up(x, m):
    return (x + m - 1) // m * m


# --------------- fused (pre_reduction ∘ W1) matmul, emits A and Bh^T in bf16 ---------------
def _embed_matmul_kernel(x_ref, w_ref, b_ref, a_ref, bt_ref):
    # x_ref : (1, MM_TILE, Din) bf16   raw embeddings (padded rows are zero)
    # w_ref : (Din, 2H) bf16           pre_reduction folded into [W1[:D] | W1[D:]]
    # b_ref : (1, 2H) f32              [b1-side | 0-side] folded biases
    # a_ref : (1, MM_TILE, H) bf16     A rows   (= e @ W1[:D] + b1)
    # bt_ref: (1, H, MM_TILE) bf16     Bh^T cols (= (e @ W1[D:])^T), transposed in-kernel
    p = jnp.dot(x_ref[0], w_ref[...], preferred_element_type=jnp.float32) + b_ref[...]
    a_ref[0] = p[:, :PROJ_HIDDEN].astype(jnp.bfloat16)
    # emit the second half already transposed so the pairwise kernel gets a sublane-major
    # (H, TJ) panel with no XLA transpose pass in between.
    bt_ref[0] = jnp.transpose(p[:, PROJ_HIDDEN:]).astype(jnp.bfloat16)


def embed_matmul(x, w_cat, b_cat):
    """x: (B, Lp, Din) bf16 -> A (B, Lp, H) bf16 and Bh^T (B, H, Lp) bf16."""
    B, Lp, d_in = x.shape
    n2 = w_cat.shape[1]
    return pl.pallas_call(
        _embed_matmul_kernel,
        out_shape=(jax.ShapeDtypeStruct((B, Lp, PROJ_HIDDEN), jnp.bfloat16),
                   jax.ShapeDtypeStruct((B, PROJ_HIDDEN, Lp), jnp.bfloat16)),
        grid=(B, Lp // MM_TILE),
        in_specs=[
            pl.BlockSpec((1, MM_TILE, d_in), lambda b, m: (b, m, 0)),
            pl.BlockSpec((d_in, n2), lambda b, m: (0, 0)),
            pl.BlockSpec((1, n2), lambda b, m: (0, 0)),
        ],
        out_specs=(pl.BlockSpec((1, MM_TILE, PROJ_HIDDEN), lambda b, m: (b, m, 0)),
                   pl.BlockSpec((1, PROJ_HIDDEN, MM_TILE), lambda b, m: (b, 0, m))),
        compiler_params=pltpu.CompilerParams(
            dimension_semantics=("parallel", "parallel"),
            vmem_limit_bytes=MM_VMEM_BYTES),
    )(x, w_cat, b_cat)


# ---- fused pairwise tail: relu -> w2 dot -> +b2, triangular tiles + mirrored writes ----
def _pairwise_sym_kernel(bb_ref, ii_ref, jj_ref,          # scalar-prefetched (b, i, j) tables
                         a_ref, bt_ref, w2_ref, b2_ref,   # inputs
                         out_ref,                         # (B, Lp, Lp) f32 in HBM (pl.ANY)
                         tile_ref, tilet_ref, sem_ref):   # scratch
    t = pl.program_id(0)
    b = bb_ref[t]
    ib = ii_ref[t]
    jb = jj_ref[t]

    # ---- compute the (TILE, TILE) upper tile, GROUP output rows at a time (streamed) ----
    @pl.loop(0, TILE // GROUP)
    def _(g):
        r0 = pl.multiple_of(g * GROUP, GROUP)
        w2 = w2_ref[...]                                          # (H, 1) f32
        b2 = b2_ref[0]                                            # scalar f32 (SMEM)
        bh = bt_ref[0].astype(jnp.float32)                        # (H, TILE), once per group
        a_g = a_ref[0, pl.ds(r0, GROUP), :].astype(jnp.float32)   # (GROUP, H)
        a_gt = jnp.transpose(a_g)                                 # (H, GROUP) small XLU transpose
        rows = []
        for r in range(GROUP):                                    # static unroll (one sublane grp)
            a_col = a_gt[:, r:r + 1]                              # (H, 1), static lane slice
            h = jnp.maximum(a_col + bh, 0.0)                      # (H, TILE) pure VPU
            # Cout == 1 projection: weight then reduce over the SUBLANE-major H axis
            rows.append(jnp.sum(h * w2, axis=0, keepdims=True))   # (1, TILE)
        tile_ref[pl.ds(r0, GROUP), :] = jnp.concatenate(rows, axis=0) + b2

    # ---- symmetrize (diagonal) / mirror (off-diagonal) and write both blocks via DMA ----
    is_diag = ib == jb

    @pl.when(is_diag)
    def _():
        o = tile_ref[...]
        li = lax.broadcasted_iota(jnp.int32, (TILE, TILE), 0)
        lj = lax.broadcasted_iota(jnp.int32, (TILE, TILE), 1)
        upper = jnp.where(lj >= li, o, 0.0)
        strict = jnp.where(lj > li, o, 0.0)
        tile_ref[...] = upper + jnp.transpose(strict)             # symmetric in-tile fold

    @pl.when(jnp.logical_not(is_diag))
    def _():
        tilet_ref[...] = jnp.transpose(tile_ref[...])             # mirror tile

    i0 = pl.multiple_of(ib * TILE, TILE)
    j0 = pl.multiple_of(jb * TILE, TILE)
    cp_u = pltpu.make_async_copy(
        tile_ref, out_ref.at[b, pl.ds(i0, TILE), pl.ds(j0, TILE)], sem_ref.at[0])
    cp_u.start()

    @pl.when(jnp.logical_not(is_diag))
    def _():
        cp_l = pltpu.make_async_copy(
            tilet_ref, out_ref.at[b, pl.ds(j0, TILE), pl.ds(i0, TILE)], sem_ref.at[1])
        cp_l.start()
        cp_l.wait()

    cp_u.wait()


def pairwise_symmetric(a, bt, w2_col, b2):
    """out[b] = triu(o[b]) + triu(o[b],1)^T with o[b,i,j] = w2 . relu(A[b,i] + Bh[b,j]) + b2.

    Only upper-triangular (i<=j) tile pairs are computed; mirrors are written by DMA.
    """
    B, Lp, _ = a.shape
    tb = Lp // TILE
    iu, ju = np.triu_indices(tb)
    npairs = int(iu.size)
    bb = jnp.asarray(np.repeat(np.arange(B), npairs), jnp.int32)
    ii = jnp.asarray(np.tile(iu, B), jnp.int32)
    jj = jnp.asarray(np.tile(ju, B), jnp.int32)

    return pl.pallas_call(
        _pairwise_sym_kernel,
        out_shape=jax.ShapeDtypeStruct((B, Lp, Lp), jnp.float32),
        grid_spec=pltpu.PrefetchScalarGridSpec(
            num_scalar_prefetch=3,
            grid=(B * npairs,),
            in_specs=[
                pl.BlockSpec((1, TILE, PROJ_HIDDEN),
                             lambda t, bb_r, ii_r, jj_r: (bb_r[t], ii_r[t], 0)),
                pl.BlockSpec((1, PROJ_HIDDEN, TILE),
                             lambda t, bb_r, ii_r, jj_r: (bb_r[t], 0, jj_r[t])),
                pl.BlockSpec((PROJ_HIDDEN, NUM_CLASSES),
                             lambda t, bb_r, ii_r, jj_r: (0, 0)),
                pl.BlockSpec(memory_space=pltpu.MemorySpace.SMEM),
            ],
            out_specs=pl.BlockSpec(memory_space=pl.ANY),
            scratch_shapes=[
                pltpu.VMEM((TILE, TILE), jnp.float32),     # computed tile
                pltpu.VMEM((TILE, TILE), jnp.float32),     # mirrored (transposed) tile
                pltpu.SemaphoreType.DMA((2,)),
            ]),
        compiler_params=pltpu.CompilerParams(
            dimension_semantics=("parallel",),
            vmem_limit_bytes=PW_VMEM_BYTES),
    )(bb, ii, jj, a, bt, w2_col, b2)


# ------------------------------------ parameters --------------------------------------
def init_params(key):
    d_in = HIDDEN_SIZE
    d = EMBED_REDUCTION if EMBED_REDUCTION != -1 else d_in
    keys = jax.random.split(key, 5)

    def lin(k, fan_in, shape):
        return jax.random.normal(k, shape, jnp.float32) / jnp.sqrt(float(fan_in))

    p = {}
    if EMBED_REDUCTION != -1:
        p["pre_w"] = lin(keys[0], d_in, (d_in, d))           # pre_reduction Linear
        p["pre_b"] = jnp.zeros((d,), jnp.float32)
    p["w1"] = lin(keys[1], 2 * d, (2 * d, PROJ_HIDDEN))      # Lin2D.linear
    p["b1"] = lin(keys[2], 2 * d, (PROJ_HIDDEN,))
    p["w2"] = lin(keys[3], PROJ_HIDDEN, (PROJ_HIDDEN, NUM_CLASSES))  # Lin2D.linear2
    p["b2"] = lin(keys[4], PROJ_HIDDEN, (NUM_CLASSES,))
    return p


def prepare_params(p):
    """One-time weight prep: fold pre_reduction into W1 (exact, both affine), bf16 casts."""
    assert NUM_CLASSES == 1, "pairwise kernel assumes num_classes == 1 (as in the module)"
    d = EMBED_REDUCTION if EMBED_REDUCTION != -1 else HIDDEN_SIZE
    w1a, w1b = p["w1"][:d], p["w1"][d:]
    if EMBED_REDUCTION != -1:
        hi = lax.Precision.HIGHEST
        wa = jnp.dot(p["pre_w"], w1a, precision=hi)
        wb = jnp.dot(p["pre_w"], w1b, precision=hi)
        ba = jnp.dot(p["pre_b"], w1a, precision=hi) + p["b1"]
        bb = jnp.dot(p["pre_b"], w1b, precision=hi)
    else:
        wa, wb, ba, bb = w1a, w1b, p["b1"], jnp.zeros_like(p["b1"])
    q = dict(p)
    # concat(e_i, e_j) @ W1 == e_i @ W1[:d] + e_j @ W1[d:]; pack both halves side by side so
    # A | Bh come out of one lane-dense (N = 512) matmul.  b1 folded into the A half only.
    q["w_cat"] = jnp.concatenate([wa, wb], axis=1).astype(jnp.bfloat16)          # (Din, 2H)
    q["b_cat"] = jnp.concatenate([ba, bb], axis=0).reshape(1, -1).astype(jnp.float32)
    q["w2_col"] = p["w2"].reshape(PROJ_HIDDEN, NUM_CLASSES).astype(jnp.float32)  # (H, 1)
    q["b2_s"] = p["b2"].reshape(NUM_CLASSES).astype(jnp.float32)                 # SMEM scalar
    return q


# -------------------------------------- forward ---------------------------------------
@jax.jit
def forward(params, embeddings):
    """PairwiseConcat.forward (symmetric=True, num_classes=1); input is the embeddings."""
    B, L, _ = embeddings.shape
    Lp = _round_up(L, TILE)
    x = embeddings.astype(jnp.bfloat16)
    if Lp != L:
        x = jnp.pad(x, ((0, 0), (0, Lp - L), (0, 0)))

    # Single fused matmul (pre_reduction folded into W1); the (B,L,L,2D) pairwise tensor
    # is never built.  Emits A (B,Lp,H) and Bh^T (B,H,Lp) in bf16, already padded.
    a, bt = embed_matmul(x, params["w_cat"], params["b_cat"])

    # Fused relu -> w2 dot -> +b2 over upper-triangular tiles, with in-kernel
    # symmetrization and mirrored DMA writes (no separate symmetric_triu pass).
    out = pairwise_symmetric(a, bt, params["w2_col"], params["b2_s"])   # (B, Lp, Lp)

    if Lp != L:
        out = out[:, :L, :L]
    return out


# ------------------------------- pure-jnp f32 reference --------------------------------
def forward_reference(params, embeddings):
    B, L, _ = embeddings.shape
    e = embeddings
    if EMBED_REDUCTION != -1:
        e = e @ params["pre_w"] + params["pre_b"]
    d = e.shape[-1]
    ei = jnp.broadcast_to(e[:, :, None, :], (B, L, L, d))
    ej = jnp.broadcast_to(e[:, None, :, :], (B, L, L, d))
    pair = jnp.concatenate([ei, ej], axis=-1)                         # (B, L, L, 2d)
    h = jnp.maximum(pair @ params["w1"] + params["b1"], 0.0)
    o = (h @ params["w2"] + params["b2"])[..., 0]                     # (B, L, L)
    return jnp.triu(o) + jnp.swapaxes(jnp.triu(o, k=1), -1, -2)


# ---------------------------------------- main -----------------------------------------
if __name__ == "__main__":
    key = jax.random.PRNGKey(0)
    pkey, dkey = jax.random.split(key)
    params = prepare_params(init_params(pkey))

    B, L = 2, 8
    embeddings = jax.random.normal(dkey, (B, L, HIDDEN_SIZE), jnp.float32)

    out = jax.block_until_ready(forward(params, embeddings))
    assert out.shape == (B, L, L)
    assert bool(jnp.all(jnp.isfinite(out)))
    # symmetric by construction (mirrored tiles are exact copies)
    assert bool(jnp.allclose(out, jnp.swapaxes(out, 1, 2)))
    # loose tolerance: bf16 MXU inputs / bf16 A,Bh storage with f32 accumulation
    ref = forward_reference(params, embeddings)
    assert bool(jnp.allclose(out, ref, atol=1e-1, rtol=1e-1))
    print("KERNEL_OK")
</pallas_src>

<mosaic_0001>
module attributes {stable_mosaic.version = 11 : i64} {
  func.func @_embed_matmul_kernel(%arg0: i32, %arg1: i32, %arg2: memref<1x128x32xbf16, #tpu.memory_space<vmem>>, %arg3: memref<32x512xbf16, #tpu.memory_space<vmem>>, %arg4: memref<1x512xf32, #tpu.memory_space<vmem>>, %arg5: memref<1x128x256xbf16, #tpu.memory_space<vmem>>, %arg6: memref<1x256x128xbf16, #tpu.memory_space<vmem>>) attributes {dimension_semantics = [#tpu.dimension_semantics<parallel>, #tpu.dimension_semantics<parallel>], iteration_bounds = array<i64: 2, 1>, scalar_prefetch = 0 : i64, scratch_operands = 0 : i64, tpu.core_type = #tpu.core_type<tc>, window_params = [{transform_indices = @transform_0, window_bounds = array<i64: 1, 128, 32>}, {pipeline_mode = #tpu.pipeline_mode<synchronous>, transform_indices = @transform_1, window_bounds = array<i64: 32, 512>}, {pipeline_mode = #tpu.pipeline_mode<synchronous>, transform_indices = @transform_2, window_bounds = array<i64: 1, 512>}, {transform_indices = @transform_3, window_bounds = array<i64: 1, 128, 256>}, {transform_indices = @transform_4, window_bounds = array<i64: 1, 256, 128>}]} {
    %c0 = arith.constant 0 : index
    %c0_0 = arith.constant 0 : index
    %c0_1 = arith.constant 0 : index
    %0 = vector.load %arg2[%c0, %c0_0, %c0_1] : memref<1x128x32xbf16, #tpu.memory_space<vmem>>, vector<1x128x32xbf16>
    %1 = vector.shape_cast %0 : vector<1x128x32xbf16> to vector<128x32xbf16>
    %c0_2 = arith.constant 0 : index
    %c0_3 = arith.constant 0 : index
    %2 = vector.load %arg3[%c0_2, %c0_3] : memref<32x512xbf16, #tpu.memory_space<vmem>>, vector<32x512xbf16>
    %cst = arith.constant dense<0.000000e+00> : vector<128x512xf32>
    %3 = tpu.matmul %1, %2, %cst {dimension_numbers = #tpu.dot_dimension_numbers<[1], [0], [0], [1], [0, 0, 1, 1], [], []>} : vector<128x32xbf16>, vector<32x512xbf16>, vector<128x512xf32> -> vector<128x512xf32>
    %c0_4 = arith.constant 0 : index
    %c0_5 = arith.constant 0 : index
    %4 = vector.load %arg4[%c0_4, %c0_5] : memref<1x512xf32, #tpu.memory_space<vmem>>, vector<1x512xf32>
    %5 = vector.broadcast %4 : vector<1x512xf32> to vector<128x512xf32>
    %6 = arith.addf %3, %5 : vector<128x512xf32>
    %7 = vector.extract_strided_slice %6 {offsets = [0, 0], sizes = [128, 256], strides = [1, 1]} : vector<128x512xf32> to vector<128x256xf32>
    %8 = arith.truncf %7 : vector<128x256xf32> to vector<128x256xbf16>
    %c0_6 = arith.constant 0 : index
    %c0_7 = arith.constant 0 : index
    %c0_8 = arith.constant 0 : index
    %9 = vector.load %arg5[%c0_6, %c0_7, %c0_8] : memref<1x128x256xbf16, #tpu.memory_space<vmem>>, vector<1x128x256xbf16>
    %10 = vector.shape_cast %9 : vector<1x128x256xbf16> to vector<128x256xbf16>
    %11 = vector.shape_cast %8 : vector<128x256xbf16> to vector<1x128x256xbf16>
    tpu.vector_store %arg5[%c0_6, %c0_7, %c0_8], %11 {strides = array<i32>} : memref<1x128x256xbf16, #tpu.memory_space<vmem>>, vector<1x128x256xbf16>,
    %12 = vector.extract_strided_slice %6 {offsets = [0, 256], sizes = [128, 256], strides = [1, 1]} : vector<128x512xf32> to vector<128x256xf32>
    %13 = tpu.transpose %12, [1, 0] : vector<128x256xf32> -> vector<256x128xf32>
    %14 = arith.truncf %13 : vector<256x128xf32> to vector<256x128xbf16>
    %c0_9 = arith.constant 0 : index
    %c0_10 = arith.constant 0 : index
    %c0_11 = arith.constant 0 : index
    %15 = vector.load %arg6[%c0_9, %c0_10, %c0_11] : memref<1x256x128xbf16, #tpu.memory_space<vmem>>, vector<1x256x128xbf16>
    %16 = vector.shape_cast %15 : vector<1x256x128xbf16> to vector<256x128xbf16>
    %17 = vector.shape_cast %14 : vector<256x128xbf16> to vector<1x256x128xbf16>
    tpu.vector_store %arg6[%c0_9, %c0_10, %c0_11], %17 {strides = array<i32>} : memref<1x256x128xbf16, #tpu.memory_space<vmem>>, vector<1x256x128xbf16>,
    return
  }
  func.func @transform_0(%arg0: i32, %arg1: i32) -> (i32, i32, i32) {
    %c0_i32 = arith.constant 0 : i32
    %c0_i32_0 = arith.constant 0 : i32
    return %arg0, %arg1, %c0_i32 : i32, i32, i32
  }
  func.func @transform_1(%arg0: i32, %arg1: i32) -> (i32, i32) {
    %c0_i32 = arith.constant 0 : i32
    %c0_i32_0 = arith.constant 0 : i32
    %c0_i32_1 = arith.constant 0 : i32
    return %c0_i32, %c0_i32_0 : i32, i32
  }
  func.func @transform_2(%arg0: i32, %arg1: i32) -> (i32, i32) {
    %c0_i32 = arith.constant 0 : i32
    %c0_i32_0 = arith.constant 0 : i32
    %c0_i32_1 = arith.constant 0 : i32
    return %c0_i32, %c0_i32_0 : i32, i32
  }
  func.func @transform_3(%arg0: i32, %arg1: i32) -> (i32, i32, i32) {
    %c0_i32 = arith.constant 0 : i32
    %c0_i32_0 = arith.constant 0 : i32
    return %arg0, %arg1, %c0_i32 : i32, i32, i32
  }
  func.func @transform_4(%arg0: i32, %arg1: i32) -> (i32, i32, i32) {
    %c0_i32 = arith.constant 0 : i32
    %c0_i32_0 = arith.constant 0 : i32
    return %arg0, %c0_i32, %arg1 : i32, i32, i32
  }
}

module attributes {stable_mosaic.version = 11 : i64} {
  func.func @_pairwise_sym_kernel(%arg0: i32, %arg1: memref<2xi32, #tpu.memory_space<smem>>, %arg2: memref<2xi32, #tpu.memory_space<smem>>, %arg3: memref<2xi32, #tpu.memory_space<smem>>, %arg4: memref<1x128x256xbf16, #tpu.memory_space<vmem>>, %arg5: memref<1x256x128xbf16, #tpu.memory_space<vmem>>, %arg6: memref<256x1xf32, #tpu.memory_space<vmem>>, %arg7: memref<1xf32, #tpu.memory_space<smem>>, %arg8: memref<2x128x128xf32, #tpu.memory_space<any>>, %arg9: memref<128x128xf32, #tpu.memory_space<vmem>>, %arg10: memref<128x128xf32, #tpu.memory_space<vmem>>, %arg11: memref<2x!tpu.dma_semaphore, #tpu.memory_space<semaphore_mem>>) attributes {dimension_semantics = [#tpu.dimension_semantics<parallel>], iteration_bounds = array<i64: 2>, scalar_prefetch = 3 : i64, scratch_operands = 3 : i64, tpu.core_type = #tpu.core_type<tc>, window_params = [{transform_indices = @transform_0, window_bounds = array<i64: 1, 128, 256>}, {transform_indices = @transform_1, window_bounds = array<i64: 1, 256, 128>}, {pipeline_mode = #tpu.pipeline_mode<synchronous>, transform_indices = @transform_2, window_bounds = array<i64: 256, 1>}, {transform_indices = @transform_3, window_bounds = array<i64: 1>}, {}]} {
    %0 = arith.index_cast %arg0 : i32 to index
    %1 = memref.load %arg1[%0] : memref<2xi32, #tpu.memory_space<smem>>
    %2 = arith.index_cast %arg0 : i32 to index
    %3 = memref.load %arg2[%2] : memref<2xi32, #tpu.memory_space<smem>>
    %4 = arith.index_cast %arg0 : i32 to index
    %5 = memref.load %arg3[%4] : memref<2xi32, #tpu.memory_space<smem>>
    %c0_i32 = arith.constant 0 : i32
    %c16_i32 = arith.constant 16 : i32
    %6 = arith.addi %c0_i32, %c16_i32 : i32
    %c1_i32 = arith.constant 1 : i32
    scf.for %arg12 = %c0_i32 to %6 step %c1_i32  : i32 {
      %c1_i32_8 = arith.constant 1 : i32
      %28 = arith.muli %arg12, %c1_i32_8 : i32
      %c0_i32_9 = arith.constant 0 : i32
      %29 = arith.addi %c0_i32_9, %28 : i32
      %c8_i32 = arith.constant 8 : i32
      %30 = arith.muli %29, %c8_i32 : i32
      %31 = tpu.assume_multiple %30, 8 : i32
      %c0 = arith.constant 0 : index
      %c0_10 = arith.constant 0 : index
      %32 = vector.load %arg6[%c0, %c0_10] : memref<256x1xf32, #tpu.memory_space<vmem>>, vector<256x1xf32>
      %c0_11 = arith.constant 0 : index
      %33 = memref.load %arg7[%c0_11] : memref<1xf32, #tpu.memory_space<smem>>
      %c0_12 = arith.constant 0 : index
      %c0_13 = arith.constant 0 : index
      %c0_14 = arith.constant 0 : index
      %34 = vector.load %arg5[%c0_12, %c0_13, %c0_14] : memref<1x256x128xbf16, #tpu.memory_space<vmem>>, vector<1x256x128xbf16>
      %35 = vector.shape_cast %34 : vector<1x256x128xbf16> to vector<256x128xbf16>
      %36 = arith.extf %35 : vector<256x128xbf16> to vector<256x128xf32>
      %c0_15 = arith.constant 0 : index
      %37 = arith.index_cast %31 : i32 to index
      %c0_16 = arith.constant 0 : index
      %38 = vector.load %arg4[%c0_15, %37, %c0_16] : memref<1x128x256xbf16, #tpu.memory_space<vmem>>, vector<1x8x256xbf16>
      %39 = vector.shape_cast %38 : vector<1x8x256xbf16> to vector<8x256xbf16>
      %40 = arith.extf %39 : vector<8x256xbf16> to vector<8x256xf32>
      %41 = tpu.transpose %40, [1, 0] : vector<8x256xf32> -> vector<256x8xf32>
      %42 = vector.extract_strided_slice %41 {offsets = [0, 0], sizes = [256, 1], strides = [1, 1]} : vector<256x8xf32> to vector<256x1xf32>
      %43 = vector.broadcast %42 : vector<256x1xf32> to vector<256x128xf32>
      %44 = arith.addf %43, %36 : vector<256x128xf32>
      %cst = arith.constant 0.000000e+00 : f32
      %45 = vector.broadcast %cst : f32 to vector<256x128xf32>
      %46 = arith.maximumf %44, %45 : vector<256x128xf32>
      %47 = vector.broadcast %32 : vector<256x1xf32> to vector<256x128xf32>
      %48 = arith.mulf %46, %47 : vector<256x128xf32>
      %cst_17 = arith.constant dense<0.000000e+00> : vector<128xf32>
      %49 = vector.multi_reduction <add>, %48, %cst_17 [0] : vector<256x128xf32> to vector<128xf32>
      %50 = vector.shape_cast %49 : vector<128xf32> to vector<1x128xf32>
      %51 = vector.extract_strided_slice %41 {offsets = [0, 1], sizes = [256, 1], strides = [1, 1]} : vector<256x8xf32> to vector<256x1xf32>
      %52 = vector.broadcast %51 : vector<256x1xf32> to vector<256x128xf32>
      %53 = arith.addf %52, %36 : vector<256x128xf32>
      %cst_18 = arith.constant 0.000000e+00 : f32
      %54 = vector.broadcast %cst_18 : f32 to vector<256x128xf32>
      %55 = arith.maximumf %53, %54 : vector<256x128xf32>
      %56 = vector.broadcast %32 : vector<256x1xf32> to vector<256x128xf32>
      %57 = arith.mulf %55, %56 : vector<256x128xf32>
      %cst_19 = arith.constant dense<0.000000e+00> : vector<128xf32>
      %58 = vector.multi_reduction <add>, %57, %cst_19 [0] : vector<256x128xf32> to vector<128xf32>
      %59 = vector.shape_cast %58 : vector<128xf32> to vector<1x128xf32>
      %60 = vector.extract_strided_slice %41 {offsets = [0, 2], sizes = [256, 1], strides = [1, 1]} : vector<256x8xf32> to vector<256x1xf32>
      %61 = vector.broadcast %60 : vector<256x1xf32> to vector<256x128xf32>
      %62 = arith.addf %61, %36 : vector<256x128xf32>
      %cst_20 = arith.constant 0.000000e+00 : f32
      %63 = vector.broadcast %cst_20 : f32 to vector<256x128xf32>
      %64 = arith.maximumf %62, %63 : vector<256x128xf32>
      %65 = vector.broadcast %32 : vector<256x1xf32> to vector<256x128xf32>
      %66 = arith.mulf %64, %65 : vector<256x128xf32>
      %cst_21 = arith.constant dense<0.000000e+00> : vector<128xf32>
      %67 = vector.multi_reduction <add>, %66, %cst_21 [0] : vector<256x128xf32> to vector<128xf32>
      %68 = vector.shape_cast %67 : vector<128xf32> to vector<1x128xf32>
      %69 = vector.extract_strided_slice %41 {offsets = [0, 3], sizes = [256, 1], strides = [1, 1]} : vector<256x8xf32> to vector<256x1xf32>
      %70 = vector.broadcast %69 : vector<256x1xf32> to vector<256x128xf32>
      %71 = arith.addf %70, %36 : vector<256x128xf32>
      %cst_22 = arith.constant 0.000000e+00 : f32
      %72 = vector.broadcast %cst_22 : f32 to vector<256x128xf32>
      %73 = arith.maximumf %71, %72 : vector<256x128xf32>
      %74 = vector.broadcast %32 : vector<256x1xf32> to vector<256x128xf32>
      %75 = arith.mulf %73, %74 : vector<256x128xf32>
      %cst_23 = arith.constant dense<0.000000e+00> : vector<128xf32>
      %76 = vector.multi_reduction <add>, %75, %cst_23 [0] : vector<256x128xf32> to vector<128xf32>
      %77 = vector.shape_cast %76 : vector<128xf32> to vector<1x128xf32>
      %78 = vector.extract_strided_slice %41 {offsets = [0, 4], sizes = [256, 1], strides = [1, 1]} : vector<256x8xf32> to vector<256x1xf32>
      %79 = vector.broadcast %78 : vector<256x1xf32> to vector<256x128xf32>
      %80 = arith.addf %79, %36 : vector<256x128xf32>
      %cst_24 = arith.constant 0.000000e+00 : f32
      %81 = vector.broadcast %cst_24 : f32 to vector<256x128xf32>
      %82 = arith.maximumf %80, %81 : vector<256x128xf32>
      %83 = vector.broadcast %32 : vector<256x1xf32> to vector<256x128xf32>
      %84 = arith.mulf %82, %83 : vector<256x128xf32>
      %cst_25 = arith.constant dense<0.000000e+00> : vector<128xf32>
      %85 = vector.multi_reduction <add>, %84, %cst_25 [0] : vector<256x128xf32> to vector<128xf32>
      %86 = vector.shape_cast %85 : vector<128xf32> to vector<1x128xf32>
      %87 = vector.extract_strided_slice %41 {offsets = [0, 5], sizes = [256, 1], strides = [1, 1]} : vector<256x8xf32> to vector<256x1xf32>
      %88 = vector.broadcast %87 : vector<256x1xf32> to vector<256x128xf32>
      %89 = arith.addf %88, %36 : vector<256x128xf32>
      %cst_26 = arith.constant 0.000000e+00 : f32
      %90 = vector.broadcast %cst_26 : f32 to vector<256x128xf32>
      %91 = arith.maximumf %89, %90 : vector<256x128xf32>
      %92 = vector.broadcast %32 : vector<256x1xf32> to vector<256x128xf32>
      %93 = arith.mulf %91, %92 : vector<256x128xf32>
      %cst_27 = arith.constant dense<0.000000e+00> : vector<128xf32>
      %94 = vector.multi_reduction <add>, %93, %cst_27 [0] : vector<256x128xf32> to vector<128xf32>
      %95 = vector.shape_cast %94 : vector<128xf32> to vector<1x128xf32>
      %96 = vector.extract_strided_slice %41 {offsets = [0, 6], sizes = [256, 1], strides = [1, 1]} : vector<256x8xf32> to vector<256x1xf32>
      %97 = vector.broadcast %96 : vector<256x1xf32> to vector<256x128xf32>
      %98 = arith.addf %97, %36 : vector<256x128xf32>
      %cst_28 = arith.constant 0.000000e+00 : f32
      %99 = vector.broadcast %cst_28 : f32 to vector<256x128xf32>
      %100 = arith.maximumf %98, %99 : vector<256x128xf32>
      %101 = vector.broadcast %32 : vector<256x1xf32> to vector<256x128xf32>
      %102 = arith.mulf %100, %101 : vector<256x128xf32>
      %cst_29 = arith.constant dense<0.000000e+00> : vector<128xf32>
      %103 = vector.multi_reduction <add>, %102, %cst_29 [0] : vector<256x128xf32> to vector<128xf32>
      %104 = vector.shape_cast %103 : vector<128xf32> to vector<1x128xf32>
      %105 = vector.extract_strided_slice %41 {offsets = [0, 7], sizes = [256, 1], strides = [1, 1]} : vector<256x8xf32> to vector<256x1xf32>
      %106 = vector.broadcast %105 : vector<256x1xf32> to vector<256x128xf32>
      %107 = arith.addf %106, %36 : vector<256x128xf32>
      %cst_30 = arith.constant 0.000000e+00 : f32
      %108 = vector.broadcast %cst_30 : f32 to vector<256x128xf32>
      %109 = arith.maximumf %107, %108 : vector<256x128xf32>
      %110 = vector.broadcast %32 : vector<256x1xf32> to vector<256x128xf32>
      %111 = arith.mulf %109, %110 : vector<256x128xf32>
      %cst_31 = arith.constant dense<0.000000e+00> : vector<128xf32>
      %112 = vector.multi_reduction <add>, %111, %cst_31 [0] : vector<256x128xf32> to vector<128xf32>
      %113 = vector.shape_cast %112 : vector<128xf32> to vector<1x128xf32>
      %114 = tpu.concatenate %50, %59, %68, %77, %86, %95, %104, %113 in 0 : vector<1x128xf32>, vector<1x128xf32>, vector<1x128xf32>, vector<1x128xf32>, vector<1x128xf32>, vector<1x128xf32>, vector<1x128xf32>, vector<1x128xf32> -> vector<8x128xf32>
      %115 = vector.broadcast %33 : f32 to vector<8x128xf32>
      %116 = arith.addf %114, %115 : vector<8x128xf32>
      %117 = arith.index_cast %31 : i32 to index
      %c0_32 = arith.constant 0 : index
      %118 = vector.load %arg9[%117, %c0_32] : memref<128x128xf32, #tpu.memory_space<vmem>>, vector<8x128xf32>
      tpu.vector_store %arg9[%117, %c0_32], %116 {strides = array<i32>} : memref<128x128xf32, #tpu.memory_space<vmem>>, vector<8x128xf32>,
    }
    %c16_i32_0 = arith.constant 16 : i32
    %7 = arith.cmpi eq, %3, %5 : i32
    %8 = arith.extui %7 : i1 to i32
    %c0_i32_1 = arith.constant 0 : i32
    %9 = arith.cmpi ne, %8, %c0_i32_1 : i32
    scf.if %9 {
      %c0 = arith.constant 0 : index
      %c0_8 = arith.constant 0 : index
      %28 = vector.load %arg9[%c0, %c0_8] : memref<128x128xf32, #tpu.memory_space<vmem>>, vector<128x128xf32>
      %29 = tpu.iota {dimensions = array<i32: 0>} : vector<128x128xi32>
      %30 = tpu.iota {dimensions = array<i32: 1>} : vector<128x128xi32>
      %31 = arith.cmpi sge, %30, %29 : vector<128x128xi32>
      %cst = arith.constant 0.000000e+00 : f32
      %32 = vector.broadcast %cst : f32 to vector<128x128xf32>
      %33 = arith.select %31, %28, %32 : vector<128x128xi1>, vector<128x128xf32>
      %34 = arith.cmpi sgt, %30, %29 : vector<128x128xi32>
      %cst_9 = arith.constant 0.000000e+00 : f32
      %35 = vector.broadcast %cst_9 : f32 to vector<128x128xf32>
      %36 = arith.select %34, %28, %35 : vector<128x128xi1>, vector<128x128xf32>
      %37 = tpu.transpose %36, [1, 0] : vector<128x128xf32> -> vector<128x128xf32>
      %38 = arith.addf %33, %37 : vector<128x128xf32>
      %c0_10 = arith.constant 0 : index
      %c0_11 = arith.constant 0 : index
      %39 = vector.load %arg9[%c0_10, %c0_11] : memref<128x128xf32, #tpu.memory_space<vmem>>, vector<128x128xf32>
      tpu.vector_store %arg9[%c0_10, %c0_11], %38 {strides = array<i32>} : memref<128x128xf32, #tpu.memory_space<vmem>>, vector<128x128xf32>,
    } else {
    }
    %true = arith.constant true
    %10 = arith.xori %7, %true : i1
    %11 = arith.extui %10 : i1 to i32
    %c0_i32_2 = arith.constant 0 : i32
    %12 = arith.cmpi ne, %11, %c0_i32_2 : i32
    scf.if %12 {
      %c0 = arith.constant 0 : index
      %c0_8 = arith.constant 0 : index
      %28 = vector.load %arg9[%c0, %c0_8] : memref<128x128xf32, #tpu.memory_space<vmem>>, vector<128x128xf32>
      %29 = tpu.transpose %28, [1, 0] : vector<128x128xf32> -> vector<128x128xf32>
      %c0_9 = arith.constant 0 : index
      %c0_10 = arith.constant 0 : index
      %30 = vector.load %arg10[%c0_9, %c0_10] : memref<128x128xf32, #tpu.memory_space<vmem>>, vector<128x128xf32>
      tpu.vector_store %arg10[%c0_9, %c0_10], %29 {strides = array<i32>} : memref<128x128xf32, #tpu.memory_space<vmem>>, vector<128x128xf32>,
    } else {
    }
    %c128_i32 = arith.constant 128 : i32
    %13 = arith.muli %3, %c128_i32 : i32
    %14 = tpu.assume_multiple %13, 128 : i32
    %c128_i32_3 = arith.constant 128 : i32
    %15 = arith.muli %5, %c128_i32_3 : i32
    %16 = tpu.assume_multiple %15, 128 : i32
    %c0_i32_4 = arith.constant 0 : i32
    %17 = tpu.memref_slice %arg8[%1, %14, %16] : memref<2x128x128xf32, #tpu.memory_space<any>> -> memref<1x128x128xf32, #tpu.memory_space<any>>
    %18 = tpu.memref_squeeze %17 : memref<1x128x128xf32, #tpu.memory_space<any>> -> memref<128x128xf32, #tpu.memory_space<any>>
    %19 = tpu.memref_slice %arg11[%c0_i32_4] : memref<2x!tpu.dma_semaphore, #tpu.memory_space<semaphore_mem>> -> memref<1x!tpu.dma_semaphore, #tpu.memory_space<semaphore_mem>>
    %20 = tpu.memref_squeeze %19 : memref<1x!tpu.dma_semaphore, #tpu.memory_space<semaphore_mem>> -> memref<!tpu.dma_semaphore, #tpu.memory_space<semaphore_mem>>
    tpu.enqueue_dma source(%arg9 : memref<128x128xf32, #tpu.memory_space<vmem>>) target(%18 : memref<128x128xf32, #tpu.memory_space<any>>) target_semaphore(%20 : memref<!tpu.dma_semaphore, #tpu.memory_space<semaphore_mem>>)
    %true_5 = arith.constant true
    %21 = arith.xori %7, %true_5 : i1
    %22 = arith.extui %21 : i1 to i32
    %c0_i32_6 = arith.constant 0 : i32
    %23 = arith.cmpi ne, %22, %c0_i32_6 : i32
    scf.if %23 {
      %c1_i32_8 = arith.constant 1 : i32
      %28 = tpu.memref_slice %arg8[%1, %16, %14] : memref<2x128x128xf32, #tpu.memory_space<any>> -> memref<1x128x128xf32, #tpu.memory_space<any>>
      %29 = tpu.memref_squeeze %28 : memref<1x128x128xf32, #tpu.memory_space<any>> -> memref<128x128xf32, #tpu.memory_space<any>>
      %30 = tpu.memref_slice %arg11[%c1_i32_8] : memref<2x!tpu.dma_semaphore, #tpu.memory_space<semaphore_mem>> -> memref<1x!tpu.dma_semaphore, #tpu.memory_space<semaphore_mem>>
      %31 = tpu.memref_squeeze %30 : memref<1x!tpu.dma_semaphore, #tpu.memory_space<semaphore_mem>> -> memref<!tpu.dma_semaphore, #tpu.memory_space<semaphore_mem>>
      tpu.enqueue_dma source(%arg10 : memref<128x128xf32, #tpu.memory_space<vmem>>) target(%29 : memref<128x128xf32, #tpu.memory_space<any>>) target_semaphore(%31 : memref<!tpu.dma_semaphore, #tpu.memory_space<semaphore_mem>>)
      %c1_i32_9 = arith.constant 1 : i32
      %32 = tpu.memref_slice %arg8[%1, %16, %14] : memref<2x128x128xf32, #tpu.memory_space<any>> -> memref<1x128x128xf32, #tpu.memory_space<any>>
      %33 = tpu.memref_squeeze %32 : memref<1x128x128xf32, #tpu.memory_space<any>> -> memref<128x128xf32, #tpu.memory_space<any>>
      %34 = tpu.memref_slice %arg11[%c1_i32_9] : memref<2x!tpu.dma_semaphore, #tpu.memory_space<semaphore_mem>> -> memref<1x!tpu.dma_semaphore, #tpu.memory_space<semaphore_mem>>
      %35 = tpu.memref_squeeze %34 : memref<1x!tpu.dma_semaphore, #tpu.memory_space<semaphore_mem>> -> memref<!tpu.dma_semaphore, #tpu.memory_space<semaphore_mem>>
      tpu.wait_dma2 semaphore(%35 : memref<!tpu.dma_semaphore, #tpu.memory_space<semaphore_mem>>) src(%arg10 : memref<128x128xf32, #tpu.memory_space<vmem>>) dst(%33 : memref<128x128xf32, #tpu.memory_space<any>>)
    } else {
    }
    %c0_i32_7 = arith.constant 0 : i32
    %24 = tpu.memref_slice %arg8[%1, %14, %16] : memref<2x128x128xf32, #tpu.memory_space<any>> -> memref<1x128x128xf32, #tpu.memory_space<any>>
    %25 = tpu.memref_squeeze %24 : memref<1x128x128xf32, #tpu.memory_space<any>> -> memref<128x128xf32, #tpu.memory_space<any>>
    %26 = tpu.memref_slice %arg11[%c0_i32_7] : memref<2x!tpu.dma_semaphore, #tpu.memory_space<semaphore_mem>> -> memref<1x!tpu.dma_semaphore, #tpu.memory_space<semaphore_mem>>
    %27 = tpu.memref_squeeze %26 : memref<1x!tpu.dma_semaphore, #tpu.memory_space<semaphore_mem>> -> memref<!tpu.dma_semaphore, #tpu.memory_space<semaphore_mem>>
    tpu.wait_dma2 semaphore(%27 : memref<!tpu.dma_semaphore, #tpu.memory_space<semaphore_mem>>) src(%arg9 : memref<128x128xf32, #tpu.memory_space<vmem>>) dst(%25 : memref<128x128xf32, #tpu.memory_space<any>>)
    return
  }
  func.func @transform_0(%arg0: i32, %arg1: memref<2xi32, #tpu.memory_space<smem>>, %arg2: memref<2xi32, #tpu.memory_space<smem>>, %arg3: memref<2xi32, #tpu.memory_space<smem>>) -> (i32, i32, i32) {
    %0 = arith.index_cast %arg0 : i32 to index
    %1 = memref.load %arg1[%0] : memref<2xi32, #tpu.memory_space<smem>>
    %2 = arith.index_cast %arg0 : i32 to index
    %3 = memref.load %arg2[%2] : memref<2xi32, #tpu.memory_space<smem>>
    %c0_i32 = arith.constant 0 : i32
    %c0_i32_0 = arith.constant 0 : i32
    return %1, %3, %c0_i32 : i32, i32, i32
  }
  func.func @transform_1(%arg0: i32, %arg1: memref<2xi32, #tpu.memory_space<smem>>, %arg2: memref<2xi32, #tpu.memory_space<smem>>, %arg3: memref<2xi32, #tpu.memory_space<smem>>) -> (i32, i32, i32) {
    %0 = arith.index_cast %arg0 : i32 to index
    %1 = memref.load %arg1[%0] : memref<2xi32, #tpu.memory_space<smem>>
    %2 = arith.index_cast %arg0 : i32 to index
    %3 = memref.load %arg3[%2] : memref<2xi32, #tpu.memory_space<smem>>
    %c0_i32 = arith.constant 0 : i32
    %c0_i32_0 = arith.constant 0 : i32
    return %1, %c0_i32, %3 : i32, i32, i32
  }
  func.func @transform_2(%arg0: i32, %arg1: memref<2xi32, #tpu.memory_space<smem>>, %arg2: memref<2xi32, #tpu.memory_space<smem>>, %arg3: memref<2xi32, #tpu.memory_space<smem>>) -> (i32, i32) {
    %c0_i32 = arith.constant 0 : i32
    %c0_i32_0 = arith.constant 0 : i32
    %c0_i32_1 = arith.constant 0 : i32
    return %c0_i32, %c0_i32_0 : i32, i32
  }
  func.func @transform_3(%arg0: i32, %arg1: memref<2xi32, #tpu.memory_space<smem>>, %arg2: memref<2xi32, #tpu.memory_space<smem>>, %arg3: memref<2xi32, #tpu.memory_space<smem>>) -> i32 {
    %c0_i32 = arith.constant 0 : i32
    %c0_i32_0 = arith.constant 0 : i32
    return %c0_i32 : i32
  }
}

</mosaic_0001>

<llo_original>
// kernel: forward.2
$region0: #{forward.2}
  #allocation0 [shape = 'u32[]', space=smem, size = 0x4, offset = 0x4, fixed_abs, tag = 'smem constant byte address 0x4 - core index']
  #allocation1 [shape = 'u32[144,128]{1,0:T(1,128)}', space=vmem, size = 0x12000, scoped, tag = 'internal scratch']
  %s0 = inlined_call_operand.vmem [shape: bf16[2,128,32], index: 0, kind: input, shape index: {}]
  %s1 = inlined_call_operand.vmem [shape: bf16[32,512], index: 1, kind: input, shape index: {}]
  %s2 = inlined_call_operand.vmem [shape: f32[1,512], index: 2, kind: input, shape index: {}]
  %s3 = inlined_call_operand.vmem [shape: bf16[2,128,256], index: 3, kind: output, shape index: {0}]
  %s4 = inlined_call_operand.vmem [shape: bf16[2,256,128], index: 4, kind: output, shape index: {1}]
  %5 = xla_tuple %s3, %s4
  %s6 = sld [smem:[#allocation0]]
  $region53: #{forward.2} parent=0
    _
  %s8 = ssub.s32 1, %s6
  %s9 = scalar_select 0, %s8, %s6
  loop: start=0, step=1, limit=4
  $region2: #{forward.2} parent=0 // loop_pre_header
    _
  $region3: #{forward.2} parent=0 // loop_header
    %s11 = sphi 0, %s15
    %p12 = scmp.ge.s32.totalorder %s11, 4
    %s18 = sphi 0, %s30
    %s19 = sphi 0, %s26
    %s20 = sphi 0, %s18
    %s21 = sphi 0, %s19
    %s22 = sphi 0, %s20
    %s23 = sphi 0, %s21
    %s35 = sphi 0, %s37
    %s38 = sphi 0, %s35
    %s39 = sphi 0, %s38
    %s55 = sphi 0, %s39
    %s59 = sphi 0, %s59
    %s61 = sphi 0, %s59
    %s62 = sphi 0, %s61
    %s76 = sphi 0, %s62
    %s80 = sphi 0, %s80
    %s82 = sphi 0, %s80
    %s83 = sphi 0, %s82
    %s97 = sphi 0, %s83
    %s105 = sphi 0, %s107
    %s108 = sphi 0, %s105
    %s109 = sphi 0, %s108
    %s125 = sphi 0, %s109
    %s133 = sphi 0, %s135
    %s136 = sphi 0, %s133
    %s137 = sphi 0, %s136
    %s153 = sphi 0, %s137
  $region4: #{forward.2} parent=0 // loop_header_branch
    %14 = sbr.rel (%p12) target = $region8
  $region5: #{forward.2} parent=0 // loop_body
    %s16 = ssub.s32 %s11, 1
    %s17 = ssub.s32 %s11, 2
    %s24 = sadd.s32 1, %s19
    %p25 = scmp.ge.s32.totalorder %s24, 1
    %s26 = scalar_select %p25, 0, %s24
    %s27 = sadd.s32 1, %s18
    %s28 = scalar_select %p25, %s27, %s18
    %p29 = scmp.ge.s32.totalorder %s28, 2
    %s30 = scalar_select %p29, 0, %s28
    %s31 = ssub.s32 %s18, %s30
    %s32 = ssub.s32 %s19, %s26
    %s33 = sor.u32 %s31, %s32
    %p34 = scmp.eq.s32.totalorder %s33, 0
    %s36 = sadd.s32 %s35, 1
    %s37 = scalar_select %p34, %s35, %s36
    %p40 = pneg %p34
    %p41 = scmp.eq.s32.totalorder %s11, 1
    %p42 = por %p40, %p41
    %p43 = scmp.ne.s32.totalorder %s35, %s38
    %p44 = scmp.eq.s32.totalorder %s11, 0
    %p45 = por %p43, %p44
    %p46 = scmp.ne.s32.totalorder %s35, %s38
    %p47 = scmp.eq.s32.totalorder %s16, 1
    %p48 = por %p46, %p47
    %p49 = scmp.ne.s32.totalorder %s38, %s39
    %p50 = scmp.eq.s32.totalorder %s16, 0
    %p51 = por %p49, %p50
    %p52 = scmp.ne.s32.totalorder %s38, %s39
    %p53 = scmp.eq.s32.totalorder %s17, 1
    %p54 = por %p52, %p53
    %p56 = scmp.ne.s32.totalorder %s39, %s55
    %p57 = scmp.eq.s32.totalorder %s17, 0
    %p58 = por %p56, %p57
    %s60 = sadd.s32 %s59, 1
    %p63 = scmp.eq.s32.totalorder %s11, 1
    %p64 = scmp.ne.s32.totalorder %s59, %s61
    %p65 = scmp.eq.s32.totalorder %s11, 0
    %p66 = por %p64, %p65
    %p67 = scmp.ne.s32.totalorder %s59, %s61
    %p68 = scmp.eq.s32.totalorder %s16, 1
    %p69 = por %p67, %p68
    %p70 = scmp.ne.s32.totalorder %s61, %s62
    %p71 = scmp.eq.s32.totalorder %s16, 0
    %p72 = por %p70, %p71
    %p73 = scmp.ne.s32.totalorder %s61, %s62
    %p74 = scmp.eq.s32.totalorder %s17, 1
    %p75 = por %p73, %p74
    %p77 = scmp.ne.s32.totalorder %s62, %s76
    %p78 = scmp.eq.s32.totalorder %s17, 0
    %p79 = por %p77, %p78
    %s81 = sadd.s32 %s80, 1
    %p84 = scmp.eq.s32.totalorder %s11, 1
    %p85 = scmp.ne.s32.totalorder %s80, %s82
    %p86 = scmp.eq.s32.totalorder %s11, 0
    %p87 = por %p85, %p86
    %p88 = scmp.ne.s32.totalorder %s80, %s82
    %p89 = scmp.eq.s32.totalorder %s16, 1
    %p90 = por %p88, %p89
    %p91 = scmp.ne.s32.totalorder %s82, %s83
    %p92 = scmp.eq.s32.totalorder %s16, 0
    %p93 = por %p91, %p92
    %p94 = scmp.ne.s32.totalorder %s82, %s83
    %p95 = scmp.eq.s32.totalorder %s17, 1
    %p96 = por %p94, %p95
    %p98 = scmp.ne.s32.totalorder %s83, %s97
    %p99 = scmp.eq.s32.totalorder %s17, 0
    %p100 = por %p98, %p99
    %s101 = ssub.s32 %s18, %s30
    %s102 = ssub.s32 %s19, %s26
    %s103 = sor.u32 %s101, %s102
    %p104 = scmp.eq.s32.totalorder %s103, 0
    %s106 = sadd.s32 %s105, 1
    %s107 = scalar_select %p104, %s105, %s106
    %p110 = pneg %p104
    %p111 = scmp.eq.s32.totalorder %s11, 1
    %p112 = por %p110, %p111
    %p113 = scmp.ne.s32.totalorder %s105, %s108
    %p114 = scmp.eq.s32.totalorder %s11, 0
    %p115 = por %p113, %p114
    %p116 = scmp.ne.s32.totalorder %s105, %s108
    %p117 = scmp.eq.s32.totalorder %s16, 1
    %p118 = por %p116, %p117
    %p119 = scmp.ne.s32.totalorder %s108, %s109
    %p120 = scmp.eq.s32.totalorder %s16, 0
    %p121 = por %p119, %p120
    %p122 = scmp.ne.s32.totalorder %s108, %s109
    %p123 = scmp.eq.s32.totalorder %s17, 1
    %p124 = por %p122, %p123
    %p126 = scmp.ne.s32.totalorder %s109, %s125
    %p127 = scmp.eq.s32.totalorder %s17, 0
    %p128 = por %p126, %p127
    %s129 = ssub.s32 %s18, %s30
    %s130 = ssub.s32 %s19, %s26
    %s131 = sor.u32 %s129, %s130
    %p132 = scmp.eq.s32.totalorder %s131, 0
    %s134 = sadd.s32 %s133, 1
    %s135 = scalar_select %p132, %s133, %s134
    %p138 = pneg %p132
    %p139 = scmp.eq.s32.totalorder %s11, 1
    %p140 = por %p138, %p139
    %p141 = scmp.ne.s32.totalorder %s133, %s136
    %p142 = scmp.eq.s32.totalorder %s11, 0
    %p143 = por %p141, %p142
    %p144 = scmp.ne.s32.totalorder %s133, %s136
    %p145 = scmp.eq.s32.totalorder %s16, 1
    %p146 = por %p144, %p145
    %p147 = scmp.ne.s32.totalorder %s136, %s137
    %p148 = scmp.eq.s32.totalorder %s16, 0
    %p149 = por %p147, %p148
    %p150 = scmp.ne.s32.totalorder %s136, %s137
    %p151 = scmp.eq.s32.totalorder %s17, 1
    %p152 = por %p150, %p151
    %p154 = scmp.ne.s32.totalorder %s137, %s153
    %p155 = scmp.eq.s32.totalorder %s17, 0
    %p156 = por %p154, %p155
    %p157 = scmp.le.s32.totalorder 1, %s11
    %p158 = scmp.lt.s32.totalorder %s11, 3
    %p159 = pnand %p157, %p158
    %p160 = pneg %p159
    // Predicated region
    $region9: #{forward.2} parent=5 // pred_check
      _
    $region10: #{forward.2} parent=5 // pred_check_branch
      %162 = sbr.rel (%p159) target = $region12
    $region11: #{forward.2} parent=5 // pred_region
      %s163 = ssub.s32 %s11, 1
      // Predicated region
      $region13: #{forward.2} parent=11 // pred_check
        %p164 = pneg %p72
      $region14: #{forward.2} parent=11 // pred_check_branch
        %166 = sbr.rel (%p164) target = $region16
      $region15: #{forward.2} parent=11 // pred_region
        _
      $region16: #{forward.2} parent=11 // pred_fallthru
        _
      // Predicated region
      $region17: #{forward.2} parent=11 // pred_check
        %p167 = pneg %p93
      $region18: #{forward.2} parent=11 // pred_check_branch
        %169 = sbr.rel (%p167) target = $region20
      $region19: #{forward.2} parent=11 // pred_region
        _
      $region20: #{forward.2} parent=11 // pred_fallthru
        _
    $region12: #{forward.2} parent=5 // pred_fallthru
      _
    %p170 = scmp.lt.s32.totalorder %s11, 2
    // Predicated region
    $region21: #{forward.2} parent=5 // pred_check
      %p171 = pneg %p170
    $region22: #{forward.2} parent=5 // pred_check_branch
      %173 = sbr.rel (%p171) target = $region24
    $region23: #{forward.2} parent=5 // pred_region
      // Predicated region
      $region25: #{forward.2} parent=23 // pred_check
        %p174 = pneg %p45
      $region26: #{forward.2} parent=23 // pred_check_branch
        %176 = sbr.rel (%p174) target = $region28
      $region27: #{forward.2} parent=23 // pred_region
        %s177 = smul.u32 16, %s19
        %p178 = scmp.lt.s32.totalorder %s18, 1
        %s179 = scalar_select %p178, %s18, 1
        %p180 = scmp.lt.s32.totalorder %s177, 15
        %s181 = scalar_select %p180, %s177, 15
        %s182 = smul.addr %s179, 16
        %s183 = sadd.s32 %s181, %s182
        %s184 = smul.addr %s183, 4
        %s185 = scalar_lea.vmem %s0, %s184
        %s186 = smul.u32 16, %s19
      $region28: #{forward.2} parent=23 // pred_fallthru
        _
    $region24: #{forward.2} parent=5 // pred_fallthru
      _
    %p187 = scmp.le.s32.totalorder 1, %s11
    %p188 = scmp.lt.s32.totalorder %s11, 3
    %p189 = pnand %p187, %p188
    %p190 = pneg %p189
    // Predicated region
    $region29: #{forward.2} parent=5 // pred_check
      _
    $region30: #{forward.2} parent=5 // pred_check_branch
      %192 = sbr.rel (%p189) target = $region32
    $region31: #{forward.2} parent=5 // pred_region
      %s193 = ssub.s32 %s11, 1
      %s194 = smul.u32 16, %s21
      %p195 = scmp.lt.s32.totalorder %s20, 1
      %s196 = scalar_select %p195, %s20, 1
      %p197 = scmp.lt.s32.totalorder %s194, 15
      %s198 = scalar_select %p197, %s194, 15
      %s199 = smul.addr %s196, 16
      %s200 = sadd.s32 %s198, %s199
      %s201 = smul.addr %s200, 4
      %s202 = scalar_lea.vmem %s0, %s201
      %p203 = pneg %p51
      %p204 = pneg %p48
      %p205 = pneg %p72
      %p206 = pneg %p69
      %p207 = pneg %p93
      %p208 = pneg %p90
      %p209 = pneg %p121
      %p210 = pneg %p118
      %s211 = smul.u32 16, %s21
      %p212 = scmp.lt.s32.totalorder %s20, 1
      %s213 = scalar_select %p212, %s20, 1
      %p214 = scmp.lt.s32.totalorder %s211, 15
      %s215 = scalar_select %p214, %s211, 15
      %s216 = smul.addr %s215, 2
      %s217 = smul.addr %s213, 32
      %s218 = sadd.s32 %s216, %s217
      %s219 = smul.addr %s218, 4
      %s220 = scalar_lea.vmem %s3, %s219
      %p221 = pneg %p149
      %p222 = pneg %p146
      %p223 = scmp.lt.s32.totalorder %s20, 1
      %s224 = scalar_select %p223, %s20, 1
      %p225 = scmp.lt.s32.totalorder %s21, 0
      %s226 = scalar_select %p225, %s21, 0
      %s227 = smul.addr %s224, 32
      %s228 = sadd.s32 %s226, %s227
      %s229 = smul.addr %s228, 4
      %s230 = scalar_lea.vmem %s4, %s229
      %s231 = smul.u32 16, %s21
      %p232 = scmp.lt.s32.totalorder %s20, 1
      %s233 = scalar_select %p232, %s20, 1
      %p234 = scmp.lt.s32.totalorder %s231, 15
      %s235 = scalar_select %p234, %s231, 15
      %s236 = smul.addr %s233, 16
      %s237 = sadd.s32 %s235, %s236
      %s238 = smul.addr %s237, 4
      %s239 = scalar_lea.vmem %s0, %s238
      %s240 = smul.u32 16, %s21
      %s241 = smul.u32 16, %s21
      %p242 = scmp.lt.s32.totalorder %s20, 1
      %s243 = scalar_select %p242, %s20, 1
      %p244 = scmp.lt.s32.totalorder %s241, 15
      %s245 = scalar_select %p244, %s241, 15
      %s246 = smul.addr %s245, 2
      %s247 = smul.addr %s243, 32
      %s248 = sadd.s32 %s246, %s247
      %s249 = smul.addr %s248, 4
      %s250 = scalar_lea.vmem %s3, %s249
      %s251 = smul.u32 16, %s21
      %p252 = scmp.lt.s32.totalorder %s20, 1
      %s253 = scalar_select %p252, %s20, 1
      %p254 = scmp.lt.s32.totalorder %s21, 0
      %s255 = scalar_select %p254, %s21, 0
      %s256 = smul.addr %s253, 32
      %s257 = sadd.s32 %s255, %s256
      %s258 = smul.addr %s257, 4
      %s259 = scalar_lea.vmem %s4, %s258
      %v261 = vld [vmem:[%s239] sm:$0xf]
      %v262 = vld [vmem:[%s239 + $0x4] sm:$0xf]
      %v263 = vld [vmem:[%s239 + $0x8] sm:$0xf]
      %v264 = vld [vmem:[%s239 + $0xc] sm:$0xf]
      %v265 = vld [vmem:[%s239 + $0x10] sm:$0xf]
      %v266 = vld [vmem:[%s239 + $0x14] sm:$0xf]
      %v267 = vld [vmem:[%s239 + $0x18] sm:$0xf]
      %v268 = vld [vmem:[%s239 + $0x1c] sm:$0xf]
      %v269 = vld [vmem:[%s239 + $0x20] sm:$0xf]
      %v270 = vld [vmem:[%s239 + $0x24] sm:$0xf]
      %v271 = vld [vmem:[%s239 + $0x28] sm:$0xf]
      %v272 = vld [vmem:[%s239 + $0x2c] sm:$0xf]
      %v273 = vld [vmem:[%s239 + $0x30] sm:$0xf]
      %v274 = vld [vmem:[%s239 + $0x34] sm:$0xf]
      %v275 = vld [vmem:[%s239 + $0x38] sm:$0xf]
      %v276 = vld [vmem:[%s239 + $0x3c] sm:$0xf]
      %v277 = vld [vmem:[%s1] sm:$0xff]
      %v278 = vld [vmem:[%s1 + $0x8] sm:$0xff]
      %v279 = vld [vmem:[%s1 + $0x10] sm:$0xff]
      %v280 = vld [vmem:[%s1 + $0x18] sm:$0xff]
      %v281 = vld [vmem:[%s1 + $0x20] sm:$0xff]
      %v282 = vld [vmem:[%s1 + $0x28] sm:$0xff]
      %v283 = vld [vmem:[%s1 + $0x30] sm:$0xff]
      %v284 = vld [vmem:[%s1 + $0x38] sm:$0xff]
      %v285 = vld [vmem:[%s2] sm:$0xf]
      %v287 = vlaneseq
      %v288 = vshrl.u32 %v287, 7
      %v289 = vsub.s32 0, %v288
      %v290 = vrot.slane %v285, %v289
      %v291 = vlaneseq
      %v292 = vshrl.u32 %v291, 7
      %v293 = vsub.s32 1, %v292
      %v294 = vrot.slane %v285, %v293
      %v295 = vlaneseq
      %v296 = vshrl.u32 %v295, 7
      %v297 = vsub.s32 2, %v296
      %v298 = vrot.slane %v285, %v297
      %v299 = vlaneseq
      %v300 = vshrl.u32 %v299, 7
      %v301 = vsub.s32 3, %v300
      %v302 = vrot.slane %v285, %v301
      %v323 = vunpack.c.l.b16 %v261
      %v324 = vunpack.c.l.b16 %v262
      %v325 = vunpack.c.l.b16 %v263
      %v326 = vunpack.c.l.b16 %v264
      %v327 = vunpack.c.l.b16 %v265
      %v328 = vunpack.c.l.b16 %v266
      %v329 = vunpack.c.l.b16 %v267
      %v330 = vunpack.c.l.b16 %v268
      %v331 = vunpack.c.l.b16 %v269
      %v332 = vunpack.c.l.b16 %v270
      %v333 = vunpack.c.l.b16 %v271
      %v334 = vunpack.c.l.b16 %v272
      %v335 = vunpack.c.l.b16 %v273
      %v336 = vunpack.c.l.b16 %v274
      %v337 = vunpack.c.l.b16 %v275
      %v338 = vunpack.c.l.b16 %v276
      %v339 = vpack.c.b16 %v324, %v323
      %v340 = vpack.c.b16 %v326, %v325
      %v341 = vpack.c.b16 %v328, %v327
      %v342 = vpack.c.b16 %v330, %v329
      %v343 = vpack.c.b16 %v332, %v331
      %v344 = vpack.c.b16 %v334, %v333
      %v345 = vpack.c.b16 %v336, %v335
      %v346 = vpack.c.b16 %v338, %v337
      %v355 = vunpack.c.l.b16 %v277
      %v356 = vunpack.c.h.b16 %v277
      %v357 = vunpack.c.l.b16 %v278
      %v358 = vunpack.c.h.b16 %v278
      %v359 = vunpack.c.l.b16 %v279
      %v360 = vunpack.c.h.b16 %v279
      %v361 = vunpack.c.l.b16 %v280
      %v362 = vunpack.c.h.b16 %v280
      %v363 = vunpack.c.l.b16 %v281
      %v364 = vunpack.c.h.b16 %v281
      %v365 = vunpack.c.l.b16 %v282
      %v366 = vunpack.c.h.b16 %v282
      %v367 = vunpack.c.l.b16 %v283
      %v368 = vunpack.c.h.b16 %v283
      %v369 = vunpack.c.l.b16 %v284
      %v370 = vunpack.c.h.b16 %v284
      %v371 = vpack.c.b16 %v359, %v355
      %v372 = vpack.c.b16 %v360, %v356
      %v373 = vpack.c.b16 %v361, %v357
      %v374 = vpack.c.b16 %v362, %v358
      %v375 = vpack.c.b16 %v367, %v363
      %v376 = vpack.c.b16 %v368, %v364
      %v377 = vpack.c.b16 %v369, %v365
      %v378 = vpack.c.b16 %v370, %v366
      %vm387 = vcmask 261120
      %v389 = vsel %vm387, %v339, 0
      %v392 = vsel %vm387, %v340, 0
      %v395 = vsel %vm387, %v341, 0
      %v398 = vsel %vm387, %v342, 0
      %v401 = vsel %vm387, %v343, 0
      %v404 = vsel %vm387, %v344, 0
      %v407 = vsel %vm387, %v345, 0
      %v410 = vsel %vm387, %v346, 0
      %412 = vmatprep.subr.bf16.mxu0 %v372
      %413 = vmatpush1.bf16.msra.mxu0 %v371
      %414 = vmatprep.subr.bf16.mxu0 %v376
      %415 = vmatpush1.bf16.msra.mxu0 %v375
      %416 = vmatprep.subr.bf16.mxu0 0
      %417 = vmatpush1.bf16.msra.mxu0 0
      %418 = vmatprep.subr.bf16.mxu0 0
      %419 = vmatpush1.bf16.msra.mxu0 0
      %420 = vmatprep.subr.bf16.mxu0 0
      %421 = vmatpush1.bf16.msra.mxu0 0
      %422 = vmatprep.subr.bf16.mxu0 0
      %423 = vmatpush1.bf16.msra.mxu0 0
      %424 = vmatprep.subr.bf16.mxu0 0
      %425 = vmatpush1.bf16.msra.mxu0 0
      %426 = vmatprep.subr.bf16.mxu0 0
      %427 = vmatpush1.bf16.msra.mxu0 0
      %428 = vmatprep.subr.bf16.mxu0 0
      %429 = vmatpush1.bf16.msra.mxu0 0
      %430 = vmatprep.subr.bf16.mxu0 0
      %431 = vmatpush1.bf16.msra.mxu0 0
      %432 = vmatprep.subr.bf16.mxu0 0
      %433 = vmatpush1.bf16.msra.mxu0 0
      %434 = vmatprep.subr.bf16.mxu0 0
      %435 = vmatpush1.bf16.msra.mxu0 0
      %436 = vmatprep.subr.bf16.mxu0 0
      %437 = vmatpush1.bf16.msra.mxu0 0
      %438 = vmatprep.subr.bf16.mxu0 0
      %439 = vmatpush1.bf16.msra.mxu0 0
      %440 = vmatprep.subr.bf16.mxu0 0
      %441 = vmatpush1.bf16.msra.mxu0 0
      %442 = vmatprep.subr.bf16.mxu0 0
      %443 = vmatpush1.bf16.msra.mxu0 0
      %444 = vmatprep.mubr.bf16.mxu0 0
      %445 = vmatmul.mubr.bf16.gmra.mrb[0].mxu0 %v389
      %v446 = vpop.f32.mrb[0].mxu0
      %v447 = vadd.f32 %v290, %v446
      %v448 = vpop.f32.mrb[0].mxu0
      %v449 = vadd.f32 %v294, %v448
      %v450 = vpop.f32.mrb[0].mxu0
      %v451 = vadd.f32 %v290, %v450
      %v452 = vpop.f32.mrb[0].mxu0
      %v453 = vadd.f32 %v294, %v452
      %454 = vmatprep.mubr.bf16.mxu0 0
      %455 = vmatmul.mubr.bf16.gmra.mrb[0].mxu0 %v392
      %v456 = vpop.f32.mrb[0].mxu0
      %v457 = vadd.f32 %v290, %v456
      %v458 = vpop.f32.mrb[0].mxu0
      %v459 = vadd.f32 %v294, %v458
      %v460 = vpop.f32.mrb[0].mxu0
      %v461 = vadd.f32 %v290, %v460
      %v462 = vpop.f32.mrb[0].mxu0
      %v463 = vadd.f32 %v294, %v462
      %464 = vmatprep.mubr.bf16.mxu0 0
      %465 = vmatmul.mubr.bf16.gmra.mrb[0].mxu0 %v395
      %v466 = vpop.f32.mrb[0].mxu0
      %v467 = vadd.f32 %v290, %v466
      %v468 = vpop.f32.mrb[0].mxu0
      %v469 = vadd.f32 %v294, %v468
      %v470 = vpop.f32.mrb[0].mxu0
      %v471 = vadd.f32 %v290, %v470
      %v472 = vpop.f32.mrb[0].mxu0
      %v473 = vadd.f32 %v294, %v472
      %474 = vmatprep.mubr.bf16.mxu0 0
      %475 = vmatmul.mubr.bf16.gmra.mrb[0].mxu0 %v398
      %v476 = vpop.f32.mrb[0].mxu0
      %v477 = vadd.f32 %v290, %v476
      %v478 = vpop.f32.mrb[0].mxu0
      %v479 = vadd.f32 %v294, %v478
      %v480 = vpop.f32.mrb[0].mxu0
      %v481 = vadd.f32 %v290, %v480
      %v482 = vpop.f32.mrb[0].mxu0
      %v483 = vadd.f32 %v294, %v482
      %484 = vmatprep.mubr.bf16.mxu0 0
      %485 = vmatmul.mubr.bf16.gmra.mrb[0].mxu0 %v401
      %v486 = vpop.f32.mrb[0].mxu0
      %v487 = vadd.f32 %v290, %v486
      %v488 = vpop.f32.mrb[0].mxu0
      %v489 = vadd.f32 %v294, %v488
      %v490 = vpop.f32.mrb[0].mxu0
      %v491 = vadd.f32 %v290, %v490
      %v492 = vpop.f32.mrb[0].mxu0
      %v493 = vadd.f32 %v294, %v492
      %494 = vmatprep.mubr.bf16.mxu0 0
      %495 = vmatmul.mubr.bf16.gmra.mrb[0].mxu0 %v404
      %v496 = vpop.f32.mrb[0].mxu0
      %v497 = vadd.f32 %v290, %v496
      %v498 = vpop.f32.mrb[0].mxu0
      %v499 = vadd.f32 %v294, %v498
      %v500 = vpop.f32.mrb[0].mxu0
      %v501 = vadd.f32 %v290, %v500
      %v502 = vpop.f32.mrb[0].mxu0
      %v503 = vadd.f32 %v294, %v502
      %504 = vmatprep.mubr.bf16.mxu0 0
      %505 = vmatmul.mubr.bf16.gmra.mrb[0].mxu0 %v407
      %v506 = vpop.f32.mrb[0].mxu0
      %v507 = vadd.f32 %v290, %v506
      %v508 = vpop.f32.mrb[0].mxu0
      %v509 = vadd.f32 %v294, %v508
      %v510 = vpop.f32.mrb[0].mxu0
      %v511 = vadd.f32 %v290, %v510
      %v512 = vpop.f32.mrb[0].mxu0
      %v513 = vadd.f32 %v294, %v512
      %514 = vmatprep.mubr.bf16.mxu0 0
      %515 = vmatmul.mubr.bf16.gmra.mrb[0].mxu0 %v410
      %v516 = vpop.f32.mrb[0].mxu0
      %v517 = vadd.f32 %v290, %v516
      %v518 = vpop.f32.mrb[0].mxu0
      %v519 = vadd.f32 %v294, %v518
      %v520 = vpop.f32.mrb[0].mxu0
      %v521 = vadd.f32 %v290, %v520
      %v522 = vpop.f32.mrb[0].mxu0
      %v523 = vadd.f32 %v294, %v522
      %524 = vdwg.mxu0
      %525 = vmatprep.subr.bf16.mxu0 %v374
      %526 = vmatpush1.bf16.msra.mxu0 %v373
      %527 = vmatprep.subr.bf16.mxu0 %v378
      %528 = vmatpush1.bf16.msra.mxu0 %v377
      %529 = vmatprep.subr.bf16.mxu0 0
      %530 = vmatpush1.bf16.msra.mxu0 0
      %531 = vmatprep.subr.bf16.mxu0 0
      %532 = vmatpush1.bf16.msra.mxu0 0
      %533 = vmatprep.subr.bf16.mxu0 0
      %534 = vmatpush1.bf16.msra.mxu0 0
      %535 = vmatprep.subr.bf16.mxu0 0
      %536 = vmatpush1.bf16.msra.mxu0 0
      %537 = vmatprep.subr.bf16.mxu0 0
      %538 = vmatpush1.bf16.msra.mxu0 0
      %539 = vmatprep.subr.bf16.mxu0 0
      %540 = vmatpush1.bf16.msra.mxu0 0
      %541 = vmatprep.subr.bf16.mxu0 0
      %542 = vmatpush1.bf16.msra.mxu0 0
      %543 = vmatprep.subr.bf16.mxu0 0
      %544 = vmatpush1.bf16.msra.mxu0 0
      %545 = vmatprep.subr.bf16.mxu0 0
      %546 = vmatpush1.bf16.msra.mxu0 0
      %547 = vmatprep.subr.bf16.mxu0 0
      %548 = vmatpush1.bf16.msra.mxu0 0
      %549 = vmatprep.subr.bf16.mxu0 0
      %550 = vmatpush1.bf16.msra.mxu0 0
      %551 = vmatprep.subr.bf16.mxu0 0
      %552 = vmatpush1.bf16.msra.mxu0 0
      %553 = vmatprep.subr.bf16.mxu0 0
      %554 = vmatpush1.bf16.msra.mxu0 0
      %555 = vmatprep.subr.bf16.mxu0 0
      %556 = vmatpush1.bf16.msra.mxu0 0
      %557 = vmatprep.mubr.bf16.mxu0 0
      %558 = vmatmul.mubr.bf16.gmra.mrb[0].mxu0 %v389
      %v559 = vpop.f32.mrb[0].mxu0
      %v560 = vadd.f32 %v298, %v559
      %v561 = vpop.f32.mrb[0].mxu0
      %v562 = vadd.f32 %v302, %v561
      %v563 = vpop.f32.mrb[0].mxu0
      %v564 = vadd.f32 %v298, %v563
      %v565 = vpop.f32.mrb[0].mxu0
      %v566 = vadd.f32 %v302, %v565
      %567 = vmatprep.mubr.bf16.mxu0 0
      %568 = vmatmul.mubr.bf16.gmra.mrb[0].mxu0 %v392
      %v569 = vpop.f32.mrb[0].mxu0
      %v570 = vadd.f32 %v298, %v569
      %v571 = vpop.f32.mrb[0].mxu0
      %v572 = vadd.f32 %v302, %v571
      %v573 = vpop.f32.mrb[0].mxu0
      %v574 = vadd.f32 %v298, %v573
      %v575 = vpop.f32.mrb[0].mxu0
      %v576 = vadd.f32 %v302, %v575
      %577 = vmatprep.mubr.bf16.mxu0 0
      %578 = vmatmul.mubr.bf16.gmra.mrb[0].mxu0 %v395
      %v579 = vpop.f32.mrb[0].mxu0
      %v580 = vadd.f32 %v298, %v579
      %v581 = vpop.f32.mrb[0].mxu0
      %v582 = vadd.f32 %v302, %v581
      %v583 = vpop.f32.mrb[0].mxu0
      %v584 = vadd.f32 %v298, %v583
      %v585 = vpop.f32.mrb[0].mxu0
      %v586 = vadd.f32 %v302, %v585
      %587 = vmatprep.mubr.bf16.mxu0 0
      %588 = vmatmul.mubr.bf16.gmra.mrb[0].mxu0 %v398
      %v589 = vpop.f32.mrb[0].mxu0
      %v590 = vadd.f32 %v298, %v589
      %v591 = vpop.f32.mrb[0].mxu0
      %v592 = vadd.f32 %v302, %v591
      %v593 = vpop.f32.mrb[0].mxu0
      %v594 = vadd.f32 %v298, %v593
      %v595 = vpop.f32.mrb[0].mxu0
      %v596 = vadd.f32 %v302, %v595
      %597 = vmatprep.mubr.bf16.mxu0 0
      %598 = vmatmul.mubr.bf16.gmra.mrb[0].mxu0 %v401
      %v599 = vpop.f32.mrb[0].mxu0
      %v600 = vadd.f32 %v298, %v599
      %v601 = vpop.f32.mrb[0].mxu0
      %v602 = vadd.f32 %v302, %v601
      %v603 = vpop.f32.mrb[0].mxu0
      %v604 = vadd.f32 %v298, %v603
      %v605 = vpop.f32.mrb[0].mxu0
      %v606 = vadd.f32 %v302, %v605
      %607 = vmatprep.mubr.bf16.mxu0 0
      %608 = vmatmul.mubr.bf16.gmra.mrb[0].mxu0 %v404
      %v609 = vpop.f32.mrb[0].mxu0
      %v610 = vadd.f32 %v298, %v609
      %v611 = vpop.f32.mrb[0].mxu0
      %v612 = vadd.f32 %v302, %v611
      %v613 = vpop.f32.mrb[0].mxu0
      %v614 = vadd.f32 %v298, %v613
      %v615 = vpop.f32.mrb[0].mxu0
      %v616 = vadd.f32 %v302, %v615
      %617 = vmatprep.mubr.bf16.mxu0 0
      %618 = vmatmul.mubr.bf16.gmra.mrb[0].mxu0 %v407
      %v619 = vpop.f32.mrb[0].mxu0
      %v620 = vadd.f32 %v298, %v619
      %v621 = vpop.f32.mrb[0].mxu0
      %v622 = vadd.f32 %v302, %v621
      %v623 = vpop.f32.mrb[0].mxu0
      %v624 = vadd.f32 %v298, %v623
      %v625 = vpop.f32.mrb[0].mxu0
      %v626 = vadd.f32 %v302, %v625
      %627 = vmatprep.mubr.bf16.mxu0 0
      %628 = vmatmul.mubr.bf16.gmra.mrb[0].mxu0 %v410
      %v629 = vpop.f32.mrb[0].mxu0
      %v630 = vadd.f32 %v298, %v629
      %v631 = vpop.f32.mrb[0].mxu0
      %v632 = vadd.f32 %v302, %v631
      %v633 = vpop.f32.mrb[0].mxu0
      %v634 = vadd.f32 %v298, %v633
      %v635 = vpop.f32.mrb[0].mxu0
      %v636 = vadd.f32 %v302, %v635
      %637 = vdwg.mxu0
      %v638 = vpack.c.bf16 %v451, %v447
      %v639 = vpack.c.bf16 %v453, %v449
      %v640 = vpack.c.bf16 %v461, %v457
      %v641 = vpack.c.bf16 %v463, %v459
      %v642 = vpack.c.bf16 %v471, %v467
      %v643 = vpack.c.bf16 %v473, %v469
      %v644 = vpack.c.bf16 %v481, %v477
      %v645 = vpack.c.bf16 %v483, %v479
      %v646 = vpack.c.bf16 %v491, %v487
      %v647 = vpack.c.bf16 %v493, %v489
      %v648 = vpack.c.bf16 %v501, %v497
      %v649 = vpack.c.bf16 %v503, %v499
      %v650 = vpack.c.bf16 %v511, %v507
      %v651 = vpack.c.bf16 %v513, %v509
      %v652 = vpack.c.bf16 %v521, %v517
      %v653 = vpack.c.bf16 %v523, %v519
      %v670 = vunpack.c.l.b16 %v638
      %v671 = vunpack.c.l.b16 %v639
      %v672 = vunpack.c.h.b16 %v638
      %v673 = vunpack.c.h.b16 %v639
      %v674 = vunpack.c.l.b16 %v640
      %v675 = vunpack.c.l.b16 %v641
      %v676 = vunpack.c.h.b16 %v640
      %v677 = vunpack.c.h.b16 %v641
      %v678 = vunpack.c.l.b16 %v642
      %v679 = vunpack.c.l.b16 %v643
      %v680 = vunpack.c.h.b16 %v642
      %v681 = vunpack.c.h.b16 %v643
      %v682 = vunpack.c.l.b16 %v644
      %v683 = vunpack.c.l.b16 %v645
      %v684 = vunpack.c.h.b16 %v644
      %v685 = vunpack.c.h.b16 %v645
      %v686 = vunpack.c.l.b16 %v646
      %v687 = vunpack.c.l.b16 %v647
      %v688 = vunpack.c.h.b16 %v646
      %v689 = vunpack.c.h.b16 %v647
      %v690 = vunpack.c.l.b16 %v648
      %v691 = vunpack.c.l.b16 %v649
      %v692 = vunpack.c.h.b16 %v648
      %v693 = vunpack.c.h.b16 %v649
      %v694 = vunpack.c.l.b16 %v650
      %v695 = vunpack.c.l.b16 %v651
      %v696 = vunpack.c.h.b16 %v650
      %v697 = vunpack.c.h.b16 %v651
      %v698 = vunpack.c.l.b16 %v652
      %v699 = vunpack.c.l.b16 %v653
      %v700 = vunpack.c.h.b16 %v652
      %v701 = vunpack.c.h.b16 %v653
      %v702 = vpack.c.b16 %v671, %v670
      %v703 = vpack.c.b16 %v673, %v672
      %v704 = vpack.c.b16 %v675, %v674
      %v705 = vpack.c.b16 %v677, %v676
      %v706 = vpack.c.b16 %v679, %v678
      %v707 = vpack.c.b16 %v681, %v680
      %v708 = vpack.c.b16 %v683, %v682
      %v709 = vpack.c.b16 %v685, %v684
      %v710 = vpack.c.b16 %v687, %v686
      %v711 = vpack.c.b16 %v689, %v688
      %v712 = vpack.c.b16 %v691, %v690
      %v713 = vpack.c.b16 %v693, %v692
      %v714 = vpack.c.b16 %v695, %v694
      %v715 = vpack.c.b16 %v697, %v696
      %v716 = vpack.c.b16 %v699, %v698
      %v717 = vpack.c.b16 %v701, %v700
      %734 = vst [vmem:[%s250] sm:$0xff] %v702
      %735 = vst [vmem:[%s250 + $0x8] sm:$0xff] %v703
      %736 = vst [vmem:[%s250 + $0x10] sm:$0xff] %v704
      %737 = vst [vmem:[%s250 + $0x18] sm:$0xff] %v705
      %738 = vst [vmem:[%s250 + $0x20] sm:$0xff] %v706
      %739 = vst [vmem:[%s250 + $0x28] sm:$0xff] %v707
      %740 = vst [vmem:[%s250 + $0x30] sm:$0xff] %v708
      %741 = vst [vmem:[%s250 + $0x38] sm:$0xff] %v709
      %742 = vst [vmem:[%s250 + $0x40] sm:$0xff] %v710
      %743 = vst [vmem:[%s250 + $0x48] sm:$0xff] %v711
      %744 = vst [vmem:[%s250 + $0x50] sm:$0xff] %v712
      %745 = vst [vmem:[%s250 + $0x58] sm:$0xff] %v713
      %746 = vst [vmem:[%s250 + $0x60] sm:$0xff] %v714
      %747 = vst [vmem:[%s250 + $0x68] sm:$0xff] %v715
      %748 = vst [vmem:[%s250 + $0x70] sm:$0xff] %v716
      %749 = vst [vmem:[%s250 + $0x78] sm:$0xff] %v717
      %750 = vxpose.xlu0.b32.start [1/16] %v560, 128
      %751 = vxpose.xlu0.b32.cont [2/16] %v564, 128
      %752 = vxpose.xlu0.b32.cont [3/16] %v570, 128
      %753 = vxpose.xlu0.b32.cont [4/16] %v574, 128
      %754 = vxpose.xlu0.b32.cont [5/16] %v580, 128
      %755 = vxpose.xlu0.b32.cont [6/16] %v584, 128
      %756 = vxpose.xlu0.b32.cont [7/16] %v590, 128
      %757 = vxpose.xlu0.b32.cont [8/16] %v594, 128
      %758 = vxpose.xlu0.b32.cont [9/16] %v600, 128
      %759 = vxpose.xlu0.b32.cont [10/16] %v604, 128
      %760 = vxpose.xlu0.b32.cont [11/16] %v610, 128
      %761 = vxpose.xlu0.b32.cont [12/16] %v614, 128
      %762 = vxpose.xlu0.b32.cont [13/16] %v620, 128
      %763 = vxpose.xlu0.b32.cont [14/16] %v624, 128
      %764 = vxpose.xlu0.b32.cont [15/16] %v630, 128
      %765 = vxpose.xlu0.b32.end [16/16] %v634, 128
      %v766 = vpop.trf.xlu0
      %v767 = vpop.trf.xlu0
      %v768 = vpop.trf.xlu0
      %v769 = vpop.trf.xlu0
      %v770 = vpop.trf.xlu0
      %v771 = vpop.trf.xlu0
      %v772 = vpop.trf.xlu0
      %v773 = vpop.trf.xlu0
      %v774 = vpop.trf.xlu0
      %v775 = vpop.trf.xlu0
      %v776 = vpop.trf.xlu0
      %v777 = vpop.trf.xlu0
      %v778 = vpop.trf.xlu0
      %v779 = vpop.trf.xlu0
      %v780 = vpop.trf.xlu0
      %v781 = vpop.trf.xlu0
      %782 = vxpose.xlu0.b32.start [1/16] %v562, 128
      %783 = vxpose.xlu0.b32.cont [2/16] %v566, 128
      %784 = vxpose.xlu0.b32.cont [3/16] %v572, 128
      %785 = vxpose.xlu0.b32.cont [4/16] %v576, 128
      %786 = vxpose.xlu0.b32.cont [5/16] %v582, 128
      %787 = vxpose.xlu0.b32.cont [6/16] %v586, 128
      %788 = vxpose.xlu0.b32.cont [7/16] %v592, 128
      %789 = vxpose.xlu0.b32.cont [8/16] %v596, 128
      %790 = vxpose.xlu0.b32.cont [9/16] %v602, 128
      %791 = vxpose.xlu0.b32.cont [10/16] %v606, 128
      %792 = vxpose.xlu0.b32.cont [11/16] %v612, 128
      %793 = vxpose.xlu0.b32.cont [12/16] %v616, 128
      %794 = vxpose.xlu0.b32.cont [13/16] %v622, 128
      %795 = vxpose.xlu0.b32.cont [14/16] %v626, 128
      %796 = vxpose.xlu0.b32.cont [15/16] %v632, 128
      %797 = vxpose.xlu0.b32.end [16/16] %v636, 128
      %v798 = vpop.trf.xlu0
      %v799 = vpop.trf.xlu0
      %v800 = vpop.trf.xlu0
      %v801 = vpop.trf.xlu0
      %v802 = vpop.trf.xlu0
      %v803 = vpop.trf.xlu0
      %v804 = vpop.trf.xlu0
      %v805 = vpop.trf.xlu0
      %v806 = vpop.trf.xlu0
      %v807 = vpop.trf.xlu0
      %v808 = vpop.trf.xlu0
      %v809 = vpop.trf.xlu0
      %v810 = vpop.trf.xlu0
      %v811 = vpop.trf.xlu0
      %v812 = vpop.trf.xlu0
      %v813 = vpop.trf.xlu0
      %v814 = vpack.c.bf16 %v767, %v766
      %v815 = vpack.c.bf16 %v769, %v768
      %v816 = vpack.c.bf16 %v771, %v770
      %v817 = vpack.c.bf16 %v773, %v772
      %v818 = vpack.c.bf16 %v775, %v774
      %v819 = vpack.c.bf16 %v777, %v776
      %v820 = vpack.c.bf16 %v779, %v778
      %v821 = vpack.c.bf16 %v781, %v780
      %v822 = vpack.c.bf16 %v799, %v798
      %v823 = vpack.c.bf16 %v801, %v800
      %v824 = vpack.c.bf16 %v803, %v802
      %v825 = vpack.c.bf16 %v805, %v804
      %v826 = vpack.c.bf16 %v807, %v806
      %v827 = vpack.c.bf16 %v809, %v808
      %v828 = vpack.c.bf16 %v811, %v810
      %v829 = vpack.c.bf16 %v813, %v812
      %v846 = vunpack.c.l.b16 %v814
      %v847 = vunpack.c.h.b16 %v814
      %v848 = vunpack.c.l.b16 %v815
      %v849 = vunpack.c.h.b16 %v815
      %v850 = vunpack.c.l.b16 %v816
      %v851 = vunpack.c.h.b16 %v816
      %v852 = vunpack.c.l.b16 %v817
      %v853 = vunpack.c.h.b16 %v817
      %v854 = vunpack.c.l.b16 %v818
      %v855 = vunpack.c.h.b16 %v818
      %v856 = vunpack.c.l.b16 %v819
      %v857 = vunpack.c.h.b16 %v819
      %v858 = vunpack.c.l.b16 %v820
      %v859 = vunpack.c.h.b16 %v820
      %v860 = vunpack.c.l.b16 %v821
      %v861 = vunpack.c.h.b16 %v821
      %v862 = vunpack.c.l.b16 %v822
      %v863 = vunpack.c.h.b16 %v822
      %v864 = vunpack.c.l.b16 %v823
      %v865 = vunpack.c.h.b16 %v823
      %v866 = vunpack.c.l.b16 %v824
      %v867 = vunpack.c.h.b16 %v824
      %v868 = vunpack.c.l.b16 %v825
      %v869 = vunpack.c.h.b16 %v825
      %v870 = vunpack.c.l.b16 %v826
      %v871 = vunpack.c.h.b16 %v826
      %v872 = vunpack.c.l.b16 %v827
      %v873 = vunpack.c.h.b16 %v827
      %v874 = vunpack.c.l.b16 %v828
      %v875 = vunpack.c.h.b16 %v828
      %v876 = vunpack.c.l.b16 %v829
      %v877 = vunpack.c.h.b16 %v829
      %v878 = vpack.c.b16 %v846, %v846
      %v879 = vpack.c.b16 %v847, %v847
      %v880 = vpack.c.b16 %v848, %v848
      %v881 = vpack.c.b16 %v849, %v849
      %v882 = vpack.c.b16 %v850, %v850
      %v883 = vpack.c.b16 %v851, %v851
      %v884 = vpack.c.b16 %v852, %v852
      %v885 = vpack.c.b16 %v853, %v853
      %v886 = vpack.c.b16 %v854, %v854
      %v887 = vpack.c.b16 %v855, %v855
      %v888 = vpack.c.b16 %v856, %v856
      %v889 = vpack.c.b16 %v857, %v857
      %v890 = vpack.c.b16 %v858, %v858
      %v891 = vpack.c.b16 %v859, %v859
      %v892 = vpack.c.b16 %v860, %v860
      %v893 = vpack.c.b16 %v861, %v861
      %v894 = vpack.c.b16 %v862, %v862
      %v895 = vpack.c.b16 %v863, %v863
      %v896 = vpack.c.b16 %v864, %v864
      %v897 = vpack.c.b16 %v865, %v865
      %v898 = vpack.c.b16 %v866, %v866
      %v899 = vpack.c.b16 %v867, %v867
      %v900 = vpack.c.b16 %v868, %v868
      %v901 = vpack.c.b16 %v869, %v869
      %v902 = vpack.c.b16 %v870, %v870
      %v903 = vpack.c.b16 %v871, %v871
      %v904 = vpack.c.b16 %v872, %v872
      %v905 = vpack.c.b16 %v873, %v873
      %v906 = vpack.c.b16 %v874, %v874
      %v907 = vpack.c.b16 %v875, %v875
      %v908 = vpack.c.b16 %v876, %v876
      %v909 = vpack.c.b16 %v877, %v877
      %942 = vst [vmem:[%s259] sm:$0xf] %v878
      %943 = vst [vmem:[%s259 + $0x4] sm:$0xf] %v879
      %944 = vst [vmem:[%s259 + $0x8] sm:$0xf] %v880
      %945 = vst [vmem:[%s259 + $0xc] sm:$0xf] %v881
      %946 = vst [vmem:[%s259 + $0x10] sm:$0xf] %v882
      %947 = vst [vmem:[%s259 + $0x14] sm:$0xf] %v883
      %948 = vst [vmem:[%s259 + $0x18] sm:$0xf] %v884
      %949 = vst [vmem:[%s259 + $0x1c] sm:$0xf] %v885
      %950 = vst [vmem:[%s259 + $0x20] sm:$0xf] %v886
      %951 = vst [vmem:[%s259 + $0x24] sm:$0xf] %v887
      %952 = vst [vmem:[%s259 + $0x28] sm:$0xf] %v888
      %953 = vst [vmem:[%s259 + $0x2c] sm:$0xf] %v889
      %954 = vst [vmem:[%s259 + $0x30] sm:$0xf] %v890
      %955 = vst [vmem:[%s259 + $0x34] sm:$0xf] %v891
      %956 = vst [vmem:[%s259 + $0x38] sm:$0xf] %v892
      %957 = vst [vmem:[%s259 + $0x3c] sm:$0xf] %v893
      %958 = vst [vmem:[%s259 + $0x40] sm:$0xf] %v894
      %959 = vst [vmem:[%s259 + $0x44] sm:$0xf] %v895
      %960 = vst [vmem:[%s259 + $0x48] sm:$0xf] %v896
      %961 = vst [vmem:[%s259 + $0x4c] sm:$0xf] %v897
      %962 = vst [vmem:[%s259 + $0x50] sm:$0xf] %v898
      %963 = vst [vmem:[%s259 + $0x54] sm:$0xf] %v899
      %964 = vst [vmem:[%s259 + $0x58] sm:$0xf] %v900
      %965 = vst [vmem:[%s259 + $0x5c] sm:$0xf] %v901
      %966 = vst [vmem:[%s259 + $0x60] sm:$0xf] %v902
      %967 = vst [vmem:[%s259 + $0x64] sm:$0xf] %v903
      %968 = vst [vmem:[%s259 + $0x68] sm:$0xf] %v904
      %969 = vst [vmem:[%s259 + $0x6c] sm:$0xf] %v905
      %970 = vst [vmem:[%s259 + $0x70] sm:$0xf] %v906
      %971 = vst [vmem:[%s259 + $0x74] sm:$0xf] %v907
      %972 = vst [vmem:[%s259 + $0x78] sm:$0xf] %v908
      %973 = vst [vmem:[%s259 + $0x7c] sm:$0xf] %v909
      %s974 = smul.u32 16, %s21
      %p975 = scmp.lt.s32.totalorder %s20, 1
      %s976 = scalar_select %p975, %s20, 1
      %p977 = scmp.lt.s32.totalorder %s974, 15
      %s978 = scalar_select %p977, %s974, 15
      %s979 = smul.addr %s978, 2
      %s980 = smul.addr %s976, 32
      %s981 = sadd.s32 %s979, %s980
      %s982 = smul.addr %s981, 4
      %s983 = scalar_lea.vmem %s3, %s982
      %p984 = scmp.lt.s32.totalorder %s20, 1
      %s985 = scalar_select %p984, %s20, 1
      %p986 = scmp.lt.s32.totalorder %s21, 0
      %s987 = scalar_select %p986, %s21, 0
      %s988 = smul.addr %s985, 32
      %s989 = sadd.s32 %s987, %s988
      %s990 = smul.addr %s989, 4
      %s991 = scalar_lea.vmem %s4, %s990
      // Predicated region
      $region33: #{forward.2} parent=31 // pred_check
        %p992 = pneg %p118
      $region34: #{forward.2} parent=31 // pred_check_branch
        %994 = sbr.rel (%p992) target = $region36
      $region35: #{forward.2} parent=31 // pred_region
        %s995 = smul.u32 16, %s21
      $region36: #{forward.2} parent=31 // pred_fallthru
        _
      // Predicated region
      $region37: #{forward.2} parent=31 // pred_check
        %p996 = pneg %p146
      $region38: #{forward.2} parent=31 // pred_check_branch
        %998 = sbr.rel (%p996) target = $region40
      $region39: #{forward.2} parent=31 // pred_region
        _
      $region40: #{forward.2} parent=31 // pred_fallthru
        _
    $region32: #{forward.2} parent=5 // pred_fallthru
      _
    %p999 = scmp.le.s32.totalorder 2, %s11
    // Predicated region
    $region41: #{forward.2} parent=5 // pred_check
      %p1000 = pneg %p999
    $region42: #{forward.2} parent=5 // pred_check_branch
      %1002 = sbr.rel (%p1000) target = $region44
    $region43: #{forward.2} parent=5 // pred_region
      %s1003 = ssub.s32 %s11, 2
      // Predicated region
      $region45: #{forward.2} parent=43 // pred_check
        %p1004 = pneg %p124
      $region46: #{forward.2} parent=43 // pred_check_branch
        %1006 = sbr.rel (%p1004) target = $region48
      $region47: #{forward.2} parent=43 // pred_region
        %s1007 = smul.u32 16, %s23
        %p1008 = scmp.lt.s32.totalorder %s22, 1
        %s1009 = scalar_select %p1008, %s22, 1
        %p1010 = scmp.lt.s32.totalorder %s1007, 15
        %s1011 = scalar_select %p1010, %s1007, 15
        %s1012 = smul.addr %s1011, 2
        %s1013 = smul.addr %s1009, 32
        %s1014 = sadd.s32 %s1012, %s1013
        %s1015 = smul.addr %s1014, 4
        %s1016 = scalar_lea.vmem %s3, %s1015
      $region48: #{forward.2} parent=43 // pred_fallthru
        _
      // Predicated region
      $region49: #{forward.2} parent=43 // pred_check
        %p1017 = pneg %p152
      $region50: #{forward.2} parent=43 // pred_check_branch
        %1019 = sbr.rel (%p1017) target = $region52
      $region51: #{forward.2} parent=43 // pred_region
        %p1020 = scmp.lt.s32.totalorder %s22, 1
        %s1021 = scalar_select %p1020, %s22, 1
        %p1022 = scmp.lt.s32.totalorder %s23, 0
        %s1023 = scalar_select %p1022, %s23, 0
        %s1024 = smul.addr %s1021, 32
        %s1025 = sadd.s32 %s1023, %s1024
        %s1026 = smul.addr %s1025, 4
        %s1027 = scalar_lea.vmem %s4, %s1026
      $region52: #{forward.2} parent=43 // pred_fallthru
        _
    $region44: #{forward.2} parent=5 // pred_fallthru
      _
  $region6: #{forward.2} parent=0 // loop_footer
    %s15 = sadd.s32 1, %s11
  $region7: #{forward.2} parent=0 // loop_footer_branch
    %10 = sbr.rel target = $region3
  $region8: #{forward.2} parent=0 // loop_exit
    _

// kernel: forward.3
$region0: #{forward.3}
  #allocation0 [shape = 'u32[]', space=smem, size = 0x4, offset = 0x4, fixed_abs, tag = 'smem constant byte address 0x4 - core index']
  #allocation1 [shape = 'u32[144,128]{1,0:T(1,128)}', space=vmem, size = 0x12000, scoped, tag = 'internal scratch']
  #allocation2 [shape = 'f32[128,128]{1,0:T(8,128)}', space=vmem, size = 0x10000, scoped, tag = 'scratch operand']
  #allocation3 [shape = 'f32[128,128]{1,0:T(8,128)}', space=vmem, size = 0x10000, scoped, tag = 'scratch operand']
  #allocation4 [shape = 's32[2]{0}', space=sflag, size = 0x8, scoped, tag = 'scratch operand']
  #allocation5 [shape = 's32[1]{0}', space=sflag, size = 0x4, scoped, tag = 'scoped memory for forward.3']
  #allocation6 [shape = 'u8[512]{0}', space=smem, size = 0x200, scoped, tag = 'prefetched SMEM operand 0']
  #allocation7 [shape = 'u8[512]{0}', space=smem, size = 0x200, scoped, tag = 'prefetched SMEM operand 1']
  #allocation8 [shape = 'u8[512]{0}', space=smem, size = 0x200, scoped, tag = 'prefetched SMEM operand 2']
  #allocation9 [shape = 'f32[1]{0:T(128)S(6)}', space=smem, size = 0x200, scoped, tag = 'scoped memory for forward.3']
  #allocation10 [shape = 's32[]', space=sflag, size = 0x4, offset = 0, fixed_abs, tag = 'sflag constant byte address 0x0 - dummy sync flag']
  #allocation11 [shape = 's32[]', space=sflag, size = 0x4, offset = 0, fixed_abs, tag = 'sflag constant byte address 0x0 - dummy sync flag']
  %s0 = inlined_call_operand.vmem [shape: s32[2], index: 0, kind: input, shape index: {}]
  %s1 = inlined_call_operand.vmem [shape: s32[2], index: 1, kind: input, shape index: {}, may-alias: {1,2}]
  %s2 = inlined_call_operand.vmem [shape: s32[2], index: 2, kind: input, shape index: {}, may-alias: {1,2}]
  %s3 = inlined_call_operand.vmem [shape: bf16[2,128,256], index: 3, kind: input, shape index: {}]
  %s4 = inlined_call_operand.vmem [shape: bf16[2,256,128], index: 4, kind: input, shape index: {}]
  %s5 = inlined_call_operand.vmem [shape: f32[256,1], index: 5, kind: input, shape index: {}]
  %s6 = inlined_call_operand.<no memory space> [shape: f32[1], index: 6, kind: input, shape index: {}]
  %s7 = inlined_call_operand.vmem [shape: f32[2,128,128], index: 7, kind: output, shape index: {}]
  %s8 = sld [smem:[#allocation0]]
  $region124: #{forward.3} parent=0
    _
  %s10 = ssub.s32 1, %s8
  %s11 = scalar_select 0, %s10, %s8
  %s12 = sshll.u32 %s0, 4
  %s13 = int_to_ptr.vmem [resolvable:$true] %s12
  %15 = dma.vmem_to_smem %s13, 16, [#allocation6], [#allocation5]
  %s16 = sshll.u32 %s1, 4
  %s17 = int_to_ptr.vmem [resolvable:$true] %s16
  %19 = dma.vmem_to_smem %s17, 16, [#allocation7], [#allocation5]
  %s20 = sshll.u32 %s2, 4
  %s21 = int_to_ptr.vmem [resolvable:$true] %s20
  %23 = dma.vmem_to_smem %s21, 16, [#allocation8], [#allocation5]
  %24 = sst [smem:[#allocation9]] %s6
  %25 = dma.done [#allocation5], 48
  %26 = sfence
  loop: start=0, step=1, limit=3
  $region2: #{forward.3} parent=0 // loop_pre_header
    _
  $region3: #{forward.3} parent=0 // loop_header
    %s28 = sphi 0, %s32
    %p29 = scmp.ge.s32.totalorder %s28, 3
    %s43 = sphi 0, %s45
    %s46 = sphi 0, %s43
    %s56 = sphi 0, %s46
    %s68 = sphi 0, %s70
    %s71 = sphi 0, %s68
    %s81 = sphi 0, %s71
    %s85 = sphi 0, %s85
    %s87 = sphi 0, %s85
    %s95 = sphi 0, %s87
    %s99 = sphi 0, %s99
    %s101 = sphi 0, %s99
    %s109 = sphi 0, %s101
  $region4: #{forward.3} parent=0 // loop_header_branch
    %31 = sbr.rel (%p29) target = $region8
  $region5: #{forward.3} parent=0 // loop_body
    %s33 = ssub.s32 %s28, 1
    %s34 = sadd.s32 %s28, 1
    %s35 = sld [smem:[#allocation6 + %s28]]
    %s36 = sld [smem:[#allocation7 + %s28]]
    %s37 = sld [smem:[#allocation6 + %s34]]
    %s38 = sld [smem:[#allocation7 + %s34]]
    %s39 = ssub.s32 %s35, %s37
    %s40 = ssub.s32 %s36, %s38
    %s41 = sor.u32 %s39, %s40
    %p42 = scmp.eq.s32.totalorder %s41, 0
    %s44 = sadd.s32 %s43, 1
    %s45 = scalar_select %p42, %s43, %s44
    %p47 = pneg %p42
    %p48 = scmp.eq.s32.totalorder %s28, 1
    %p49 = por %p47, %p48
    %p50 = scmp.ne.s32.totalorder %s43, %s46
    %p51 = scmp.eq.s32.totalorder %s28, 0
    %p52 = por %p50, %p51
    %p53 = scmp.ne.s32.totalorder %s43, %s46
    %p54 = scmp.eq.s32.totalorder %s33, 1
    %p55 = por %p53, %p54
    %p57 = scmp.ne.s32.totalorder %s46, %s56
    %p58 = scmp.eq.s32.totalorder %s33, 0
    %p59 = por %p57, %p58
    %s60 = sld [smem:[#allocation6 + %s28]]
    %s61 = sld [smem:[#allocation8 + %s28]]
    %s62 = sld [smem:[#allocation6 + %s34]]
    %s63 = sld [smem:[#allocation8 + %s34]]
    %s64 = ssub.s32 %s60, %s62
    %s65 = ssub.s32 %s61, %s63
    %s66 = sor.u32 %s64, %s65
    %p67 = scmp.eq.s32.totalorder %s66, 0
    %s69 = sadd.s32 %s68, 1
    %s70 = scalar_select %p67, %s68, %s69
    %p72 = pneg %p67
    %p73 = scmp.eq.s32.totalorder %s28, 1
    %p74 = por %p72, %p73
    %p75 = scmp.ne.s32.totalorder %s68, %s71
    %p76 = scmp.eq.s32.totalorder %s28, 0
    %p77 = por %p75, %p76
    %p78 = scmp.ne.s32.totalorder %s68, %s71
    %p79 = scmp.eq.s32.totalorder %s33, 1
    %p80 = por %p78, %p79
    %p82 = scmp.ne.s32.totalorder %s71, %s81
    %p83 = scmp.eq.s32.totalorder %s33, 0
    %p84 = por %p82, %p83
    %s86 = sadd.s32 %s85, 1
    %p88 = scmp.eq.s32.totalorder %s28, 1
    %p89 = scmp.ne.s32.totalorder %s85, %s87
    %p90 = scmp.eq.s32.totalorder %s28, 0
    %p91 = por %p89, %p90
    %p92 = scmp.ne.s32.totalorder %s85, %s87
    %p93 = scmp.eq.s32.totalorder %s33, 1
    %p94 = por %p92, %p93
    %p96 = scmp.ne.s32.totalorder %s87, %s95
    %p97 = scmp.eq.s32.totalorder %s33, 0
    %p98 = por %p96, %p97
    %s100 = sadd.s32 %s99, 1
    %p102 = scmp.eq.s32.totalorder %s28, 1
    %p103 = scmp.ne.s32.totalorder %s99, %s101
    %p104 = scmp.eq.s32.totalorder %s28, 0
    %p105 = por %p103, %p104
    %p106 = scmp.ne.s32.totalorder %s99, %s101
    %p107 = scmp.eq.s32.totalorder %s33, 1
    %p108 = por %p106, %p107
    %p110 = scmp.ne.s32.totalorder %s101, %s109
    %p111 = scmp.eq.s32.totalorder %s33, 0
    %p112 = por %p110, %p111
    %p113 = scmp.le.s32.totalorder 1, %s28
    // Predicated region
    $region9: #{forward.3} parent=5 // pred_check
      %p114 = pneg %p113
    $region10: #{forward.3} parent=5 // pred_check_branch
      %116 = sbr.rel (%p114) target = $region12
    $region11: #{forward.3} parent=5 // pred_region
      %s117 = ssub.s32 %s28, 1
      // Predicated region
      $region13: #{forward.3} parent=11 // pred_check
        %p118 = pneg %p98
      $region14: #{forward.3} parent=11 // pred_check_branch
        %120 = sbr.rel (%p118) target = $region16
      $region15: #{forward.3} parent=11 // pred_region
        _
      $region16: #{forward.3} parent=11 // pred_fallthru
        _
      // Predicated region
      $region17: #{forward.3} parent=11 // pred_check
        %p121 = pneg %p112
      $region18: #{forward.3} parent=11 // pred_check_branch
        %123 = sbr.rel (%p121) target = $region20
      $region19: #{forward.3} parent=11 // pred_region
        _
      $region20: #{forward.3} parent=11 // pred_fallthru
        _
    $region12: #{forward.3} parent=5 // pred_fallthru
      _
    %p124 = scmp.lt.s32.totalorder %s28, 2
    // Predicated region
    $region21: #{forward.3} parent=5 // pred_check
      %p125 = pneg %p124
    $region22: #{forward.3} parent=5 // pred_check_branch
      %127 = sbr.rel (%p125) target = $region24
    $region23: #{forward.3} parent=5 // pred_region
      // Predicated region
      $region25: #{forward.3} parent=23 // pred_check
        %p128 = pneg %p52
      $region26: #{forward.3} parent=23 // pred_check_branch
        %130 = sbr.rel (%p128) target = $region28
      $region27: #{forward.3} parent=23 // pred_region
        %s131 = sld [smem:[#allocation6 + %s28]]
        %s132 = sld [smem:[#allocation7 + %s28]]
        %s133 = smul.u32 16, %s132
        %p134 = scmp.lt.s32.totalorder %s131, 1
        %s135 = scalar_select %p134, %s131, 1
        %p136 = scmp.lt.s32.totalorder %s133, 15
        %s137 = scalar_select %p136, %s133, 15
        %s138 = smul.addr %s137, 2
        %s139 = smul.addr %s135, 32
        %s140 = sadd.s32 %s138, %s139
        %s141 = smul.addr %s140, 4
        %s142 = scalar_lea.vmem %s3, %s141
        %s143 = sld [smem:[#allocation6 + %s28]]
        %s144 = sld [smem:[#allocation7 + %s28]]
        %s145 = smul.u32 16, %s144
      $region28: #{forward.3} parent=23 // pred_fallthru
        _
      // Predicated region
      $region29: #{forward.3} parent=23 // pred_check
        %p146 = pneg %p77
      $region30: #{forward.3} parent=23 // pred_check_branch
        %148 = sbr.rel (%p146) target = $region32
      $region31: #{forward.3} parent=23 // pred_region
        %s149 = sld [smem:[#allocation6 + %s28]]
        %s150 = sld [smem:[#allocation8 + %s28]]
        %p151 = scmp.lt.s32.totalorder %s149, 1
        %s152 = scalar_select %p151, %s149, 1
        %p153 = scmp.lt.s32.totalorder %s150, 0
        %s154 = scalar_select %p153, %s150, 0
        %s155 = smul.addr %s152, 32
        %s156 = sadd.s32 %s154, %s155
        %s157 = smul.addr %s156, 4
        %s158 = scalar_lea.vmem %s4, %s157
        %s159 = sld [smem:[#allocation6 + %s28]]
        %s160 = sld [smem:[#allocation8 + %s28]]
      $region32: #{forward.3} parent=23 // pred_fallthru
        _
    $region24: #{forward.3} parent=5 // pred_fallthru
      _
    %p161 = scmp.le.s32.totalorder 1, %s28
    // Predicated region
    $region33: #{forward.3} parent=5 // pred_check
      %p162 = pneg %p161
    $region34: #{forward.3} parent=5 // pred_check_branch
      %164 = sbr.rel (%p162) target = $region36
    $region35: #{forward.3} parent=5 // pred_region
      %s165 = ssub.s32 %s28, 1
      %s166 = sld [smem:[#allocation6 + %s33]]
      %s167 = sld [smem:[#allocation7 + %s33]]
      %s168 = smul.u32 16, %s167
      %p169 = scmp.lt.s32.totalorder %s166, 1
      %s170 = scalar_select %p169, %s166, 1
      %p171 = scmp.lt.s32.totalorder %s168, 15
      %s172 = scalar_select %p171, %s168, 15
      %s173 = smul.addr %s172, 2
      %s174 = smul.addr %s170, 32
      %s175 = sadd.s32 %s173, %s174
      %s176 = smul.addr %s175, 4
      %s177 = scalar_lea.vmem %s3, %s176
      %p178 = pneg %p59
      %p179 = pneg %p55
      %s180 = sld [smem:[#allocation6 + %s33]]
      %s181 = sld [smem:[#allocation8 + %s33]]
      %p182 = scmp.lt.s32.totalorder %s180, 1
      %s183 = scalar_select %p182, %s180, 1
      %p184 = scmp.lt.s32.totalorder %s181, 0
      %s185 = scalar_select %p184, %s181, 0
      %s186 = smul.addr %s183, 32
      %s187 = sadd.s32 %s185, %s186
      %s188 = smul.addr %s187, 4
      %s189 = scalar_lea.vmem %s4, %s188
      %p190 = pneg %p84
      %p191 = pneg %p80
      %p192 = pneg %p98
      %p193 = pneg %p94
      %p194 = pneg %p112
      %p195 = pneg %p108
      %s196 = sld [smem:[#allocation6 + %s33]]
      %s197 = sld [smem:[#allocation7 + %s33]]
      %s198 = smul.u32 16, %s197
      %p199 = scmp.lt.s32.totalorder %s196, 1
      %s200 = scalar_select %p199, %s196, 1
      %p201 = scmp.lt.s32.totalorder %s198, 15
      %s202 = scalar_select %p201, %s198, 15
      %s203 = smul.addr %s202, 2
      %s204 = smul.addr %s200, 32
      %s205 = sadd.s32 %s203, %s204
      %s206 = smul.addr %s205, 4
      %s207 = scalar_lea.vmem %s3, %s206
      %s208 = sld [smem:[#allocation6 + %s33]]
      %s209 = sld [smem:[#allocation7 + %s33]]
      %s210 = smul.u32 16, %s209
      %s211 = sld [smem:[#allocation6 + %s33]]
      %s212 = sld [smem:[#allocation8 + %s33]]
      %p213 = scmp.lt.s32.totalorder %s211, 1
      %s214 = scalar_select %p213, %s211, 1
      %p215 = scmp.lt.s32.totalorder %s212, 0
      %s216 = scalar_select %p215, %s212, 0
      %s217 = smul.addr %s214, 32
      %s218 = sadd.s32 %s216, %s217
      %s219 = smul.addr %s218, 4
      %s220 = scalar_lea.vmem %s4, %s219
      %s221 = sld [smem:[#allocation6 + %s33]]
      %s222 = sld [smem:[#allocation8 + %s33]]
      %s223 = sld [smem:[#allocation6 + %s33]]
      %s224 = sld [smem:[#allocation7 + %s33]]
      %s225 = sld [smem:[#allocation8 + %s33]]
      loop: start=0, step=1, limit=16
      $region37: #{forward.3} parent=35 // loop_pre_header
        _
      $region38: #{forward.3} parent=35 // loop_header
        %s227 = sphi 0, %s231
        %p228 = scmp.ge.s32.totalorder %s227, 16
      $region39: #{forward.3} parent=35 // loop_header_branch
        %230 = sbr.rel (%p228) target = $region43
      $region40: #{forward.3} parent=35 // loop_body
        %s232 = smul.u32 %s227, 8
        %v233 = vld [vmem:[%s5] sm:$0xff]
        %v234 = vld [vmem:[%s5 + $0x8] sm:$0xff]
        %v235 = vld [vmem:[%s5 + $0x10] sm:$0xff]
        %v236 = vld [vmem:[%s5 + $0x18] sm:$0xff]
        %v237 = vld [vmem:[%s5 + $0x20] sm:$0xff]
        %v238 = vld [vmem:[%s5 + $0x28] sm:$0xff]
        %v239 = vld [vmem:[%s5 + $0x30] sm:$0xff]
        %v240 = vld [vmem:[%s5 + $0x38] sm:$0xff]
        %v241 = vld [vmem:[%s5 + $0x40] sm:$0xff]
        %v242 = vld [vmem:[%s5 + $0x48] sm:$0xff]
        %v243 = vld [vmem:[%s5 + $0x50] sm:$0xff]
        %v244 = vld [vmem:[%s5 + $0x58] sm:$0xff]
        %v245 = vld [vmem:[%s5 + $0x60] sm:$0xff]
        %v246 = vld [vmem:[%s5 + $0x68] sm:$0xff]
        %v247 = vld [vmem:[%s5 + $0x70] sm:$0xff]
        %v248 = vld [vmem:[%s5 + $0x78] sm:$0xff]
        %v249 = vld [vmem:[%s5 + $0x80] sm:$0xff]
        %v250 = vld [vmem:[%s5 + $0x88] sm:$0xff]
        %v251 = vld [vmem:[%s5 + $0x90] sm:$0xff]
        %v252 = vld [vmem:[%s5 + $0x98] sm:$0xff]
        %v253 = vld [vmem:[%s5 + $0xa0] sm:$0xff]
        %v254 = vld [vmem:[%s5 + $0xa8] sm:$0xff]
        %v255 = vld [vmem:[%s5 + $0xb0] sm:$0xff]
        %v256 = vld [vmem:[%s5 + $0xb8] sm:$0xff]
        %v257 = vld [vmem:[%s5 + $0xc0] sm:$0xff]
        %v258 = vld [vmem:[%s5 + $0xc8] sm:$0xff]
        %v259 = vld [vmem:[%s5 + $0xd0] sm:$0xff]
        %v260 = vld [vmem:[%s5 + $0xd8] sm:$0xff]
        %v261 = vld [vmem:[%s5 + $0xe0] sm:$0xff]
        %v262 = vld [vmem:[%s5 + $0xe8] sm:$0xff]
        %v263 = vld [vmem:[%s5 + $0xf0] sm:$0xff]
        %v264 = vld [vmem:[%s5 + $0xf8] sm:$0xff]
        %s265 = sld [smem:[#allocation9]]
        %v266 = vld [vmem:[%s220] sm:$0xf]
        %v267 = vld [vmem:[%s220 + $0x4] sm:$0xf]
        %v268 = vld [vmem:[%s220 + $0x8] sm:$0xf]
        %v269 = vld [vmem:[%s220 + $0xc] sm:$0xf]
        %v270 = vld [vmem:[%s220 + $0x10] sm:$0xf]
        %v271 = vld [vmem:[%s220 + $0x14] sm:$0xf]
        %v272 = vld [vmem:[%s220 + $0x18] sm:$0xf]
        %v273 = vld [vmem:[%s220 + $0x1c] sm:$0xf]
        %v274 = vld [vmem:[%s220 + $0x20] sm:$0xf]
        %v275 = vld [vmem:[%s220 + $0x24] sm:$0xf]
        %v276 = vld [vmem:[%s220 + $0x28] sm:$0xf]
        %v277 = vld [vmem:[%s220 + $0x2c] sm:$0xf]
        %v278 = vld [vmem:[%s220 + $0x30] sm:$0xf]
        %v279 = vld [vmem:[%s220 + $0x34] sm:$0xf]
        %v280 = vld [vmem:[%s220 + $0x38] sm:$0xf]
        %v281 = vld [vmem:[%s220 + $0x3c] sm:$0xf]
        %v282 = vld [vmem:[%s220 + $0x40] sm:$0xf]
        %v283 = vld [vmem:[%s220 + $0x44] sm:$0xf]
        %v284 = vld [vmem:[%s220 + $0x48] sm:$0xf]
        %v285 = vld [vmem:[%s220 + $0x4c] sm:$0xf]
        %v286 = vld [vmem:[%s220 + $0x50] sm:$0xf]
        %v287 = vld [vmem:[%s220 + $0x54] sm:$0xf]
        %v288 = vld [vmem:[%s220 + $0x58] sm:$0xf]
        %v289 = vld [vmem:[%s220 + $0x5c] sm:$0xf]
        %v290 = vld [vmem:[%s220 + $0x60] sm:$0xf]
        %v291 = vld [vmem:[%s220 + $0x64] sm:$0xf]
        %v292 = vld [vmem:[%s220 + $0x68] sm:$0xf]
        %v293 = vld [vmem:[%s220 + $0x6c] sm:$0xf]
        %v294 = vld [vmem:[%s220 + $0x70] sm:$0xf]
        %v295 = vld [vmem:[%s220 + $0x74] sm:$0xf]
        %v296 = vld [vmem:[%s220 + $0x78] sm:$0xf]
        %v297 = vld [vmem:[%s220 + $0x7c] sm:$0xf]
        %v298 = vunpack.c.l.bf16 %v266
        %v299 = vunpack.c.l.bf16 %v267
        %v300 = vunpack.c.l.bf16 %v268
        %v301 = vunpack.c.l.bf16 %v269
        %v302 = vunpack.c.l.bf16 %v270
        %v303 = vunpack.c.l.bf16 %v271
        %v304 = vunpack.c.l.bf16 %v272
        %v305 = vunpack.c.l.bf16 %v273
        %v306 = vunpack.c.l.bf16 %v274
        %v307 = vunpack.c.l.bf16 %v275
        %v308 = vunpack.c.l.bf16 %v276
        %v309 = vunpack.c.l.bf16 %v277
        %v310 = vunpack.c.l.bf16 %v278
        %v311 = vunpack.c.l.bf16 %v279
        %v312 = vunpack.c.l.bf16 %v280
        %v313 = vunpack.c.l.bf16 %v281
        %v314 = vunpack.c.l.bf16 %v282
        %v315 = vunpack.c.l.bf16 %v283
        %v316 = vunpack.c.l.bf16 %v284
        %v317 = vunpack.c.l.bf16 %v285
        %v318 = vunpack.c.l.bf16 %v286
        %v319 = vunpack.c.l.bf16 %v287
        %v320 = vunpack.c.l.bf16 %v288
        %v321 = vunpack.c.l.bf16 %v289
        %v322 = vunpack.c.l.bf16 %v290
        %v323 = vunpack.c.l.bf16 %v291
        %v324 = vunpack.c.l.bf16 %v292
        %v325 = vunpack.c.l.bf16 %v293
        %v326 = vunpack.c.l.bf16 %v294
        %v327 = vunpack.c.l.bf16 %v295
        %v328 = vunpack.c.l.bf16 %v296
        %v329 = vunpack.c.l.bf16 %v297
        %s330 = sshra.s32 %s232, 3
        %s331 = sand.u32 %s232, 7
        %s332 = smul.u32 %s330, 2
        %s333 = smul.addr %s332, 4
        %s334 = scalar_lea.vmem %s207, %s333
        %v335 = vld [vmem:[%s334] sm:$0xff]
        %v336 = vunpack.c.l.bf16 %v335
        %v337 = vunpack.c.h.bf16 %v335
        %338 = vxpose.xlu0.b32.start [1/16] %v336, 128
        %339 = vxpose.xlu0.b32.cont [2/16] 0.0, 128
        %340 = vxpose.xlu0.b32.cont [3/16] 0.0, 128
        %341 = vxpose.xlu0.b32.cont [4/16] 0.0, 128
        %342 = vxpose.xlu0.b32.cont [5/16] 0.0, 128
        %343 = vxpose.xlu0.b32.cont [6/16] 0.0, 128
        %344 = vxpose.xlu0.b32.cont [7/16] 0.0, 128
        %345 = vxpose.xlu0.b32.cont [8/16] 0.0, 128
        %346 = vxpose.xlu0.b32.cont [9/16] 0.0, 128
        %347 = vxpose.xlu0.b32.cont [10/16] 0.0, 128
        %348 = vxpose.xlu0.b32.cont [11/16] 0.0, 128
        %349 = vxpose.xlu0.b32.cont [12/16] 0.0, 128
        %350 = vxpose.xlu0.b32.cont [13/16] 0.0, 128
        %351 = vxpose.xlu0.b32.cont [14/16] 0.0, 128
        %352 = vxpose.xlu0.b32.cont [15/16] 0.0, 128
        %353 = vxpose.xlu0.b32.end [16/16] 0.0, 128
        %v354 = vpop.trf.xlu0
        %v355 = vpop.trf.xlu0
        %v356 = vpop.trf.xlu0
        %v357 = vpop.trf.xlu0
        %v358 = vpop.trf.xlu0
        %v359 = vpop.trf.xlu0
        %v360 = vpop.trf.xlu0
        %v361 = vpop.trf.xlu0
        %v362 = vpop.trf.xlu0
        %v363 = vpop.trf.xlu0
        %v364 = vpop.trf.xlu0
        %v365 = vpop.trf.xlu0
        %v366 = vpop.trf.xlu0
        %v367 = vpop.trf.xlu0
        %v368 = vpop.trf.xlu0
        %v369 = vpop.trf.xlu0
        %370 = vxpose.xlu0.b32.start [1/16] %v337, 128
        %371 = vxpose.xlu0.b32.cont [2/16] 0.0, 128
        %372 = vxpose.xlu0.b32.cont [3/16] 0.0, 128
        %373 = vxpose.xlu0.b32.cont [4/16] 0.0, 128
        %374 = vxpose.xlu0.b32.cont [5/16] 0.0, 128
        %375 = vxpose.xlu0.b32.cont [6/16] 0.0, 128
        %376 = vxpose.xlu0.b32.cont [7/16] 0.0, 128
        %377 = vxpose.xlu0.b32.cont [8/16] 0.0, 128
        %378 = vxpose.xlu0.b32.cont [9/16] 0.0, 128
        %379 = vxpose.xlu0.b32.cont [10/16] 0.0, 128
        %380 = vxpose.xlu0.b32.cont [11/16] 0.0, 128
        %381 = vxpose.xlu0.b32.cont [12/16] 0.0, 128
        %382 = vxpose.xlu0.b32.cont [13/16] 0.0, 128
        %383 = vxpose.xlu0.b32.cont [14/16] 0.0, 128
        %384 = vxpose.xlu0.b32.cont [15/16] 0.0, 128
        %385 = vxpose.xlu0.b32.end [16/16] 0.0, 128
        %v386 = vpop.trf.xlu0
        %v387 = vpop.trf.xlu0
        %v388 = vpop.trf.xlu0
        %v389 = vpop.trf.xlu0
        %v390 = vpop.trf.xlu0
        %v391 = vpop.trf.xlu0
        %v392 = vpop.trf.xlu0
        %v393 = vpop.trf.xlu0
        %v394 = vpop.trf.xlu0
        %v395 = vpop.trf.xlu0
        %v396 = vpop.trf.xlu0
        %v397 = vpop.trf.xlu0
        %v398 = vpop.trf.xlu0
        %v399 = vpop.trf.xlu0
        %v400 = vpop.trf.xlu0
        %v401 = vpop.trf.xlu0
        %403 = vset.pattern.permute.xlu0 0
        %404 = vperm.xlu0 %403, %v354
        %v405 = vpop.permute.xlu0 %404
        %408 = vset.pattern.permute.xlu0 0
        %409 = vperm.xlu0 %408, %v355
        %v410 = vpop.permute.xlu0 %409
        %413 = vset.pattern.permute.xlu0 0
        %414 = vperm.xlu0 %413, %v356
        %v415 = vpop.permute.xlu0 %414
        %418 = vset.pattern.permute.xlu0 0
        %419 = vperm.xlu0 %418, %v357
        %v420 = vpop.permute.xlu0 %419
        %423 = vset.pattern.permute.xlu0 0
        %424 = vperm.xlu0 %423, %v358
        %v425 = vpop.permute.xlu0 %424
        %428 = vset.pattern.permute.xlu0 0
        %429 = vperm.xlu0 %428, %v359
        %v430 = vpop.permute.xlu0 %429
        %433 = vset.pattern.permute.xlu0 0
        %434 = vperm.xlu0 %433, %v360
        %v435 = vpop.permute.xlu0 %434
        %438 = vset.pattern.permute.xlu0 0
        %439 = vperm.xlu0 %438, %v361
        %v440 = vpop.permute.xlu0 %439
        %443 = vset.pattern.permute.xlu0 0
        %444 = vperm.xlu0 %443, %v362
        %v445 = vpop.permute.xlu0 %444
        %448 = vset.pattern.permute.xlu0 0
        %449 = vperm.xlu0 %448, %v363
        %v450 = vpop.permute.xlu0 %449
        %453 = vset.pattern.permute.xlu0 0
        %454 = vperm.xlu0 %453, %v364
        %v455 = vpop.permute.xlu0 %454
        %458 = vset.pattern.permute.xlu0 0
        %459 = vperm.xlu0 %458, %v365
        %v460 = vpop.permute.xlu0 %459
        %463 = vset.pattern.permute.xlu0 0
        %464 = vperm.xlu0 %463, %v366
        %v465 = vpop.permute.xlu0 %464
        %468 = vset.pattern.permute.xlu0 0
        %469 = vperm.xlu0 %468, %v367
        %v470 = vpop.permute.xlu0 %469
        %473 = vset.pattern.permute.xlu0 0
        %474 = vperm.xlu0 %473, %v368
        %v475 = vpop.permute.xlu0 %474
        %478 = vset.pattern.permute.xlu0 0
        %479 = vperm.xlu0 %478, %v369
        %v480 = vpop.permute.xlu0 %479
        %483 = vset.pattern.permute.xlu0 0
        %484 = vperm.xlu0 %483, %v386
        %v485 = vpop.permute.xlu0 %484
        %488 = vset.pattern.permute.xlu0 0
        %489 = vperm.xlu0 %488, %v387
        %v490 = vpop.permute.xlu0 %489
        %493 = vset.pattern.permute.xlu0 0
        %494 = vperm.xlu0 %493, %v388
        %v495 = vpop.permute.xlu0 %494
        %498 = vset.pattern.permute.xlu0 0
        %499 = vperm.xlu0 %498, %v389
        %v500 = vpop.permute.xlu0 %499
        %503 = vset.pattern.permute.xlu0 0
        %504 = vperm.xlu0 %503, %v390
        %v505 = vpop.permute.xlu0 %504
        %508 = vset.pattern.permute.xlu0 0
        %509 = vperm.xlu0 %508, %v391
        %v510 = vpop.permute.xlu0 %509
        %513 = vset.pattern.permute.xlu0 0
        %514 = vperm.xlu0 %513, %v392
        %v515 = vpop.permute.xlu0 %514
        %518 = vset.pattern.permute.xlu0 0
        %519 = vperm.xlu0 %518, %v393
        %v520 = vpop.permute.xlu0 %519
        %523 = vset.pattern.permute.xlu0 0
        %524 = vperm.xlu0 %523, %v394
        %v525 = vpop.permute.xlu0 %524
        %528 = vset.pattern.permute.xlu0 0
        %529 = vperm.xlu0 %528, %v395
        %v530 = vpop.permute.xlu0 %529
        %533 = vset.pattern.permute.xlu0 0
        %534 = vperm.xlu0 %533, %v396
        %v535 = vpop.permute.xlu0 %534
        %538 = vset.pattern.permute.xlu0 0
        %539 = vperm.xlu0 %538, %v397
        %v540 = vpop.permute.xlu0 %539
        %543 = vset.pattern.permute.xlu0 0
        %544 = vperm.xlu0 %543, %v398
        %v545 = vpop.permute.xlu0 %544
        %548 = vset.pattern.permute.xlu0 0
        %549 = vperm.xlu0 %548, %v399
        %v550 = vpop.permute.xlu0 %549
        %553 = vset.pattern.permute.xlu0 0
        %554 = vperm.xlu0 %553, %v400
        %v555 = vpop.permute.xlu0 %554
        %558 = vset.pattern.permute.xlu0 0
        %559 = vperm.xlu0 %558, %v401
        %v560 = vpop.permute.xlu0 %559
        %v562 = vadd.f32 %v405, %v298
        %v563 = vadd.f32 %v410, %v299
        %v564 = vadd.f32 %v415, %v300
        %v565 = vadd.f32 %v420, %v301
        %v566 = vadd.f32 %v425, %v302
        %v567 = vadd.f32 %v430, %v303
        %v568 = vadd.f32 %v435, %v304
        %v569 = vadd.f32 %v440, %v305
        %v570 = vadd.f32 %v445, %v306
        %v571 = vadd.f32 %v450, %v307
        %v572 = vadd.f32 %v455, %v308
        %v573 = vadd.f32 %v460, %v309
        %v574 = vadd.f32 %v465, %v310
        %v575 = vadd.f32 %v470, %v311
        %v576 = vadd.f32 %v475, %v312
        %v577 = vadd.f32 %v480, %v313
        %v578 = vadd.f32 %v485, %v314
        %v579 = vadd.f32 %v490, %v315
        %v580 = vadd.f32 %v495, %v316
        %v581 = vadd.f32 %v500, %v317
        %v582 = vadd.f32 %v505, %v318
        %v583 = vadd.f32 %v510, %v319
        %v584 = vadd.f32 %v515, %v320
        %v585 = vadd.f32 %v520, %v321
        %v586 = vadd.f32 %v525, %v322
        %v587 = vadd.f32 %v530, %v323
        %v588 = vadd.f32 %v535, %v324
        %v589 = vadd.f32 %v540, %v325
        %v590 = vadd.f32 %v545, %v326
        %v591 = vadd.f32 %v550, %v327
        %v592 = vadd.f32 %v555, %v328
        %v593 = vadd.f32 %v560, %v329
        %v594 = vmax.f32 %v562, 0.0
        %v595 = vmax.f32 %v563, 0.0
        %v596 = vmax.f32 %v564, 0.0
        %v597 = vmax.f32 %v565, 0.0
        %v598 = vmax.f32 %v566, 0.0
        %v599 = vmax.f32 %v567, 0.0
        %v600 = vmax.f32 %v568, 0.0
        %v601 = vmax.f32 %v569, 0.0
        %v602 = vmax.f32 %v570, 0.0
        %v603 = vmax.f32 %v571, 0.0
        %v604 = vmax.f32 %v572, 0.0
        %v605 = vmax.f32 %v573, 0.0
        %v606 = vmax.f32 %v574, 0.0
        %v607 = vmax.f32 %v575, 0.0
        %v608 = vmax.f32 %v576, 0.0
        %v609 = vmax.f32 %v577, 0.0
        %v610 = vmax.f32 %v578, 0.0
        %v611 = vmax.f32 %v579, 0.0
        %v612 = vmax.f32 %v580, 0.0
        %v613 = vmax.f32 %v581, 0.0
        %v614 = vmax.f32 %v582, 0.0
        %v615 = vmax.f32 %v583, 0.0
        %v616 = vmax.f32 %v584, 0.0
        %v617 = vmax.f32 %v585, 0.0
        %v618 = vmax.f32 %v586, 0.0
        %v619 = vmax.f32 %v587, 0.0
        %v620 = vmax.f32 %v588, 0.0
        %v621 = vmax.f32 %v589, 0.0
        %v622 = vmax.f32 %v590, 0.0
        %v623 = vmax.f32 %v591, 0.0
        %v624 = vmax.f32 %v592, 0.0
        %v625 = vmax.f32 %v593, 0.0
        %627 = vset.pattern.permute.xlu0 0
        %628 = vperm.xlu0 %627, %v233
        %v629 = vpop.permute.xlu0 %628
        %632 = vset.pattern.permute.xlu0 0
        %633 = vperm.xlu0 %632, %v234
        %v634 = vpop.permute.xlu0 %633
        %637 = vset.pattern.permute.xlu0 0
        %638 = vperm.xlu0 %637, %v235
        %v639 = vpop.permute.xlu0 %638
        %642 = vset.pattern.permute.xlu0 0
        %643 = vperm.xlu0 %642, %v236
        %v644 = vpop.permute.xlu0 %643
        %647 = vset.pattern.permute.xlu0 0
        %648 = vperm.xlu0 %647, %v237
        %v649 = vpop.permute.xlu0 %648
        %652 = vset.pattern.permute.xlu0 0
        %653 = vperm.xlu0 %652, %v238
        %v654 = vpop.permute.xlu0 %653
        %657 = vset.pattern.permute.xlu0 0
        %658 = vperm.xlu0 %657, %v239
        %v659 = vpop.permute.xlu0 %658
        %662 = vset.pattern.permute.xlu0 0
        %663 = vperm.xlu0 %662, %v240
        %v664 = vpop.permute.xlu0 %663
        %667 = vset.pattern.permute.xlu0 0
        %668 = vperm.xlu0 %667, %v241
        %v669 = vpop.permute.xlu0 %668
        %672 = vset.pattern.permute.xlu0 0
        %673 = vperm.xlu0 %672, %v242
        %v674 = vpop.permute.xlu0 %673
        %677 = vset.pattern.permute.xlu0 0
        %678 = vperm.xlu0 %677, %v243
        %v679 = vpop.permute.xlu0 %678
        %682 = vset.pattern.permute.xlu0 0
        %683 = vperm.xlu0 %682, %v244
        %v684 = vpop.permute.xlu0 %683
        %687 = vset.pattern.permute.xlu0 0
        %688 = vperm.xlu0 %687, %v245
        %v689 = vpop.permute.xlu0 %688
        %692 = vset.pattern.permute.xlu0 0
        %693 = vperm.xlu0 %692, %v246
        %v694 = vpop.permute.xlu0 %693
        %697 = vset.pattern.permute.xlu0 0
        %698 = vperm.xlu0 %697, %v247
        %v699 = vpop.permute.xlu0 %698
        %702 = vset.pattern.permute.xlu0 0
        %703 = vperm.xlu0 %702, %v248
        %v704 = vpop.permute.xlu0 %703
        %707 = vset.pattern.permute.xlu0 0
        %708 = vperm.xlu0 %707, %v249
        %v709 = vpop.permute.xlu0 %708
        %712 = vset.pattern.permute.xlu0 0
        %713 = vperm.xlu0 %712, %v250
        %v714 = vpop.permute.xlu0 %713
        %717 = vset.pattern.permute.xlu0 0
        %718 = vperm.xlu0 %717, %v251
        %v719 = vpop.permute.xlu0 %718
        %722 = vset.pattern.permute.xlu0 0
        %723 = vperm.xlu0 %722, %v252
        %v724 = vpop.permute.xlu0 %723
        %727 = vset.pattern.permute.xlu0 0
        %728 = vperm.xlu0 %727, %v253
        %v729 = vpop.permute.xlu0 %728
        %732 = vset.pattern.permute.xlu0 0
        %733 = vperm.xlu0 %732, %v254
        %v734 = vpop.permute.xlu0 %733
        %737 = vset.pattern.permute.xlu0 0
        %738 = vperm.xlu0 %737, %v255
        %v739 = vpop.permute.xlu0 %738
        %742 = vset.pattern.permute.xlu0 0
        %743 = vperm.xlu0 %742, %v256
        %v744 = vpop.permute.xlu0 %743
        %747 = vset.pattern.permute.xlu0 0
        %748 = vperm.xlu0 %747, %v257
        %v749 = vpop.permute.xlu0 %748
        %752 = vset.pattern.permute.xlu0 0
        %753 = vperm.xlu0 %752, %v258
        %v754 = vpop.permute.xlu0 %753
        %757 = vset.pattern.permute.xlu0 0
        %758 = vperm.xlu0 %757, %v259
        %v759 = vpop.permute.xlu0 %758
        %762 = vset.pattern.permute.xlu0 0
        %763 = vperm.xlu0 %762, %v260
        %v764 = vpop.permute.xlu0 %763
        %767 = vset.pattern.permute.xlu0 0
        %768 = vperm.xlu0 %767, %v261
        %v769 = vpop.permute.xlu0 %768
        %772 = vset.pattern.permute.xlu0 0
        %773 = vperm.xlu0 %772, %v262
        %v774 = vpop.permute.xlu0 %773
        %777 = vset.pattern.permute.xlu0 0
        %778 = vperm.xlu0 %777, %v263
        %v779 = vpop.permute.xlu0 %778
        %782 = vset.pattern.permute.xlu0 0
        %783 = vperm.xlu0 %782, %v264
        %v784 = vpop.permute.xlu0 %783
        %v786 = vmul.f32 %v594, %v629
        %v787 = vmul.f32 %v595, %v634
        %v788 = vmul.f32 %v596, %v639
        %v789 = vmul.f32 %v597, %v644
        %v790 = vmul.f32 %v598, %v649
        %v791 = vmul.f32 %v599, %v654
        %v792 = vmul.f32 %v600, %v659
        %v793 = vmul.f32 %v601, %v664
        %v794 = vmul.f32 %v602, %v669
        %v795 = vmul.f32 %v603, %v674
        %v796 = vmul.f32 %v604, %v679
        %v797 = vmul.f32 %v605, %v684
        %v798 = vmul.f32 %v606, %v689
        %v799 = vmul.f32 %v607, %v694
        %v800 = vmul.f32 %v608, %v699
        %v801 = vmul.f32 %v609, %v704
        %v802 = vmul.f32 %v610, %v709
        %v803 = vmul.f32 %v611, %v714
        %v804 = vmul.f32 %v612, %v719
        %v805 = vmul.f32 %v613, %v724
        %v806 = vmul.f32 %v614, %v729
        %v807 = vmul.f32 %v615, %v734
        %v808 = vmul.f32 %v616, %v739
        %v809 = vmul.f32 %v617, %v744
        %v810 = vmul.f32 %v618, %v749
        %v811 = vmul.f32 %v619, %v754
        %v812 = vmul.f32 %v620, %v759
        %v813 = vmul.f32 %v621, %v764
        %v814 = vmul.f32 %v622, %v769
        %v815 = vmul.f32 %v623, %v774
        %v816 = vmul.f32 %v624, %v779
        %v817 = vmul.f32 %v625, %v784
        %v818 = vadd.f32 %v786, %v787
        %v819 = vadd.f32 %v818, %v788
        %v820 = vadd.f32 %v819, %v789
        %v821 = vadd.f32 %v820, %v790
        %v822 = vadd.f32 %v821, %v791
        %v823 = vadd.f32 %v822, %v792
        %v824 = vadd.f32 %v823, %v793
        %v825 = vadd.f32 %v824, %v794
        %v826 = vadd.f32 %v825, %v795
        %v827 = vadd.f32 %v826, %v796
        %v828 = vadd.f32 %v827, %v797
        %v829 = vadd.f32 %v828, %v798
        %v830 = vadd.f32 %v829, %v799
        %v831 = vadd.f32 %v830, %v800
        %v832 = vadd.f32 %v831, %v801
        %v833 = vadd.f32 %v832, %v802
        %v834 = vadd.f32 %v833, %v803
        %v835 = vadd.f32 %v834, %v804
        %v836 = vadd.f32 %v835, %v805
        %v837 = vadd.f32 %v836, %v806
        %v838 = vadd.f32 %v837, %v807
        %v839 = vadd.f32 %v838, %v808
        %v840 = vadd.f32 %v839, %v809
        %v841 = vadd.f32 %v840, %v810
        %v842 = vadd.f32 %v841, %v811
        %v843 = vadd.f32 %v842, %v812
        %v844 = vadd.f32 %v843, %v813
        %v845 = vadd.f32 %v844, %v814
        %v846 = vadd.f32 %v845, %v815
        %v847 = vadd.f32 %v846, %v816
        %v848 = vadd.f32 %v847, %v817
        %v849 = vrot.slane %v848, 4
        %v850 = vadd.f32 %v848, %v849
        %v851 = vrot.slane %v850, 2
        %v852 = vadd.f32 %v850, %v851
        %v853 = vrot.slane %v852, 1
        %v854 = vadd.f32 %v852, %v853
        %855 = vset.pattern.permute.xlu0 1
        %856 = vperm.xlu0 %855, %v354
        %v857 = vpop.permute.xlu0 %856
        %859 = vset.pattern.permute.xlu0 1
        %860 = vperm.xlu0 %859, %v355
        %v861 = vpop.permute.xlu0 %860
        %863 = vset.pattern.permute.xlu0 1
        %864 = vperm.xlu0 %863, %v356
        %v865 = vpop.permute.xlu0 %864
        %867 = vset.pattern.permute.xlu0 1
        %868 = vperm.xlu0 %867, %v357
        %v869 = vpop.permute.xlu0 %868
        %871 = vset.pattern.permute.xlu0 1
        %872 = vperm.xlu0 %871, %v358
        %v873 = vpop.permute.xlu0 %872
        %875 = vset.pattern.permute.xlu0 1
        %876 = vperm.xlu0 %875, %v359
        %v877 = vpop.permute.xlu0 %876
        %879 = vset.pattern.permute.xlu0 1
        %880 = vperm.xlu0 %879, %v360
        %v881 = vpop.permute.xlu0 %880
        %883 = vset.pattern.permute.xlu0 1
        %884 = vperm.xlu0 %883, %v361
        %v885 = vpop.permute.xlu0 %884
        %887 = vset.pattern.permute.xlu0 1
        %888 = vperm.xlu0 %887, %v362
        %v889 = vpop.permute.xlu0 %888
        %891 = vset.pattern.permute.xlu0 1
        %892 = vperm.xlu0 %891, %v363
        %v893 = vpop.permute.xlu0 %892
        %895 = vset.pattern.permute.xlu0 1
        %896 = vperm.xlu0 %895, %v364
        %v897 = vpop.permute.xlu0 %896
        %899 = vset.pattern.permute.xlu0 1
        %900 = vperm.xlu0 %899, %v365
        %v901 = vpop.permute.xlu0 %900
        %903 = vset.pattern.permute.xlu0 1
        %904 = vperm.xlu0 %903, %v366
        %v905 = vpop.permute.xlu0 %904
        %907 = vset.pattern.permute.xlu0 1
        %908 = vperm.xlu0 %907, %v367
        %v909 = vpop.permute.xlu0 %908
        %911 = vset.pattern.permute.xlu0 1
        %912 = vperm.xlu0 %911, %v368
        %v913 = vpop.permute.xlu0 %912
        %915 = vset.pattern.permute.xlu0 1
        %916 = vperm.xlu0 %915, %v369
        %v917 = vpop.permute.xlu0 %916
        %919 = vset.pattern.permute.xlu0 1
        %920 = vperm.xlu0 %919, %v386
        %v921 = vpop.permute.xlu0 %920
        %923 = vset.pattern.permute.xlu0 1
        %924 = vperm.xlu0 %923, %v387
        %v925 = vpop.permute.xlu0 %924
        %927 = vset.pattern.permute.xlu0 1
        %928 = vperm.xlu0 %927, %v388
        %v929 = vpop.permute.xlu0 %928
        %931 = vset.pattern.permute.xlu0 1
        %932 = vperm.xlu0 %931, %v389
        %v933 = vpop.permute.xlu0 %932
        %935 = vset.pattern.permute.xlu0 1
        %936 = vperm.xlu0 %935, %v390
        %v937 = vpop.permute.xlu0 %936
        %939 = vset.pattern.permute.xlu0 1
        %940 = vperm.xlu0 %939, %v391
        %v941 = vpop.permute.xlu0 %940
        %943 = vset.pattern.permute.xlu0 1
        %944 = vperm.xlu0 %943, %v392
        %v945 = vpop.permute.xlu0 %944
        %947 = vset.pattern.permute.xlu0 1
        %948 = vperm.xlu0 %947, %v393
        %v949 = vpop.permute.xlu0 %948
        %951 = vset.pattern.permute.xlu0 1
        %952 = vperm.xlu0 %951, %v394
        %v953 = vpop.permute.xlu0 %952
        %955 = vset.pattern.permute.xlu0 1
        %956 = vperm.xlu0 %955, %v395
        %v957 = vpop.permute.xlu0 %956
        %959 = vset.pattern.permute.xlu0 1
        %960 = vperm.xlu0 %959, %v396
        %v961 = vpop.permute.xlu0 %960
        %963 = vset.pattern.permute.xlu0 1
        %964 = vperm.xlu0 %963, %v397
        %v965 = vpop.permute.xlu0 %964
        %967 = vset.pattern.permute.xlu0 1
        %968 = vperm.xlu0 %967, %v398
        %v969 = vpop.permute.xlu0 %968
        %971 = vset.pattern.permute.xlu0 1
        %972 = vperm.xlu0 %971, %v399
        %v973 = vpop.permute.xlu0 %972
        %975 = vset.pattern.permute.xlu0 1
        %976 = vperm.xlu0 %975, %v400
        %v977 = vpop.permute.xlu0 %976
        %979 = vset.pattern.permute.xlu0 1
        %980 = vperm.xlu0 %979, %v401
        %v981 = vpop.permute.xlu0 %980
        %v983 = vadd.f32 %v857, %v298
        %v984 = vadd.f32 %v861, %v299
        %v985 = vadd.f32 %v865, %v300
        %v986 = vadd.f32 %v869, %v301
        %v987 = vadd.f32 %v873, %v302
        %v988 = vadd.f32 %v877, %v303
        %v989 = vadd.f32 %v881, %v304
        %v990 = vadd.f32 %v885, %v305
        %v991 = vadd.f32 %v889, %v306
        %v992 = vadd.f32 %v893, %v307
        %v993 = vadd.f32 %v897, %v308
        %v994 = vadd.f32 %v901, %v309
        %v995 = vadd.f32 %v905, %v310
        %v996 = vadd.f32 %v909, %v311
        %v997 = vadd.f32 %v913, %v312
        %v998 = vadd.f32 %v917, %v313
        %v999 = vadd.f32 %v921, %v314
        %v1000 = vadd.f32 %v925, %v315
        %v1001 = vadd.f32 %v929, %v316
        %v1002 = vadd.f32 %v933, %v317
        %v1003 = vadd.f32 %v937, %v318
        %v1004 = vadd.f32 %v941, %v319
        %v1005 = vadd.f32 %v945, %v320
        %v1006 = vadd.f32 %v949, %v321
        %v1007 = vadd.f32 %v953, %v322
        %v1008 = vadd.f32 %v957, %v323
        %v1009 = vadd.f32 %v961, %v324
        %v1010 = vadd.f32 %v965, %v325
        %v1011 = vadd.f32 %v969, %v326
        %v1012 = vadd.f32 %v973, %v327
        %v1013 = vadd.f32 %v977, %v328
        %v1014 = vadd.f32 %v981, %v329
        %v1015 = vmax.f32 %v983, 0.0
        %v1016 = vmax.f32 %v984, 0.0
        %v1017 = vmax.f32 %v985, 0.0
        %v1018 = vmax.f32 %v986, 0.0
        %v1019 = vmax.f32 %v987, 0.0
        %v1020 = vmax.f32 %v988, 0.0
        %v1021 = vmax.f32 %v989, 0.0
        %v1022 = vmax.f32 %v990, 0.0
        %v1023 = vmax.f32 %v991, 0.0
        %v1024 = vmax.f32 %v992, 0.0
        %v1025 = vmax.f32 %v993, 0.0
        %v1026 = vmax.f32 %v994, 0.0
        %v1027 = vmax.f32 %v995, 0.0
        %v1028 = vmax.f32 %v996, 0.0
        %v1029 = vmax.f32 %v997, 0.0
        %v1030 = vmax.f32 %v998, 0.0
        %v1031 = vmax.f32 %v999, 0.0
        %v1032 = vmax.f32 %v1000, 0.0
        %v1033 = vmax.f32 %v1001, 0.0
        %v1034 = vmax.f32 %v1002, 0.0
        %v1035 = vmax.f32 %v1003, 0.0
        %v1036 = vmax.f32 %v1004, 0.0
        %v1037 = vmax.f32 %v1005, 0.0
        %v1038 = vmax.f32 %v1006, 0.0
        %v1039 = vmax.f32 %v1007, 0.0
        %v1040 = vmax.f32 %v1008, 0.0
        %v1041 = vmax.f32 %v1009, 0.0
        %v1042 = vmax.f32 %v1010, 0.0
        %v1043 = vmax.f32 %v1011, 0.0
        %v1044 = vmax.f32 %v1012, 0.0
        %v1045 = vmax.f32 %v1013, 0.0
        %v1046 = vmax.f32 %v1014, 0.0
        %v1047 = vmul.f32 %v1015, %v629
        %v1048 = vmul.f32 %v1016, %v634
        %v1049 = vmul.f32 %v1017, %v639
        %v1050 = vmul.f32 %v1018, %v644
        %v1051 = vmul.f32 %v1019, %v649
        %v1052 = vmul.f32 %v1020, %v654
        %v1053 = vmul.f32 %v1021, %v659
        %v1054 = vmul.f32 %v1022, %v664
        %v1055 = vmul.f32 %v1023, %v669
        %v1056 = vmul.f32 %v1024, %v674
        %v1057 = vmul.f32 %v1025, %v679
        %v1058 = vmul.f32 %v1026, %v684
        %v1059 = vmul.f32 %v1027, %v689
        %v1060 = vmul.f32 %v1028, %v694
        %v1061 = vmul.f32 %v1029, %v699
        %v1062 = vmul.f32 %v1030, %v704
        %v1063 = vmul.f32 %v1031, %v709
        %v1064 = vmul.f32 %v1032, %v714
        %v1065 = vmul.f32 %v1033, %v719
        %v1066 = vmul.f32 %v1034, %v724
        %v1067 = vmul.f32 %v1035, %v729
        %v1068 = vmul.f32 %v1036, %v734
        %v1069 = vmul.f32 %v1037, %v739
        %v1070 = vmul.f32 %v1038, %v744
        %v1071 = vmul.f32 %v1039, %v749
        %v1072 = vmul.f32 %v1040, %v754
        %v1073 = vmul.f32 %v1041, %v759
        %v1074 = vmul.f32 %v1042, %v764
        %v1075 = vmul.f32 %v1043, %v769
        %v1076 = vmul.f32 %v1044, %v774
        %v1077 = vmul.f32 %v1045, %v779
        %v1078 = vmul.f32 %v1046, %v784
        %v1079 = vadd.f32 %v1047, %v1048
        %v1080 = vadd.f32 %v1079, %v1049
        %v1081 = vadd.f32 %v1080, %v1050
        %v1082 = vadd.f32 %v1081, %v1051
        %v1083 = vadd.f32 %v1082, %v1052
        %v1084 = vadd.f32 %v1083, %v1053
        %v1085 = vadd.f32 %v1084, %v1054
        %v1086 = vadd.f32 %v1085, %v1055
        %v1087 = vadd.f32 %v1086, %v1056
        %v1088 = vadd.f32 %v1087, %v1057
        %v1089 = vadd.f32 %v1088, %v1058
        %v1090 = vadd.f32 %v1089, %v1059
        %v1091 = vadd.f32 %v1090, %v1060
        %v1092 = vadd.f32 %v1091, %v1061
        %v1093 = vadd.f32 %v1092, %v1062
        %v1094 = vadd.f32 %v1093, %v1063
        %v1095 = vadd.f32 %v1094, %v1064
        %v1096 = vadd.f32 %v1095, %v1065
        %v1097 = vadd.f32 %v1096, %v1066
        %v1098 = vadd.f32 %v1097, %v1067
        %v1099 = vadd.f32 %v1098, %v1068
        %v1100 = vadd.f32 %v1099, %v1069
        %v1101 = vadd.f32 %v1100, %v1070
        %v1102 = vadd.f32 %v1101, %v1071
        %v1103 = vadd.f32 %v1102, %v1072
        %v1104 = vadd.f32 %v1103, %v1073
        %v1105 = vadd.f32 %v1104, %v1074
        %v1106 = vadd.f32 %v1105, %v1075
        %v1107 = vadd.f32 %v1106, %v1076
        %v1108 = vadd.f32 %v1107, %v1077
        %v1109 = vadd.f32 %v1108, %v1078
        %v1110 = vrot.slane %v1109, 4
        %v1111 = vadd.f32 %v1109, %v1110
        %v1112 = vrot.slane %v1111, 2
        %v1113 = vadd.f32 %v1111, %v1112
        %v1114 = vrot.slane %v1113, 1
        %v1115 = vadd.f32 %v1113, %v1114
        %1116 = vset.pattern.permute.xlu0 2
        %1117 = vperm.xlu0 %1116, %v354
        %v1118 = vpop.permute.xlu0 %1117
        %1120 = vset.pattern.permute.xlu0 2
        %1121 = vperm.xlu0 %1120, %v355
        %v1122 = vpop.permute.xlu0 %1121
        %1124 = vset.pattern.permute.xlu0 2
        %1125 = vperm.xlu0 %1124, %v356
        %v1126 = vpop.permute.xlu0 %1125
        %1128 = vset.pattern.permute.xlu0 2
        %1129 = vperm.xlu0 %1128, %v357
        %v1130 = vpop.permute.xlu0 %1129
        %1132 = vset.pattern.permute.xlu0 2
        %1133 = vperm.xlu0 %1132, %v358
        %v1134 = vpop.permute.xlu0 %1133
        %1136 = vset.pattern.permute.xlu0 2
        %1137 = vperm.xlu0 %1136, %v359
        %v1138 = vpop.permute.xlu0 %1137
        %1140 = vset.pattern.permute.xlu0 2
        %1141 = vperm.xlu0 %1140, %v360
        %v1142 = vpop.permute.xlu0 %1141
        %1144 = vset.pattern.permute.xlu0 2
        %1145 = vperm.xlu0 %1144, %v361
        %v1146 = vpop.permute.xlu0 %1145
        %1148 = vset.pattern.permute.xlu0 2
        %1149 = vperm.xlu0 %1148, %v362
        %v1150 = vpop.permute.xlu0 %1149
        %1152 = vset.pattern.permute.xlu0 2
        %1153 = vperm.xlu0 %1152, %v363
        %v1154 = vpop.permute.xlu0 %1153
        %1156 = vset.pattern.permute.xlu0 2
        %1157 = vperm.xlu0 %1156, %v364
        %v1158 = vpop.permute.xlu0 %1157
        %1160 = vset.pattern.permute.xlu0 2
        %1161 = vperm.xlu0 %1160, %v365
        %v1162 = vpop.permute.xlu0 %1161
        %1164 = vset.pattern.permute.xlu0 2
        %1165 = vperm.xlu0 %1164, %v366
        %v1166 = vpop.permute.xlu0 %1165
        %1168 = vset.pattern.permute.xlu0 2
        %1169 = vperm.xlu0 %1168, %v367
        %v1170 = vpop.permute.xlu0 %1169
        %1172 = vset.pattern.permute.xlu0 2
        %1173 = vperm.xlu0 %1172, %v368
        %v1174 = vpop.permute.xlu0 %1173
        %1176 = vset.pattern.permute.xlu0 2
        %1177 = vperm.xlu0 %1176, %v369
        %v1178 = vpop.permute.xlu0 %1177
        %1180 = vset.pattern.permute.xlu0 2
        %1181 = vperm.xlu0 %1180, %v386
        %v1182 = vpop.permute.xlu0 %1181
        %1184 = vset.pattern.permute.xlu0 2
        %1185 = vperm.xlu0 %1184, %v387
        %v1186 = vpop.permute.xlu0 %1185
        %1188 = vset.pattern.permute.xlu0 2
        %1189 = vperm.xlu0 %1188, %v388
        %v1190 = vpop.permute.xlu0 %1189
        %1192 = vset.pattern.permute.xlu0 2
        %1193 = vperm.xlu0 %1192, %v389
        %v1194 = vpop.permute.xlu0 %1193
        %1196 = vset.pattern.permute.xlu0 2
        %1197 = vperm.xlu0 %1196, %v390
        %v1198 = vpop.permute.xlu0 %1197
        %1200 = vset.pattern.permute.xlu0 2
        %1201 = vperm.xlu0 %1200, %v391
        %v1202 = vpop.permute.xlu0 %1201
        %1204 = vset.pattern.permute.xlu0 2
        %1205 = vperm.xlu0 %1204, %v392
        %v1206 = vpop.permute.xlu0 %1205
        %1208 = vset.pattern.permute.xlu0 2
        %1209 = vperm.xlu0 %1208, %v393
        %v1210 = vpop.permute.xlu0 %1209
        %1212 = vset.pattern.permute.xlu0 2
        %1213 = vperm.xlu0 %1212, %v394
        %v1214 = vpop.permute.xlu0 %1213
        %1216 = vset.pattern.permute.xlu0 2
        %1217 = vperm.xlu0 %1216, %v395
        %v1218 = vpop.permute.xlu0 %1217
        %1220 = vset.pattern.permute.xlu0 2
        %1221 = vperm.xlu0 %1220, %v396
        %v1222 = vpop.permute.xlu0 %1221
        %1224 = vset.pattern.permute.xlu0 2
        %1225 = vperm.xlu0 %1224, %v397
        %v1226 = vpop.permute.xlu0 %1225
        %1228 = vset.pattern.permute.xlu0 2
        %1229 = vperm.xlu0 %1228, %v398
        %v1230 = vpop.permute.xlu0 %1229
        %1232 = vset.pattern.permute.xlu0 2
        %1233 = vperm.xlu0 %1232, %v399
        %v1234 = vpop.permute.xlu0 %1233
        %1236 = vset.pattern.permute.xlu0 2
        %1237 = vperm.xlu0 %1236, %v400
        %v1238 = vpop.permute.xlu0 %1237
        %1240 = vset.pattern.permute.xlu0 2
        %1241 = vperm.xlu0 %1240, %v401
        %v1242 = vpop.permute.xlu0 %1241
        %v1244 = vadd.f32 %v1118, %v298
        %v1245 = vadd.f32 %v1122, %v299
        %v1246 = vadd.f32 %v1126, %v300
        %v1247 = vadd.f32 %v1130, %v301
        %v1248 = vadd.f32 %v1134, %v302
        %v1249 = vadd.f32 %v1138, %v303
        %v1250 = vadd.f32 %v1142, %v304
        %v1251 = vadd.f32 %v1146, %v305
        %v1252 = vadd.f32 %v1150, %v306
        %v1253 = vadd.f32 %v1154, %v307
        %v1254 = vadd.f32 %v1158, %v308
        %v1255 = vadd.f32 %v1162, %v309
        %v1256 = vadd.f32 %v1166, %v310
        %v1257 = vadd.f32 %v1170, %v311
        %v1258 = vadd.f32 %v1174, %v312
        %v1259 = vadd.f32 %v1178, %v313
        %v1260 = vadd.f32 %v1182, %v314
        %v1261 = vadd.f32 %v1186, %v315
        %v1262 = vadd.f32 %v1190, %v316
        %v1263 = vadd.f32 %v1194, %v317
        %v1264 = vadd.f32 %v1198, %v318
        %v1265 = vadd.f32 %v1202, %v319
        %v1266 = vadd.f32 %v1206, %v320
        %v1267 = vadd.f32 %v1210, %v321
        %v1268 = vadd.f32 %v1214, %v322
        %v1269 = vadd.f32 %v1218, %v323
        %v1270 = vadd.f32 %v1222, %v324
        %v1271 = vadd.f32 %v1226, %v325
        %v1272 = vadd.f32 %v1230, %v326
        %v1273 = vadd.f32 %v1234, %v327
        %v1274 = vadd.f32 %v1238, %v328
        %v1275 = vadd.f32 %v1242, %v329
        %v1276 = vmax.f32 %v1244, 0.0
        %v1277 = vmax.f32 %v1245, 0.0
        %v1278 = vmax.f32 %v1246, 0.0
        %v1279 = vmax.f32 %v1247, 0.0
        %v1280 = vmax.f32 %v1248, 0.0
        %v1281 = vmax.f32 %v1249, 0.0
        %v1282 = vmax.f32 %v1250, 0.0
        %v1283 = vmax.f32 %v1251, 0.0
        %v1284 = vmax.f32 %v1252, 0.0
        %v1285 = vmax.f32 %v1253, 0.0
        %v1286 = vmax.f32 %v1254, 0.0
        %v1287 = vmax.f32 %v1255, 0.0
        %v1288 = vmax.f32 %v1256, 0.0
        %v1289 = vmax.f32 %v1257, 0.0
        %v1290 = vmax.f32 %v1258, 0.0
        %v1291 = vmax.f32 %v1259, 0.0
        %v1292 = vmax.f32 %v1260, 0.0
        %v1293 = vmax.f32 %v1261, 0.0
        %v1294 = vmax.f32 %v1262, 0.0
        %v1295 = vmax.f32 %v1263, 0.0
        %v1296 = vmax.f32 %v1264, 0.0
        %v1297 = vmax.f32 %v1265, 0.0
        %v1298 = vmax.f32 %v1266, 0.0
        %v1299 = vmax.f32 %v1267, 0.0
        %v1300 = vmax.f32 %v1268, 0.0
        %v1301 = vmax.f32 %v1269, 0.0
        %v1302 = vmax.f32 %v1270, 0.0
        %v1303 = vmax.f32 %v1271, 0.0
        %v1304 = vmax.f32 %v1272, 0.0
        %v1305 = vmax.f32 %v1273, 0.0
        %v1306 = vmax.f32 %v1274, 0.0
        %v1307 = vmax.f32 %v1275, 0.0
        %v1308 = vmul.f32 %v1276, %v629
        %v1309 = vmul.f32 %v1277, %v634
        %v1310 = vmul.f32 %v1278, %v639
        %v1311 = vmul.f32 %v1279, %v644
        %v1312 = vmul.f32 %v1280, %v649
        %v1313 = vmul.f32 %v1281, %v654
        %v1314 = vmul.f32 %v1282, %v659
        %v1315 = vmul.f32 %v1283, %v664
        %v1316 = vmul.f32 %v1284, %v669
        %v1317 = vmul.f32 %v1285, %v674
        %v1318 = vmul.f32 %v1286, %v679
        %v1319 = vmul.f32 %v1287, %v684
        %v1320 = vmul.f32 %v1288, %v689
        %v1321 = vmul.f32 %v1289, %v694
        %v1322 = vmul.f32 %v1290, %v699
        %v1323 = vmul.f32 %v1291, %v704
        %v1324 = vmul.f32 %v1292, %v709
        %v1325 = vmul.f32 %v1293, %v714
        %v1326 = vmul.f32 %v1294, %v719
        %v1327 = vmul.f32 %v1295, %v724
        %v1328 = vmul.f32 %v1296, %v729
        %v1329 = vmul.f32 %v1297, %v734
        %v1330 = vmul.f32 %v1298, %v739
        %v1331 = vmul.f32 %v1299, %v744
        %v1332 = vmul.f32 %v1300, %v749
        %v1333 = vmul.f32 %v1301, %v754
        %v1334 = vmul.f32 %v1302, %v759
        %v1335 = vmul.f32 %v1303, %v764
        %v1336 = vmul.f32 %v1304, %v769
        %v1337 = vmul.f32 %v1305, %v774
        %v1338 = vmul.f32 %v1306, %v779
        %v1339 = vmul.f32 %v1307, %v784
        %v1340 = vadd.f32 %v1308, %v1309
        %v1341 = vadd.f32 %v1340, %v1310
        %v1342 = vadd.f32 %v1341, %v1311
        %v1343 = vadd.f32 %v1342, %v1312
        %v1344 = vadd.f32 %v1343, %v1313
        %v1345 = vadd.f32 %v1344, %v1314
        %v1346 = vadd.f32 %v1345, %v1315
        %v1347 = vadd.f32 %v1346, %v1316
        %v1348 = vadd.f32 %v1347, %v1317
        %v1349 = vadd.f32 %v1348, %v1318
        %v1350 = vadd.f32 %v1349, %v1319
        %v1351 = vadd.f32 %v1350, %v1320
        %v1352 = vadd.f32 %v1351, %v1321
        %v1353 = vadd.f32 %v1352, %v1322
        %v1354 = vadd.f32 %v1353, %v1323
        %v1355 = vadd.f32 %v1354, %v1324
        %v1356 = vadd.f32 %v1355, %v1325
        %v1357 = vadd.f32 %v1356, %v1326
        %v1358 = vadd.f32 %v1357, %v1327
        %v1359 = vadd.f32 %v1358, %v1328
        %v1360 = vadd.f32 %v1359, %v1329
        %v1361 = vadd.f32 %v1360, %v1330
        %v1362 = vadd.f32 %v1361, %v1331
        %v1363 = vadd.f32 %v1362, %v1332
        %v1364 = vadd.f32 %v1363, %v1333
        %v1365 = vadd.f32 %v1364, %v1334
        %v1366 = vadd.f32 %v1365, %v1335
        %v1367 = vadd.f32 %v1366, %v1336
        %v1368 = vadd.f32 %v1367, %v1337
        %v1369 = vadd.f32 %v1368, %v1338
        %v1370 = vadd.f32 %v1369, %v1339
        %v1371 = vrot.slane %v1370, 4
        %v1372 = vadd.f32 %v1370, %v1371
        %v1373 = vrot.slane %v1372, 2
        %v1374 = vadd.f32 %v1372, %v1373
        %v1375 = vrot.slane %v1374, 1
        %v1376 = vadd.f32 %v1374, %v1375
        %1377 = vset.pattern.permute.xlu0 3
        %1378 = vperm.xlu0 %1377, %v354
        %v1379 = vpop.permute.xlu0 %1378
        %1381 = vset.pattern.permute.xlu0 3
        %1382 = vperm.xlu0 %1381, %v355
        %v1383 = vpop.permute.xlu0 %1382
        %1385 = vset.pattern.permute.xlu0 3
        %1386 = vperm.xlu0 %1385, %v356
        %v1387 = vpop.permute.xlu0 %1386
        %1389 = vset.pattern.permute.xlu0 3
        %1390 = vperm.xlu0 %1389, %v357
        %v1391 = vpop.permute.xlu0 %1390
        %1393 = vset.pattern.permute.xlu0 3
        %1394 = vperm.xlu0 %1393, %v358
        %v1395 = vpop.permute.xlu0 %1394
        %1397 = vset.pattern.permute.xlu0 3
        %1398 = vperm.xlu0 %1397, %v359
        %v1399 = vpop.permute.xlu0 %1398
        %1401 = vset.pattern.permute.xlu0 3
        %1402 = vperm.xlu0 %1401, %v360
        %v1403 = vpop.permute.xlu0 %1402
        %1405 = vset.pattern.permute.xlu0 3
        %1406 = vperm.xlu0 %1405, %v361
        %v1407 = vpop.permute.xlu0 %1406
        %1409 = vset.pattern.permute.xlu0 3
        %1410 = vperm.xlu0 %1409, %v362
        %v1411 = vpop.permute.xlu0 %1410
        %1413 = vset.pattern.permute.xlu0 3
        %1414 = vperm.xlu0 %1413, %v363
        %v1415 = vpop.permute.xlu0 %1414
        %1417 = vset.pattern.permute.xlu0 3
        %1418 = vperm.xlu0 %1417, %v364
        %v1419 = vpop.permute.xlu0 %1418
        %1421 = vset.pattern.permute.xlu0 3
        %1422 = vperm.xlu0 %1421, %v365
        %v1423 = vpop.permute.xlu0 %1422
        %1425 = vset.pattern.permute.xlu0 3
        %1426 = vperm.xlu0 %1425, %v366
        %v1427 = vpop.permute.xlu0 %1426
        %1429 = vset.pattern.permute.xlu0 3
        %1430 = vperm.xlu0 %1429, %v367
        %v1431 = vpop.permute.xlu0 %1430
        %1433 = vset.pattern.permute.xlu0 3
        %1434 = vperm.xlu0 %1433, %v368
        %v1435 = vpop.permute.xlu0 %1434
        %1437 = vset.pattern.permute.xlu0 3
        %1438 = vperm.xlu0 %1437, %v369
        %v1439 = vpop.permute.xlu0 %1438
        %1441 = vset.pattern.permute.xlu0 3
        %1442 = vperm.xlu0 %1441, %v386
        %v1443 = vpop.permute.xlu0 %1442
        %1445 = vset.pattern.permute.xlu0 3
        %1446 = vperm.xlu0 %1445, %v387
        %v1447 = vpop.permute.xlu0 %1446
        %1449 = vset.pattern.permute.xlu0 3
        %1450 = vperm.xlu0 %1449, %v388
        %v1451 = vpop.permute.xlu0 %1450
        %1453 = vset.pattern.permute.xlu0 3
        %1454 = vperm.xlu0 %1453, %v389
        %v1455 = vpop.permute.xlu0 %1454
        %1457 = vset.pattern.permute.xlu0 3
        %1458 = vperm.xlu0 %1457, %v390
        %v1459 = vpop.permute.xlu0 %1458
        %1461 = vset.pattern.permute.xlu0 3
        %1462 = vperm.xlu0 %1461, %v391
        %v1463 = vpop.permute.xlu0 %1462
        %1465 = vset.pattern.permute.xlu0 3
        %1466 = vperm.xlu0 %1465, %v392
        %v1467 = vpop.permute.xlu0 %1466
        %1469 = vset.pattern.permute.xlu0 3
        %1470 = vperm.xlu0 %1469, %v393
        %v1471 = vpop.permute.xlu0 %1470
        %1473 = vset.pattern.permute.xlu0 3
        %1474 = vperm.xlu0 %1473, %v394
        %v1475 = vpop.permute.xlu0 %1474
        %1477 = vset.pattern.permute.xlu0 3
        %1478 = vperm.xlu0 %1477, %v395
        %v1479 = vpop.permute.xlu0 %1478
        %1481 = vset.pattern.permute.xlu0 3
        %1482 = vperm.xlu0 %1481, %v396
        %v1483 = vpop.permute.xlu0 %1482
        %1485 = vset.pattern.permute.xlu0 3
        %1486 = vperm.xlu0 %1485, %v397
        %v1487 = vpop.permute.xlu0 %1486
        %1489 = vset.pattern.permute.xlu0 3
        %1490 = vperm.xlu0 %1489, %v398
        %v1491 = vpop.permute.xlu0 %1490
        %1493 = vset.pattern.permute.xlu0 3
        %1494 = vperm.xlu0 %1493, %v399
        %v1495 = vpop.permute.xlu0 %1494
        %1497 = vset.pattern.permute.xlu0 3
        %1498 = vperm.xlu0 %1497, %v400
        %v1499 = vpop.permute.xlu0 %1498
        %1501 = vset.pattern.permute.xlu0 3
        %1502 = vperm.xlu0 %1501, %v401
        %v1503 = vpop.permute.xlu0 %1502
        %v1505 = vadd.f32 %v1379, %v298
        %v1506 = vadd.f32 %v1383, %v299
        %v1507 = vadd.f32 %v1387, %v300
        %v1508 = vadd.f32 %v1391, %v301
        %v1509 = vadd.f32 %v1395, %v302
        %v1510 = vadd.f32 %v1399, %v303
        %v1511 = vadd.f32 %v1403, %v304
        %v1512 = vadd.f32 %v1407, %v305
        %v1513 = vadd.f32 %v1411, %v306
        %v1514 = vadd.f32 %v1415, %v307
        %v1515 = vadd.f32 %v1419, %v308
        %v1516 = vadd.f32 %v1423, %v309
        %v1517 = vadd.f32 %v1427, %v310
        %v1518 = vadd.f32 %v1431, %v311
        %v1519 = vadd.f32 %v1435, %v312
        %v1520 = vadd.f32 %v1439, %v313
        %v1521 = vadd.f32 %v1443, %v314
        %v1522 = vadd.f32 %v1447, %v315
        %v1523 = vadd.f32 %v1451, %v316
        %v1524 = vadd.f32 %v1455, %v317
        %v1525 = vadd.f32 %v1459, %v318
        %v1526 = vadd.f32 %v1463, %v319
        %v1527 = vadd.f32 %v1467, %v320
        %v1528 = vadd.f32 %v1471, %v321
        %v1529 = vadd.f32 %v1475, %v322
        %v1530 = vadd.f32 %v1479, %v323
        %v1531 = vadd.f32 %v1483, %v324
        %v1532 = vadd.f32 %v1487, %v325
        %v1533 = vadd.f32 %v1491, %v326
        %v1534 = vadd.f32 %v1495, %v327
        %v1535 = vadd.f32 %v1499, %v328
        %v1536 = vadd.f32 %v1503, %v329
        %v1537 = vmax.f32 %v1505, 0.0
        %v1538 = vmax.f32 %v1506, 0.0
        %v1539 = vmax.f32 %v1507, 0.0
        %v1540 = vmax.f32 %v1508, 0.0
        %v1541 = vmax.f32 %v1509, 0.0
        %v1542 = vmax.f32 %v1510, 0.0
        %v1543 = vmax.f32 %v1511, 0.0
        %v1544 = vmax.f32 %v1512, 0.0
        %v1545 = vmax.f32 %v1513, 0.0
        %v1546 = vmax.f32 %v1514, 0.0
        %v1547 = vmax.f32 %v1515, 0.0
        %v1548 = vmax.f32 %v1516, 0.0
        %v1549 = vmax.f32 %v1517, 0.0
        %v1550 = vmax.f32 %v1518, 0.0
        %v1551 = vmax.f32 %v1519, 0.0
        %v1552 = vmax.f32 %v1520, 0.0
        %v1553 = vmax.f32 %v1521, 0.0
        %v1554 = vmax.f32 %v1522, 0.0
        %v1555 = vmax.f32 %v1523, 0.0
        %v1556 = vmax.f32 %v1524, 0.0
        %v1557 = vmax.f32 %v1525, 0.0
        %v1558 = vmax.f32 %v1526, 0.0
        %v1559 = vmax.f32 %v1527, 0.0
        %v1560 = vmax.f32 %v1528, 0.0
        %v1561 = vmax.f32 %v1529, 0.0
        %v1562 = vmax.f32 %v1530, 0.0
        %v1563 = vmax.f32 %v1531, 0.0
        %v1564 = vmax.f32 %v1532, 0.0
        %v1565 = vmax.f32 %v1533, 0.0
        %v1566 = vmax.f32 %v1534, 0.0
        %v1567 = vmax.f32 %v1535, 0.0
        %v1568 = vmax.f32 %v1536, 0.0
        %v1569 = vmul.f32 %v1537, %v629
        %v1570 = vmul.f32 %v1538, %v634
        %v1571 = vmul.f32 %v1539, %v639
        %v1572 = vmul.f32 %v1540, %v644
        %v1573 = vmul.f32 %v1541, %v649
        %v1574 = vmul.f32 %v1542, %v654
        %v1575 = vmul.f32 %v1543, %v659
        %v1576 = vmul.f32 %v1544, %v664
        %v1577 = vmul.f32 %v1545, %v669
        %v1578 = vmul.f32 %v1546, %v674
        %v1579 = vmul.f32 %v1547, %v679
        %v1580 = vmul.f32 %v1548, %v684
        %v1581 = vmul.f32 %v1549, %v689
        %v1582 = vmul.f32 %v1550, %v694
        %v1583 = vmul.f32 %v1551, %v699
        %v1584 = vmul.f32 %v1552, %v704
        %v1585 = vmul.f32 %v1553, %v709
        %v1586 = vmul.f32 %v1554, %v714
        %v1587 = vmul.f32 %v1555, %v719
        %v1588 = vmul.f32 %v1556, %v724
        %v1589 = vmul.f32 %v1557, %v729
        %v1590 = vmul.f32 %v1558, %v734
        %v1591 = vmul.f32 %v1559, %v739
        %v1592 = vmul.f32 %v1560, %v744
        %v1593 = vmul.f32 %v1561, %v749
        %v1594 = vmul.f32 %v1562, %v754
        %v1595 = vmul.f32 %v1563, %v759
        %v1596 = vmul.f32 %v1564, %v764
        %v1597 = vmul.f32 %v1565, %v769
        %v1598 = vmul.f32 %v1566, %v774
        %v1599 = vmul.f32 %v1567, %v779
        %v1600 = vmul.f32 %v1568, %v784
        %v1601 = vadd.f32 %v1569, %v1570
        %v1602 = vadd.f32 %v1601, %v1571
        %v1603 = vadd.f32 %v1602, %v1572
        %v1604 = vadd.f32 %v1603, %v1573
        %v1605 = vadd.f32 %v1604, %v1574
        %v1606 = vadd.f32 %v1605, %v1575
        %v1607 = vadd.f32 %v1606, %v1576
        %v1608 = vadd.f32 %v1607, %v1577
        %v1609 = vadd.f32 %v1608, %v1578
        %v1610 = vadd.f32 %v1609, %v1579
        %v1611 = vadd.f32 %v1610, %v1580
        %v1612 = vadd.f32 %v1611, %v1581
        %v1613 = vadd.f32 %v1612, %v1582
        %v1614 = vadd.f32 %v1613, %v1583
        %v1615 = vadd.f32 %v1614, %v1584
        %v1616 = vadd.f32 %v1615, %v1585
        %v1617 = vadd.f32 %v1616, %v1586
        %v1618 = vadd.f32 %v1617, %v1587
        %v1619 = vadd.f32 %v1618, %v1588
        %v1620 = vadd.f32 %v1619, %v1589
        %v1621 = vadd.f32 %v1620, %v1590
        %v1622 = vadd.f32 %v1621, %v1591
        %v1623 = vadd.f32 %v1622, %v1592
        %v1624 = vadd.f32 %v1623, %v1593
        %v1625 = vadd.f32 %v1624, %v1594
        %v1626 = vadd.f32 %v1625, %v1595
        %v1627 = vadd.f32 %v1626, %v1596
        %v1628 = vadd.f32 %v1627, %v1597
        %v1629 = vadd.f32 %v1628, %v1598
        %v1630 = vadd.f32 %v1629, %v1599
        %v1631 = vadd.f32 %v1630, %v1600
        %v1632 = vrot.slane %v1631, 4
        %v1633 = vadd.f32 %v1631, %v1632
        %v1634 = vrot.slane %v1633, 2
        %v1635 = vadd.f32 %v1633, %v1634
        %v1636 = vrot.slane %v1635, 1
        %v1637 = vadd.f32 %v1635, %v1636
        %1638 = vset.pattern.permute.xlu0 4
        %1639 = vperm.xlu0 %1638, %v354
        %v1640 = vpop.permute.xlu0 %1639
        %1642 = vset.pattern.permute.xlu0 4
        %1643 = vperm.xlu0 %1642, %v355
        %v1644 = vpop.permute.xlu0 %1643
        %1646 = vset.pattern.permute.xlu0 4
        %1647 = vperm.xlu0 %1646, %v356
        %v1648 = vpop.permute.xlu0 %1647
        %1650 = vset.pattern.permute.xlu0 4
        %1651 = vperm.xlu0 %1650, %v357
        %v1652 = vpop.permute.xlu0 %1651
        %1654 = vset.pattern.permute.xlu0 4
        %1655 = vperm.xlu0 %1654, %v358
        %v1656 = vpop.permute.xlu0 %1655
        %1658 = vset.pattern.permute.xlu0 4
        %1659 = vperm.xlu0 %1658, %v359
        %v1660 = vpop.permute.xlu0 %1659
        %1662 = vset.pattern.permute.xlu0 4
        %1663 = vperm.xlu0 %1662, %v360
        %v1664 = vpop.permute.xlu0 %1663
        %1666 = vset.pattern.permute.xlu0 4
        %1667 = vperm.xlu0 %1666, %v361
        %v1668 = vpop.permute.xlu0 %1667
        %1670 = vset.pattern.permute.xlu0 4
        %1671 = vperm.xlu0 %1670, %v362
        %v1672 = vpop.permute.xlu0 %1671
        %1674 = vset.pattern.permute.xlu0 4
        %1675 = vperm.xlu0 %1674, %v363
        %v1676 = vpop.permute.xlu0 %1675
        %1678 = vset.pattern.permute.xlu0 4
        %1679 = vperm.xlu0 %1678, %v364
        %v1680 = vpop.permute.xlu0 %1679
        %1682 = vset.pattern.permute.xlu0 4
        %1683 = vperm.xlu0 %1682, %v365
        %v1684 = vpop.permute.xlu0 %1683
        %1686 = vset.pattern.permute.xlu0 4
        %1687 = vperm.xlu0 %1686, %v366
        %v1688 = vpop.permute.xlu0 %1687
        %1690 = vset.pattern.permute.xlu0 4
        %1691 = vperm.xlu0 %1690, %v367
        %v1692 = vpop.permute.xlu0 %1691
        %1694 = vset.pattern.permute.xlu0 4
        %1695 = vperm.xlu0 %1694, %v368
        %v1696 = vpop.permute.xlu0 %1695
        %1698 = vset.pattern.permute.xlu0 4
        %1699 = vperm.xlu0 %1698, %v369
        %v1700 = vpop.permute.xlu0 %1699
        %1702 = vset.pattern.permute.xlu0 4
        %1703 = vperm.xlu0 %1702, %v386
        %v1704 = vpop.permute.xlu0 %1703
        %1706 = vset.pattern.permute.xlu0 4
        %1707 = vperm.xlu0 %1706, %v387
        %v1708 = vpop.permute.xlu0 %1707
        %1710 = vset.pattern.permute.xlu0 4
        %1711 = vperm.xlu0 %1710, %v388
        %v1712 = vpop.permute.xlu0 %1711
        %1714 = vset.pattern.permute.xlu0 4
        %1715 = vperm.xlu0 %1714, %v389
        %v1716 = vpop.permute.xlu0 %1715
        %1718 = vset.pattern.permute.xlu0 4
        %1719 = vperm.xlu0 %1718, %v390
        %v1720 = vpop.permute.xlu0 %1719
        %1722 = vset.pattern.permute.xlu0 4
        %1723 = vperm.xlu0 %1722, %v391
        %v1724 = vpop.permute.xlu0 %1723
        %1726 = vset.pattern.permute.xlu0 4
        %1727 = vperm.xlu0 %1726, %v392
        %v1728 = vpop.permute.xlu0 %1727
        %1730 = vset.pattern.permute.xlu0 4
        %1731 = vperm.xlu0 %1730, %v393
        %v1732 = vpop.permute.xlu0 %1731
        %1734 = vset.pattern.permute.xlu0 4
        %1735 = vperm.xlu0 %1734, %v394
        %v1736 = vpop.permute.xlu0 %1735
        %1738 = vset.pattern.permute.xlu0 4
        %1739 = vperm.xlu0 %1738, %v395
        %v1740 = vpop.permute.xlu0 %1739
        %1742 = vset.pattern.permute.xlu0 4
        %1743 = vperm.xlu0 %1742, %v396
        %v1744 = vpop.permute.xlu0 %1743
        %1746 = vset.pattern.permute.xlu0 4
        %1747 = vperm.xlu0 %1746, %v397
        %v1748 = vpop.permute.xlu0 %1747
        %1750 = vset.pattern.permute.xlu0 4
        %1751 = vperm.xlu0 %1750, %v398
        %v1752 = vpop.permute.xlu0 %1751
        %1754 = vset.pattern.permute.xlu0 4
        %1755 = vperm.xlu0 %1754, %v399
        %v1756 = vpop.permute.xlu0 %1755
        %1758 = vset.pattern.permute.xlu0 4
        %1759 = vperm.xlu0 %1758, %v400
        %v1760 = vpop.permute.xlu0 %1759
        %1762 = vset.pattern.permute.xlu0 4
        %1763 = vperm.xlu0 %1762, %v401
        %v1764 = vpop.permute.xlu0 %1763
        %v1766 = vadd.f32 %v1640, %v298
        %v1767 = vadd.f32 %v1644, %v299
        %v1768 = vadd.f32 %v1648, %v300
        %v1769 = vadd.f32 %v1652, %v301
        %v1770 = vadd.f32 %v1656, %v302
        %v1771 = vadd.f32 %v1660, %v303
        %v1772 = vadd.f32 %v1664, %v304
        %v1773 = vadd.f32 %v1668, %v305
        %v1774 = vadd.f32 %v1672, %v306
        %v1775 = vadd.f32 %v1676, %v307
        %v1776 = vadd.f32 %v1680, %v308
        %v1777 = vadd.f32 %v1684, %v309
        %v1778 = vadd.f32 %v1688, %v310
        %v1779 = vadd.f32 %v1692, %v311
        %v1780 = vadd.f32 %v1696, %v312
        %v1781 = vadd.f32 %v1700, %v313
        %v1782 = vadd.f32 %v1704, %v314
        %v1783 = vadd.f32 %v1708, %v315
        %v1784 = vadd.f32 %v1712, %v316
        %v1785 = vadd.f32 %v1716, %v317
        %v1786 = vadd.f32 %v1720, %v318
        %v1787 = vadd.f32 %v1724, %v319
        %v1788 = vadd.f32 %v1728, %v320
        %v1789 = vadd.f32 %v1732, %v321
        %v1790 = vadd.f32 %v1736, %v322
        %v1791 = vadd.f32 %v1740, %v323
        %v1792 = vadd.f32 %v1744, %v324
        %v1793 = vadd.f32 %v1748, %v325
        %v1794 = vadd.f32 %v1752, %v326
        %v1795 = vadd.f32 %v1756, %v327
        %v1796 = vadd.f32 %v1760, %v328
        %v1797 = vadd.f32 %v1764, %v329
        %v1798 = vmax.f32 %v1766, 0.0
        %v1799 = vmax.f32 %v1767, 0.0
        %v1800 = vmax.f32 %v1768, 0.0
        %v1801 = vmax.f32 %v1769, 0.0
        %v1802 = vmax.f32 %v1770, 0.0
        %v1803 = vmax.f32 %v1771, 0.0
        %v1804 = vmax.f32 %v1772, 0.0
        %v1805 = vmax.f32 %v1773, 0.0
        %v1806 = vmax.f32 %v1774, 0.0
        %v1807 = vmax.f32 %v1775, 0.0
        %v1808 = vmax.f32 %v1776, 0.0
        %v1809 = vmax.f32 %v1777, 0.0
        %v1810 = vmax.f32 %v1778, 0.0
        %v1811 = vmax.f32 %v1779, 0.0
        %v1812 = vmax.f32 %v1780, 0.0
        %v1813 = vmax.f32 %v1781, 0.0
        %v1814 = vmax.f32 %v1782, 0.0
        %v1815 = vmax.f32 %v1783, 0.0
        %v1816 = vmax.f32 %v1784, 0.0
        %v1817 = vmax.f32 %v1785, 0.0
        %v1818 = vmax.f32 %v1786, 0.0
        %v1819 = vmax.f32 %v1787, 0.0
        %v1820 = vmax.f32 %v1788, 0.0
        %v1821 = vmax.f32 %v1789, 0.0
        %v1822 = vmax.f32 %v1790, 0.0
        %v1823 = vmax.f32 %v1791, 0.0
        %v1824 = vmax.f32 %v1792, 0.0
        %v1825 = vmax.f32 %v1793, 0.0
        %v1826 = vmax.f32 %v1794, 0.0
        %v1827 = vmax.f32 %v1795, 0.0
        %v1828 = vmax.f32 %v1796, 0.0
        %v1829 = vmax.f32 %v1797, 0.0
        %v1830 = vmul.f32 %v1798, %v629
        %v1831 = vmul.f32 %v1799, %v634
        %v1832 = vmul.f32 %v1800, %v639
        %v1833 = vmul.f32 %v1801, %v644
        %v1834 = vmul.f32 %v1802, %v649
        %v1835 = vmul.f32 %v1803, %v654
        %v1836 = vmul.f32 %v1804, %v659
        %v1837 = vmul.f32 %v1805, %v664
        %v1838 = vmul.f32 %v1806, %v669
        %v1839 = vmul.f32 %v1807, %v674
        %v1840 = vmul.f32 %v1808, %v679
        %v1841 = vmul.f32 %v1809, %v684
        %v1842 = vmul.f32 %v1810, %v689
        %v1843 = vmul.f32 %v1811, %v694
        %v1844 = vmul.f32 %v1812, %v699
        %v1845 = vmul.f32 %v1813, %v704
        %v1846 = vmul.f32 %v1814, %v709
        %v1847 = vmul.f32 %v1815, %v714
        %v1848 = vmul.f32 %v1816, %v719
        %v1849 = vmul.f32 %v1817, %v724
        %v1850 = vmul.f32 %v1818, %v729
        %v1851 = vmul.f32 %v1819, %v734
        %v1852 = vmul.f32 %v1820, %v739
        %v1853 = vmul.f32 %v1821, %v744
        %v1854 = vmul.f32 %v1822, %v749
        %v1855 = vmul.f32 %v1823, %v754
        %v1856 = vmul.f32 %v1824, %v759
        %v1857 = vmul.f32 %v1825, %v764
        %v1858 = vmul.f32 %v1826, %v769
        %v1859 = vmul.f32 %v1827, %v774
        %v1860 = vmul.f32 %v1828, %v779
        %v1861 = vmul.f32 %v1829, %v784
        %v1862 = vadd.f32 %v1830, %v1831
        %v1863 = vadd.f32 %v1862, %v1832
        %v1864 = vadd.f32 %v1863, %v1833
        %v1865 = vadd.f32 %v1864, %v1834
        %v1866 = vadd.f32 %v1865, %v1835
        %v1867 = vadd.f32 %v1866, %v1836
        %v1868 = vadd.f32 %v1867, %v1837
        %v1869 = vadd.f32 %v1868, %v1838
        %v1870 = vadd.f32 %v1869, %v1839
        %v1871 = vadd.f32 %v1870, %v1840
        %v1872 = vadd.f32 %v1871, %v1841
        %v1873 = vadd.f32 %v1872, %v1842
        %v1874 = vadd.f32 %v1873, %v1843
        %v1875 = vadd.f32 %v1874, %v1844
        %v1876 = vadd.f32 %v1875, %v1845
        %v1877 = vadd.f32 %v1876, %v1846
        %v1878 = vadd.f32 %v1877, %v1847
        %v1879 = vadd.f32 %v1878, %v1848
        %v1880 = vadd.f32 %v1879, %v1849
        %v1881 = vadd.f32 %v1880, %v1850
        %v1882 = vadd.f32 %v1881, %v1851
        %v1883 = vadd.f32 %v1882, %v1852
        %v1884 = vadd.f32 %v1883, %v1853
        %v1885 = vadd.f32 %v1884, %v1854
        %v1886 = vadd.f32 %v1885, %v1855
        %v1887 = vadd.f32 %v1886, %v1856
        %v1888 = vadd.f32 %v1887, %v1857
        %v1889 = vadd.f32 %v1888, %v1858
        %v1890 = vadd.f32 %v1889, %v1859
        %v1891 = vadd.f32 %v1890, %v1860
        %v1892 = vadd.f32 %v1891, %v1861
        %v1893 = vrot.slane %v1892, 4
        %v1894 = vadd.f32 %v1892, %v1893
        %v1895 = vrot.slane %v1894, 2
        %v1896 = vadd.f32 %v1894, %v1895
        %v1897 = vrot.slane %v1896, 1
        %v1898 = vadd.f32 %v1896, %v1897
        %1899 = vset.pattern.permute.xlu0 5
        %1900 = vperm.xlu0 %1899, %v354
        %v1901 = vpop.permute.xlu0 %1900
        %1903 = vset.pattern.permute.xlu0 5
        %1904 = vperm.xlu0 %1903, %v355
        %v1905 = vpop.permute.xlu0 %1904
        %1907 = vset.pattern.permute.xlu0 5
        %1908 = vperm.xlu0 %1907, %v356
        %v1909 = vpop.permute.xlu0 %1908
        %1911 = vset.pattern.permute.xlu0 5
        %1912 = vperm.xlu0 %1911, %v357
        %v1913 = vpop.permute.xlu0 %1912
        %1915 = vset.pattern.permute.xlu0 5
        %1916 = vperm.xlu0 %1915, %v358
        %v1917 = vpop.permute.xlu0 %1916
        %1919 = vset.pattern.permute.xlu0 5
        %1920 = vperm.xlu0 %1919, %v359
        %v1921 = vpop.permute.xlu0 %1920
        %1923 = vset.pattern.permute.xlu0 5
        %1924 = vperm.xlu0 %1923, %v360
        %v1925 = vpop.permute.xlu0 %1924
        %1927 = vset.pattern.permute.xlu0 5
        %1928 = vperm.xlu0 %1927, %v361
        %v1929 = vpop.permute.xlu0 %1928
        %1931 = vset.pattern.permute.xlu0 5
        %1932 = vperm.xlu0 %1931, %v362
        %v1933 = vpop.permute.xlu0 %1932
        %1935 = vset.pattern.permute.xlu0 5
        %1936 = vperm.xlu0 %1935, %v363
        %v1937 = vpop.permute.xlu0 %1936
        %1939 = vset.pattern.permute.xlu0 5
        %1940 = vperm.xlu0 %1939, %v364
        %v1941 = vpop.permute.xlu0 %1940
        %1943 = vset.pattern.permute.xlu0 5
        %1944 = vperm.xlu0 %1943, %v365
        %v1945 = vpop.permute.xlu0 %1944
        %1947 = vset.pattern.permute.xlu0 5
        %1948 = vperm.xlu0 %1947, %v366
        %v1949 = vpop.permute.xlu0 %1948
        %1951 = vset.pattern.permute.xlu0 5
        %1952 = vperm.xlu0 %1951, %v367
        %v1953 = vpop.permute.xlu0 %1952
        %1955 = vset.pattern.permute.xlu0 5
        %1956 = vperm.xlu0 %1955, %v368
        %v1957 = vpop.permute.xlu0 %1956
        %1959 = vset.pattern.permute.xlu0 5
        %1960 = vperm.xlu0 %1959, %v369
        %v1961 = vpop.permute.xlu0 %1960
        %1963 = vset.pattern.permute.xlu0 5
        %1964 = vperm.xlu0 %1963, %v386
        %v1965 = vpop.permute.xlu0 %1964
        %1967 = vset.pattern.permute.xlu0 5
        %1968 = vperm.xlu0 %1967, %v387
        %v1969 = vpop.permute.xlu0 %1968
        %1971 = vset.pattern.permute.xlu0 5
        %1972 = vperm.xlu0 %1971, %v388
        %v1973 = vpop.permute.xlu0 %1972
        %1975 = vset.pattern.permute.xlu0 5
        %1976 = vperm.xlu0 %1975, %v389
        %v1977 = vpop.permute.xlu0 %1976
        %1979 = vset.pattern.permute.xlu0 5
        %1980 = vperm.xlu0 %1979, %v390
        %v1981 = vpop.permute.xlu0 %1980
        %1983 = vset.pattern.permute.xlu0 5
        %1984 = vperm.xlu0 %1983, %v391
        %v1985 = vpop.permute.xlu0 %1984
        %1987 = vset.pattern.permute.xlu0 5
        %1988 = vperm.xlu0 %1987, %v392
        %v1989 = vpop.permute.xlu0 %1988
        %1991 = vset.pattern.permute.xlu0 5
        %1992 = vperm.xlu0 %1991, %v393
        %v1993 = vpop.permute.xlu0 %1992
        %1995 = vset.pattern.permute.xlu0 5
        %1996 = vperm.xlu0 %1995, %v394
        %v1997 = vpop.permute.xlu0 %1996
        %1999 = vset.pattern.permute.xlu0 5
        %2000 = vperm.xlu0 %1999, %v395
        %v2001 = vpop.permute.xlu0 %2000
        %2003 = vset.pattern.permute.xlu0 5
        %2004 = vperm.xlu0 %2003, %v396
        %v2005 = vpop.permute.xlu0 %2004
        %2007 = vset.pattern.permute.xlu0 5
        %2008 = vperm.xlu0 %2007, %v397
        %v2009 = vpop.permute.xlu0 %2008
        %2011 = vset.pattern.permute.xlu0 5
        %2012 = vperm.xlu0 %2011, %v398
        %v2013 = vpop.permute.xlu0 %2012
        %2015 = vset.pattern.permute.xlu0 5
        %2016 = vperm.xlu0 %2015, %v399
        %v2017 = vpop.permute.xlu0 %2016
        %2019 = vset.pattern.permute.xlu0 5
        %2020 = vperm.xlu0 %2019, %v400
        %v2021 = vpop.permute.xlu0 %2020
        %2023 = vset.pattern.permute.xlu0 5
        %2024 = vperm.xlu0 %2023, %v401
        %v2025 = vpop.permute.xlu0 %2024
        %v2027 = vadd.f32 %v1901, %v298
        %v2028 = vadd.f32 %v1905, %v299
        %v2029 = vadd.f32 %v1909, %v300
        %v2030 = vadd.f32 %v1913, %v301
        %v2031 = vadd.f32 %v1917, %v302
        %v2032 = vadd.f32 %v1921, %v303
        %v2033 = vadd.f32 %v1925, %v304
        %v2034 = vadd.f32 %v1929, %v305
        %v2035 = vadd.f32 %v1933, %v306
        %v2036 = vadd.f32 %v1937, %v307
        %v2037 = vadd.f32 %v1941, %v308
        %v2038 = vadd.f32 %v1945, %v309
        %v2039 = vadd.f32 %v1949, %v310
        %v2040 = vadd.f32 %v1953, %v311
        %v2041 = vadd.f32 %v1957, %v312
        %v2042 = vadd.f32 %v1961, %v313
        %v2043 = vadd.f32 %v1965, %v314
        %v2044 = vadd.f32 %v1969, %v315
        %v2045 = vadd.f32 %v1973, %v316
        %v2046 = vadd.f32 %v1977, %v317
        %v2047 = vadd.f32 %v1981, %v318
        %v2048 = vadd.f32 %v1985, %v319
        %v2049 = vadd.f32 %v1989, %v320
        %v2050 = vadd.f32 %v1993, %v321
        %v2051 = vadd.f32 %v1997, %v322
        %v2052 = vadd.f32 %v2001, %v323
        %v2053 = vadd.f32 %v2005, %v324
        %v2054 = vadd.f32 %v2009, %v325
        %v2055 = vadd.f32 %v2013, %v326
        %v2056 = vadd.f32 %v2017, %v327
        %v2057 = vadd.f32 %v2021, %v328
        %v2058 = vadd.f32 %v2025, %v329
        %v2059 = vmax.f32 %v2027, 0.0
        %v2060 = vmax.f32 %v2028, 0.0
        %v2061 = vmax.f32 %v2029, 0.0
        %v2062 = vmax.f32 %v2030, 0.0
        %v2063 = vmax.f32 %v2031, 0.0
        %v2064 = vmax.f32 %v2032, 0.0
        %v2065 = vmax.f32 %v2033, 0.0
        %v2066 = vmax.f32 %v2034, 0.0
        %v2067 = vmax.f32 %v2035, 0.0
        %v2068 = vmax.f32 %v2036, 0.0
        %v2069 = vmax.f32 %v2037, 0.0
        %v2070 = vmax.f32 %v2038, 0.0
        %v2071 = vmax.f32 %v2039, 0.0
        %v2072 = vmax.f32 %v2040, 0.0
        %v2073 = vmax.f32 %v2041, 0.0
        %v2074 = vmax.f32 %v2042, 0.0
        %v2075 = vmax.f32 %v2043, 0.0
        %v2076 = vmax.f32 %v2044, 0.0
        %v2077 = vmax.f32 %v2045, 0.0
        %v2078 = vmax.f32 %v2046, 0.0
        %v2079 = vmax.f32 %v2047, 0.0
        %v2080 = vmax.f32 %v2048, 0.0
        %v2081 = vmax.f32 %v2049, 0.0
        %v2082 = vmax.f32 %v2050, 0.0
        %v2083 = vmax.f32 %v2051, 0.0
        %v2084 = vmax.f32 %v2052, 0.0
        %v2085 = vmax.f32 %v2053, 0.0
        %v2086 = vmax.f32 %v2054, 0.0
        %v2087 = vmax.f32 %v2055, 0.0
        %v2088 = vmax.f32 %v2056, 0.0
        %v2089 = vmax.f32 %v2057, 0.0
        %v2090 = vmax.f32 %v2058, 0.0
        %v2091 = vmul.f32 %v2059, %v629
        %v2092 = vmul.f32 %v2060, %v634
        %v2093 = vmul.f32 %v2061, %v639
        %v2094 = vmul.f32 %v2062, %v644
        %v2095 = vmul.f32 %v2063, %v649
        %v2096 = vmul.f32 %v2064, %v654
        %v2097 = vmul.f32 %v2065, %v659
        %v2098 = vmul.f32 %v2066, %v664
        %v2099 = vmul.f32 %v2067, %v669
        %v2100 = vmul.f32 %v2068, %v674
        %v2101 = vmul.f32 %v2069, %v679
        %v2102 = vmul.f32 %v2070, %v684
        %v2103 = vmul.f32 %v2071, %v689
        %v2104 = vmul.f32 %v2072, %v694
        %v2105 = vmul.f32 %v2073, %v699
        %v2106 = vmul.f32 %v2074, %v704
        %v2107 = vmul.f32 %v2075, %v709
        %v2108 = vmul.f32 %v2076, %v714
        %v2109 = vmul.f32 %v2077, %v719
        %v2110 = vmul.f32 %v2078, %v724
        %v2111 = vmul.f32 %v2079, %v729
        %v2112 = vmul.f32 %v2080, %v734
        %v2113 = vmul.f32 %v2081, %v739
        %v2114 = vmul.f32 %v2082, %v744
        %v2115 = vmul.f32 %v2083, %v749
        %v2116 = vmul.f32 %v2084, %v754
        %v2117 = vmul.f32 %v2085, %v759
        %v2118 = vmul.f32 %v2086, %v764
        %v2119 = vmul.f32 %v2087, %v769
        %v2120 = vmul.f32 %v2088, %v774
        %v2121 = vmul.f32 %v2089, %v779
        %v2122 = vmul.f32 %v2090, %v784
        %v2123 = vadd.f32 %v2091, %v2092
        %v2124 = vadd.f32 %v2123, %v2093
        %v2125 = vadd.f32 %v2124, %v2094
        %v2126 = vadd.f32 %v2125, %v2095
        %v2127 = vadd.f32 %v2126, %v2096
        %v2128 = vadd.f32 %v2127, %v2097
        %v2129 = vadd.f32 %v2128, %v2098
        %v2130 = vadd.f32 %v2129, %v2099
        %v2131 = vadd.f32 %v2130, %v2100
        %v2132 = vadd.f32 %v2131, %v2101
        %v2133 = vadd.f32 %v2132, %v2102
        %v2134 = vadd.f32 %v2133, %v2103
        %v2135 = vadd.f32 %v2134, %v2104
        %v2136 = vadd.f32 %v2135, %v2105
        %v2137 = vadd.f32 %v2136, %v2106
        %v2138 = vadd.f32 %v2137, %v2107
        %v2139 = vadd.f32 %v2138, %v2108
        %v2140 = vadd.f32 %v2139, %v2109
        %v2141 = vadd.f32 %v2140, %v2110
        %v2142 = vadd.f32 %v2141, %v2111
        %v2143 = vadd.f32 %v2142, %v2112
        %v2144 = vadd.f32 %v2143, %v2113
        %v2145 = vadd.f32 %v2144, %v2114
        %v2146 = vadd.f32 %v2145, %v2115
        %v2147 = vadd.f32 %v2146, %v2116
        %v2148 = vadd.f32 %v2147, %v2117
        %v2149 = vadd.f32 %v2148, %v2118
        %v2150 = vadd.f32 %v2149, %v2119
        %v2151 = vadd.f32 %v2150, %v2120
        %v2152 = vadd.f32 %v2151, %v2121
        %v2153 = vadd.f32 %v2152, %v2122
        %v2154 = vrot.slane %v2153, 4
        %v2155 = vadd.f32 %v2153, %v2154
        %v2156 = vrot.slane %v2155, 2
        %v2157 = vadd.f32 %v2155, %v2156
        %v2158 = vrot.slane %v2157, 1
        %v2159 = vadd.f32 %v2157, %v2158
        %2160 = vset.pattern.permute.xlu0 6
        %2161 = vperm.xlu0 %2160, %v354
        %v2162 = vpop.permute.xlu0 %2161
        %2164 = vset.pattern.permute.xlu0 6
        %2165 = vperm.xlu0 %2164, %v355
        %v2166 = vpop.permute.xlu0 %2165
        %2168 = vset.pattern.permute.xlu0 6
        %2169 = vperm.xlu0 %2168, %v356
        %v2170 = vpop.permute.xlu0 %2169
        %2172 = vset.pattern.permute.xlu0 6
        %2173 = vperm.xlu0 %2172, %v357
        %v2174 = vpop.permute.xlu0 %2173
        %2176 = vset.pattern.permute.xlu0 6
        %2177 = vperm.xlu0 %2176, %v358
        %v2178 = vpop.permute.xlu0 %2177
        %2180 = vset.pattern.permute.xlu0 6
        %2181 = vperm.xlu0 %2180, %v359
        %v2182 = vpop.permute.xlu0 %2181
        %2184 = vset.pattern.permute.xlu0 6
        %2185 = vperm.xlu0 %2184, %v360
        %v2186 = vpop.permute.xlu0 %2185
        %2188 = vset.pattern.permute.xlu0 6
        %2189 = vperm.xlu0 %2188, %v361
        %v2190 = vpop.permute.xlu0 %2189
        %2192 = vset.pattern.permute.xlu0 6
        %2193 = vperm.xlu0 %2192, %v362
        %v2194 = vpop.permute.xlu0 %2193
        %2196 = vset.pattern.permute.xlu0 6
        %2197 = vperm.xlu0 %2196, %v363
        %v2198 = vpop.permute.xlu0 %2197
        %2200 = vset.pattern.permute.xlu0 6
        %2201 = vperm.xlu0 %2200, %v364
        %v2202 = vpop.permute.xlu0 %2201
        %2204 = vset.pattern.permute.xlu0 6
        %2205 = vperm.xlu0 %2204, %v365
        %v2206 = vpop.permute.xlu0 %2205
        %2208 = vset.pattern.permute.xlu0 6
        %2209 = vperm.xlu0 %2208, %v366
        %v2210 = vpop.permute.xlu0 %2209
        %2212 = vset.pattern.permute.xlu0 6
        %2213 = vperm.xlu0 %2212, %v367
        %v2214 = vpop.permute.xlu0 %2213
        %2216 = vset.pattern.permute.xlu0 6
        %2217 = vperm.xlu0 %2216, %v368
        %v2218 = vpop.permute.xlu0 %2217
        %2220 = vset.pattern.permute.xlu0 6
        %2221 = vperm.xlu0 %2220, %v369
        %v2222 = vpop.permute.xlu0 %2221
        %2224 = vset.pattern.permute.xlu0 6
        %2225 = vperm.xlu0 %2224, %v386
        %v2226 = vpop.permute.xlu0 %2225
        %2228 = vset.pattern.permute.xlu0 6
        %2229 = vperm.xlu0 %2228, %v387
        %v2230 = vpop.permute.xlu0 %2229
        %2232 = vset.pattern.permute.xlu0 6
        %2233 = vperm.xlu0 %2232, %v388
        %v2234 = vpop.permute.xlu0 %2233
        %2236 = vset.pattern.permute.xlu0 6
        %2237 = vperm.xlu0 %2236, %v389
        %v2238 = vpop.permute.xlu0 %2237
        %2240 = vset.pattern.permute.xlu0 6
        %2241 = vperm.xlu0 %2240, %v390
        %v2242 = vpop.permute.xlu0 %2241
        %2244 = vset.pattern.permute.xlu0 6
        %2245 = vperm.xlu0 %2244, %v391
        %v2246 = vpop.permute.xlu0 %2245
        %2248 = vset.pattern.permute.xlu0 6
        %2249 = vperm.xlu0 %2248, %v392
        %v2250 = vpop.permute.xlu0 %2249
        %2252 = vset.pattern.permute.xlu0 6
        %2253 = vperm.xlu0 %2252, %v393
        %v2254 = vpop.permute.xlu0 %2253
        %2256 = vset.pattern.permute.xlu0 6
        %2257 = vperm.xlu0 %2256, %v394
        %v2258 = vpop.permute.xlu0 %2257
        %2260 = vset.pattern.permute.xlu0 6
        %2261 = vperm.xlu0 %2260, %v395
        %v2262 = vpop.permute.xlu0 %2261
        %2264 = vset.pattern.permute.xlu0 6
        %2265 = vperm.xlu0 %2264, %v396
        %v2266 = vpop.permute.xlu0 %2265
        %2268 = vset.pattern.permute.xlu0 6
        %2269 = vperm.xlu0 %2268, %v397
        %v2270 = vpop.permute.xlu0 %2269
        %2272 = vset.pattern.permute.xlu0 6
        %2273 = vperm.xlu0 %2272, %v398
        %v2274 = vpop.permute.xlu0 %2273
        %2276 = vset.pattern.permute.xlu0 6
        %2277 = vperm.xlu0 %2276, %v399
        %v2278 = vpop.permute.xlu0 %2277
        %2280 = vset.pattern.permute.xlu0 6
        %2281 = vperm.xlu0 %2280, %v400
        %v2282 = vpop.permute.xlu0 %2281
        %2284 = vset.pattern.permute.xlu0 6
        %2285 = vperm.xlu0 %2284, %v401
        %v2286 = vpop.permute.xlu0 %2285
        %v2288 = vadd.f32 %v2162, %v298
        %v2289 = vadd.f32 %v2166, %v299
        %v2290 = vadd.f32 %v2170, %v300
        %v2291 = vadd.f32 %v2174, %v301
        %v2292 = vadd.f32 %v2178, %v302
        %v2293 = vadd.f32 %v2182, %v303
        %v2294 = vadd.f32 %v2186, %v304
        %v2295 = vadd.f32 %v2190, %v305
        %v2296 = vadd.f32 %v2194, %v306
        %v2297 = vadd.f32 %v2198, %v307
        %v2298 = vadd.f32 %v2202, %v308
        %v2299 = vadd.f32 %v2206, %v309
        %v2300 = vadd.f32 %v2210, %v310
        %v2301 = vadd.f32 %v2214, %v311
        %v2302 = vadd.f32 %v2218, %v312
        %v2303 = vadd.f32 %v2222, %v313
        %v2304 = vadd.f32 %v2226, %v314
        %v2305 = vadd.f32 %v2230, %v315
        %v2306 = vadd.f32 %v2234, %v316
        %v2307 = vadd.f32 %v2238, %v317
        %v2308 = vadd.f32 %v2242, %v318
        %v2309 = vadd.f32 %v2246, %v319
        %v2310 = vadd.f32 %v2250, %v320
        %v2311 = vadd.f32 %v2254, %v321
        %v2312 = vadd.f32 %v2258, %v322
        %v2313 = vadd.f32 %v2262, %v323
        %v2314 = vadd.f32 %v2266, %v324
        %v2315 = vadd.f32 %v2270, %v325
        %v2316 = vadd.f32 %v2274, %v326
        %v2317 = vadd.f32 %v2278, %v327
        %v2318 = vadd.f32 %v2282, %v328
        %v2319 = vadd.f32 %v2286, %v329
        %v2320 = vmax.f32 %v2288, 0.0
        %v2321 = vmax.f32 %v2289, 0.0
        %v2322 = vmax.f32 %v2290, 0.0
        %v2323 = vmax.f32 %v2291, 0.0
        %v2324 = vmax.f32 %v2292, 0.0
        %v2325 = vmax.f32 %v2293, 0.0
        %v2326 = vmax.f32 %v2294, 0.0
        %v2327 = vmax.f32 %v2295, 0.0
        %v2328 = vmax.f32 %v2296, 0.0
        %v2329 = vmax.f32 %v2297, 0.0
        %v2330 = vmax.f32 %v2298, 0.0
        %v2331 = vmax.f32 %v2299, 0.0
        %v2332 = vmax.f32 %v2300, 0.0
        %v2333 = vmax.f32 %v2301, 0.0
        %v2334 = vmax.f32 %v2302, 0.0
        %v2335 = vmax.f32 %v2303, 0.0
        %v2336 = vmax.f32 %v2304, 0.0
        %v2337 = vmax.f32 %v2305, 0.0
        %v2338 = vmax.f32 %v2306, 0.0
        %v2339 = vmax.f32 %v2307, 0.0
        %v2340 = vmax.f32 %v2308, 0.0
        %v2341 = vmax.f32 %v2309, 0.0
        %v2342 = vmax.f32 %v2310, 0.0
        %v2343 = vmax.f32 %v2311, 0.0
        %v2344 = vmax.f32 %v2312, 0.0
        %v2345 = vmax.f32 %v2313, 0.0
        %v2346 = vmax.f32 %v2314, 0.0
        %v2347 = vmax.f32 %v2315, 0.0
        %v2348 = vmax.f32 %v2316, 0.0
        %v2349 = vmax.f32 %v2317, 0.0
        %v2350 = vmax.f32 %v2318, 0.0
        %v2351 = vmax.f32 %v2319, 0.0
        %v2352 = vmul.f32 %v2320, %v629
        %v2353 = vmul.f32 %v2321, %v634
        %v2354 = vmul.f32 %v2322, %v639
        %v2355 = vmul.f32 %v2323, %v644
        %v2356 = vmul.f32 %v2324, %v649
        %v2357 = vmul.f32 %v2325, %v654
        %v2358 = vmul.f32 %v2326, %v659
        %v2359 = vmul.f32 %v2327, %v664
        %v2360 = vmul.f32 %v2328, %v669
        %v2361 = vmul.f32 %v2329, %v674
        %v2362 = vmul.f32 %v2330, %v679
        %v2363 = vmul.f32 %v2331, %v684
        %v2364 = vmul.f32 %v2332, %v689
        %v2365 = vmul.f32 %v2333, %v694
        %v2366 = vmul.f32 %v2334, %v699
        %v2367 = vmul.f32 %v2335, %v704
        %v2368 = vmul.f32 %v2336, %v709
        %v2369 = vmul.f32 %v2337, %v714
        %v2370 = vmul.f32 %v2338, %v719
        %v2371 = vmul.f32 %v2339, %v724
        %v2372 = vmul.f32 %v2340, %v729
        %v2373 = vmul.f32 %v2341, %v734
        %v2374 = vmul.f32 %v2342, %v739
        %v2375 = vmul.f32 %v2343, %v744
        %v2376 = vmul.f32 %v2344, %v749
        %v2377 = vmul.f32 %v2345, %v754
        %v2378 = vmul.f32 %v2346, %v759
        %v2379 = vmul.f32 %v2347, %v764
        %v2380 = vmul.f32 %v2348, %v769
        %v2381 = vmul.f32 %v2349, %v774
        %v2382 = vmul.f32 %v2350, %v779
        %v2383 = vmul.f32 %v2351, %v784
        %v2384 = vadd.f32 %v2352, %v2353
        %v2385 = vadd.f32 %v2384, %v2354
        %v2386 = vadd.f32 %v2385, %v2355
        %v2387 = vadd.f32 %v2386, %v2356
        %v2388 = vadd.f32 %v2387, %v2357
        %v2389 = vadd.f32 %v2388, %v2358
        %v2390 = vadd.f32 %v2389, %v2359
        %v2391 = vadd.f32 %v2390, %v2360
        %v2392 = vadd.f32 %v2391, %v2361
        %v2393 = vadd.f32 %v2392, %v2362
        %v2394 = vadd.f32 %v2393, %v2363
        %v2395 = vadd.f32 %v2394, %v2364
        %v2396 = vadd.f32 %v2395, %v2365
        %v2397 = vadd.f32 %v2396, %v2366
        %v2398 = vadd.f32 %v2397, %v2367
        %v2399 = vadd.f32 %v2398, %v2368
        %v2400 = vadd.f32 %v2399, %v2369
        %v2401 = vadd.f32 %v2400, %v2370
        %v2402 = vadd.f32 %v2401, %v2371
        %v2403 = vadd.f32 %v2402, %v2372
        %v2404 = vadd.f32 %v2403, %v2373
        %v2405 = vadd.f32 %v2404, %v2374
        %v2406 = vadd.f32 %v2405, %v2375
        %v2407 = vadd.f32 %v2406, %v2376
        %v2408 = vadd.f32 %v2407, %v2377
        %v2409 = vadd.f32 %v2408, %v2378
        %v2410 = vadd.f32 %v2409, %v2379
        %v2411 = vadd.f32 %v2410, %v2380
        %v2412 = vadd.f32 %v2411, %v2381
        %v2413 = vadd.f32 %v2412, %v2382
        %v2414 = vadd.f32 %v2413, %v2383
        %v2415 = vrot.slane %v2414, 4
        %v2416 = vadd.f32 %v2414, %v2415
        %v2417 = vrot.slane %v2416, 2
        %v2418 = vadd.f32 %v2416, %v2417
        %v2419 = vrot.slane %v2418, 1
        %v2420 = vadd.f32 %v2418, %v2419
        %2421 = vset.pattern.permute.xlu0 7
        %2422 = vperm.xlu0 %2421, %v354
        %v2423 = vpop.permute.xlu0 %2422
        %2425 = vset.pattern.permute.xlu0 7
        %2426 = vperm.xlu0 %2425, %v355
        %v2427 = vpop.permute.xlu0 %2426
        %2429 = vset.pattern.permute.xlu0 7
        %2430 = vperm.xlu0 %2429, %v356
        %v2431 = vpop.permute.xlu0 %2430
        %2433 = vset.pattern.permute.xlu0 7
        %2434 = vperm.xlu0 %2433, %v357
        %v2435 = vpop.permute.xlu0 %2434
        %2437 = vset.pattern.permute.xlu0 7
        %2438 = vperm.xlu0 %2437, %v358
        %v2439 = vpop.permute.xlu0 %2438
        %2441 = vset.pattern.permute.xlu0 7
        %2442 = vperm.xlu0 %2441, %v359
        %v2443 = vpop.permute.xlu0 %2442
        %2445 = vset.pattern.permute.xlu0 7
        %2446 = vperm.xlu0 %2445, %v360
        %v2447 = vpop.permute.xlu0 %2446
        %2449 = vset.pattern.permute.xlu0 7
        %2450 = vperm.xlu0 %2449, %v361
        %v2451 = vpop.permute.xlu0 %2450
        %2453 = vset.pattern.permute.xlu0 7
        %2454 = vperm.xlu0 %2453, %v362
        %v2455 = vpop.permute.xlu0 %2454
        %2457 = vset.pattern.permute.xlu0 7
        %2458 = vperm.xlu0 %2457, %v363
        %v2459 = vpop.permute.xlu0 %2458
        %2461 = vset.pattern.permute.xlu0 7
        %2462 = vperm.xlu0 %2461, %v364
        %v2463 = vpop.permute.xlu0 %2462
        %2465 = vset.pattern.permute.xlu0 7
        %2466 = vperm.xlu0 %2465, %v365
        %v2467 = vpop.permute.xlu0 %2466
        %2469 = vset.pattern.permute.xlu0 7
        %2470 = vperm.xlu0 %2469, %v366
        %v2471 = vpop.permute.xlu0 %2470
        %2473 = vset.pattern.permute.xlu0 7
        %2474 = vperm.xlu0 %2473, %v367
        %v2475 = vpop.permute.xlu0 %2474
        %2477 = vset.pattern.permute.xlu0 7
        %2478 = vperm.xlu0 %2477, %v368
        %v2479 = vpop.permute.xlu0 %2478
        %2481 = vset.pattern.permute.xlu0 7
        %2482 = vperm.xlu0 %2481, %v369
        %v2483 = vpop.permute.xlu0 %2482
        %2485 = vset.pattern.permute.xlu0 7
        %2486 = vperm.xlu0 %2485, %v386
        %v2487 = vpop.permute.xlu0 %2486
        %2489 = vset.pattern.permute.xlu0 7
        %2490 = vperm.xlu0 %2489, %v387
        %v2491 = vpop.permute.xlu0 %2490
        %2493 = vset.pattern.permute.xlu0 7
        %2494 = vperm.xlu0 %2493, %v388
        %v2495 = vpop.permute.xlu0 %2494
        %2497 = vset.pattern.permute.xlu0 7
        %2498 = vperm.xlu0 %2497, %v389
        %v2499 = vpop.permute.xlu0 %2498
        %2501 = vset.pattern.permute.xlu0 7
        %2502 = vperm.xlu0 %2501, %v390
        %v2503 = vpop.permute.xlu0 %2502
        %2505 = vset.pattern.permute.xlu0 7
        %2506 = vperm.xlu0 %2505, %v391
        %v2507 = vpop.permute.xlu0 %2506
        %2509 = vset.pattern.permute.xlu0 7
        %2510 = vperm.xlu0 %2509, %v392
        %v2511 = vpop.permute.xlu0 %2510
        %2513 = vset.pattern.permute.xlu0 7
        %2514 = vperm.xlu0 %2513, %v393
        %v2515 = vpop.permute.xlu0 %2514
        %2517 = vset.pattern.permute.xlu0 7
        %2518 = vperm.xlu0 %2517, %v394
        %v2519 = vpop.permute.xlu0 %2518
        %2521 = vset.pattern.permute.xlu0 7
        %2522 = vperm.xlu0 %2521, %v395
        %v2523 = vpop.permute.xlu0 %2522
        %2525 = vset.pattern.permute.xlu0 7
        %2526 = vperm.xlu0 %2525, %v396
        %v2527 = vpop.permute.xlu0 %2526
        %2529 = vset.pattern.permute.xlu0 7
        %2530 = vperm.xlu0 %2529, %v397
        %v2531 = vpop.permute.xlu0 %2530
        %2533 = vset.pattern.permute.xlu0 7
        %2534 = vperm.xlu0 %2533, %v398
        %v2535 = vpop.permute.xlu0 %2534
        %2537 = vset.pattern.permute.xlu0 7
        %2538 = vperm.xlu0 %2537, %v399
        %v2539 = vpop.permute.xlu0 %2538
        %2541 = vset.pattern.permute.xlu0 7
        %2542 = vperm.xlu0 %2541, %v400
        %v2543 = vpop.permute.xlu0 %2542
        %2545 = vset.pattern.permute.xlu0 7
        %2546 = vperm.xlu0 %2545, %v401
        %v2547 = vpop.permute.xlu0 %2546
        %v2549 = vadd.f32 %v2423, %v298
        %v2550 = vadd.f32 %v2427, %v299
        %v2551 = vadd.f32 %v2431, %v300
        %v2552 = vadd.f32 %v2435, %v301
        %v2553 = vadd.f32 %v2439, %v302
        %v2554 = vadd.f32 %v2443, %v303
        %v2555 = vadd.f32 %v2447, %v304
        %v2556 = vadd.f32 %v2451, %v305
        %v2557 = vadd.f32 %v2455, %v306
        %v2558 = vadd.f32 %v2459, %v307
        %v2559 = vadd.f32 %v2463, %v308
        %v2560 = vadd.f32 %v2467, %v309
        %v2561 = vadd.f32 %v2471, %v310
        %v2562 = vadd.f32 %v2475, %v311
        %v2563 = vadd.f32 %v2479, %v312
        %v2564 = vadd.f32 %v2483, %v313
        %v2565 = vadd.f32 %v2487, %v314
        %v2566 = vadd.f32 %v2491, %v315
        %v2567 = vadd.f32 %v2495, %v316
        %v2568 = vadd.f32 %v2499, %v317
        %v2569 = vadd.f32 %v2503, %v318
        %v2570 = vadd.f32 %v2507, %v319
        %v2571 = vadd.f32 %v2511, %v320
        %v2572 = vadd.f32 %v2515, %v321
        %v2573 = vadd.f32 %v2519, %v322
        %v2574 = vadd.f32 %v2523, %v323
        %v2575 = vadd.f32 %v2527, %v324
        %v2576 = vadd.f32 %v2531, %v325
        %v2577 = vadd.f32 %v2535, %v326
        %v2578 = vadd.f32 %v2539, %v327
        %v2579 = vadd.f32 %v2543, %v328
        %v2580 = vadd.f32 %v2547, %v329
        %v2581 = vmax.f32 %v2549, 0.0
        %v2582 = vmax.f32 %v2550, 0.0
        %v2583 = vmax.f32 %v2551, 0.0
        %v2584 = vmax.f32 %v2552, 0.0
        %v2585 = vmax.f32 %v2553, 0.0
        %v2586 = vmax.f32 %v2554, 0.0
        %v2587 = vmax.f32 %v2555, 0.0
        %v2588 = vmax.f32 %v2556, 0.0
        %v2589 = vmax.f32 %v2557, 0.0
        %v2590 = vmax.f32 %v2558, 0.0
        %v2591 = vmax.f32 %v2559, 0.0
        %v2592 = vmax.f32 %v2560, 0.0
        %v2593 = vmax.f32 %v2561, 0.0
        %v2594 = vmax.f32 %v2562, 0.0
        %v2595 = vmax.f32 %v2563, 0.0
        %v2596 = vmax.f32 %v2564, 0.0
        %v2597 = vmax.f32 %v2565, 0.0
        %v2598 = vmax.f32 %v2566, 0.0
        %v2599 = vmax.f32 %v2567, 0.0
        %v2600 = vmax.f32 %v2568, 0.0
        %v2601 = vmax.f32 %v2569, 0.0
        %v2602 = vmax.f32 %v2570, 0.0
        %v2603 = vmax.f32 %v2571, 0.0
        %v2604 = vmax.f32 %v2572, 0.0
        %v2605 = vmax.f32 %v2573, 0.0
        %v2606 = vmax.f32 %v2574, 0.0
        %v2607 = vmax.f32 %v2575, 0.0
        %v2608 = vmax.f32 %v2576, 0.0
        %v2609 = vmax.f32 %v2577, 0.0
        %v2610 = vmax.f32 %v2578, 0.0
        %v2611 = vmax.f32 %v2579, 0.0
        %v2612 = vmax.f32 %v2580, 0.0
        %v2613 = vmul.f32 %v2581, %v629
        %v2614 = vmul.f32 %v2582, %v634
        %v2615 = vmul.f32 %v2583, %v639
        %v2616 = vmul.f32 %v2584, %v644
        %v2617 = vmul.f32 %v2585, %v649
        %v2618 = vmul.f32 %v2586, %v654
        %v2619 = vmul.f32 %v2587, %v659
        %v2620 = vmul.f32 %v2588, %v664
        %v2621 = vmul.f32 %v2589, %v669
        %v2622 = vmul.f32 %v2590, %v674
        %v2623 = vmul.f32 %v2591, %v679
        %v2624 = vmul.f32 %v2592, %v684
        %v2625 = vmul.f32 %v2593, %v689
        %v2626 = vmul.f32 %v2594, %v694
        %v2627 = vmul.f32 %v2595, %v699
        %v2628 = vmul.f32 %v2596, %v704
        %v2629 = vmul.f32 %v2597, %v709
        %v2630 = vmul.f32 %v2598, %v714
        %v2631 = vmul.f32 %v2599, %v719
        %v2632 = vmul.f32 %v2600, %v724
        %v2633 = vmul.f32 %v2601, %v729
        %v2634 = vmul.f32 %v2602, %v734
        %v2635 = vmul.f32 %v2603, %v739
        %v2636 = vmul.f32 %v2604, %v744
        %v2637 = vmul.f32 %v2605, %v749
        %v2638 = vmul.f32 %v2606, %v754
        %v2639 = vmul.f32 %v2607, %v759
        %v2640 = vmul.f32 %v2608, %v764
        %v2641 = vmul.f32 %v2609, %v769
        %v2642 = vmul.f32 %v2610, %v774
        %v2643 = vmul.f32 %v2611, %v779
        %v2644 = vmul.f32 %v2612, %v784
        %v2645 = vadd.f32 %v2613, %v2614
        %v2646 = vadd.f32 %v2645, %v2615
        %v2647 = vadd.f32 %v2646, %v2616
        %v2648 = vadd.f32 %v2647, %v2617
        %v2649 = vadd.f32 %v2648, %v2618
        %v2650 = vadd.f32 %v2649, %v2619
        %v2651 = vadd.f32 %v2650, %v2620
        %v2652 = vadd.f32 %v2651, %v2621
        %v2653 = vadd.f32 %v2652, %v2622
        %v2654 = vadd.f32 %v2653, %v2623
        %v2655 = vadd.f32 %v2654, %v2624
        %v2656 = vadd.f32 %v2655, %v2625
        %v2657 = vadd.f32 %v2656, %v2626
        %v2658 = vadd.f32 %v2657, %v2627
        %v2659 = vadd.f32 %v2658, %v2628
        %v2660 = vadd.f32 %v2659, %v2629
        %v2661 = vadd.f32 %v2660, %v2630
        %v2662 = vadd.f32 %v2661, %v2631
        %v2663 = vadd.f32 %v2662, %v2632
        %v2664 = vadd.f32 %v2663, %v2633
        %v2665 = vadd.f32 %v2664, %v2634
        %v2666 = vadd.f32 %v2665, %v2635
        %v2667 = vadd.f32 %v2666, %v2636
        %v2668 = vadd.f32 %v2667, %v2637
        %v2669 = vadd.f32 %v2668, %v2638
        %v2670 = vadd.f32 %v2669, %v2639
        %v2671 = vadd.f32 %v2670, %v2640
        %v2672 = vadd.f32 %v2671, %v2641
        %v2673 = vadd.f32 %v2672, %v2642
        %v2674 = vadd.f32 %v2673, %v2643
        %v2675 = vadd.f32 %v2674, %v2644
        %v2676 = vrot.slane %v2675, 4
        %v2677 = vadd.f32 %v2675, %v2676
        %v2678 = vrot.slane %v2677, 2
        %v2679 = vadd.f32 %v2677, %v2678
        %v2680 = vrot.slane %v2679, 1
        %v2681 = vadd.f32 %v2679, %v2680
        %vm2682 = vcmask 1040384
        %v2683 = vsel %vm2682, %v854, %v1115
        %vm2684 = vcmask 1041408
        %v2685 = vsel %vm2684, %v2683, %v1376
        %vm2686 = vcmask 1042432
        %v2687 = vsel %vm2686, %v2685, %v1637
        %vm2688 = vcmask 1043456
        %v2689 = vsel %vm2688, %v2687, %v1898
        %vm2690 = vcmask 1044480
        %v2691 = vsel %vm2690, %v2689, %v2159
        %vm2692 = vcmask 1045504
        %v2693 = vsel %vm2692, %v2691, %v2420
        %vm2694 = vcmask 1046528
        %v2695 = vsel %vm2694, %v2693, %v2681
        %v2696 = vstv %s265
        %v2697 = vadd.f32 %v2695, %v2696
        %s2698 = scalar_lea.vmem [#allocation2], %s232
        %2699 = vst [vmem:[%s2698] sm:$0xff] %v2697
      $region41: #{forward.3} parent=35 // loop_footer
        %s231 = sadd.s32 1, %s227
      $region42: #{forward.3} parent=35 // loop_footer_branch
        %226 = sbr.rel target = $region38
      $region43: #{forward.3} parent=35 // loop_exit
        _
      %p2700 = scmp.eq.s32.totalorder %s224, %s225
      // Predicated region
      $region44: #{forward.3} parent=35 // pred_check
        %p2701 = pneg %p2700
      $region45: #{forward.3} parent=35 // pred_check_branch
        %2703 = sbr.rel (%p2701) target = $region47
      $region46: #{forward.3} parent=35 // pred_region
        %v2704 = vld [vmem:[#allocation2] sm:$0xff]
        %v2705 = vld [vmem:[#allocation2 + $0x8] sm:$0xff]
        %v2706 = vld [vmem:[#allocation2 + $0x10] sm:$0xff]
        %v2707 = vld [vmem:[#allocation2 + $0x18] sm:$0xff]
        %v2708 = vld [vmem:[#allocation2 + $0x20] sm:$0xff]
        %v2709 = vld [vmem:[#allocation2 + $0x28] sm:$0xff]
        %v2710 = vld [vmem:[#allocation2 + $0x30] sm:$0xff]
        %v2711 = vld [vmem:[#allocation2 + $0x38] sm:$0xff]
        %v2712 = vld [vmem:[#allocation2 + $0x40] sm:$0xff]
        %v2713 = vld [vmem:[#allocation2 + $0x48] sm:$0xff]
        %v2714 = vld [vmem:[#allocation2 + $0x50] sm:$0xff]
        %v2715 = vld [vmem:[#allocation2 + $0x58] sm:$0xff]
        %v2716 = vld [vmem:[#allocation2 + $0x60] sm:$0xff]
        %v2717 = vld [vmem:[#allocation2 + $0x68] sm:$0xff]
        %v2718 = vld [vmem:[#allocation2 + $0x70] sm:$0xff]
        %v2719 = vld [vmem:[#allocation2 + $0x78] sm:$0xff]
        %v2720 = vlaneseq
        %v2721 = vshrl.u32 %v2720, 7
        %v2722 = vadd.s32 %v2721, 8
        %v2723 = vadd.s32 %v2721, 16
        %v2724 = vadd.s32 %v2721, 24
        %v2725 = vadd.s32 %v2721, 32
        %v2726 = vadd.s32 %v2721, 40
        %v2727 = vadd.s32 %v2721, 48
        %v2728 = vadd.s32 %v2721, 56
        %v2729 = vadd.s32 %v2721, 64
        %v2730 = vadd.s32 %v2721, 72
        %v2731 = vadd.s32 %v2721, 80
        %v2732 = vadd.s32 %v2721, 88
        %v2733 = vadd.s32 %v2721, 96
        %v2734 = vadd.s32 %v2721, 104
        %v2735 = vadd.s32 %v2721, 112
        %v2736 = vadd.s32 %v2721, 120
        %v2737 = vlaneseq
        %v2738 = vand.u32 %v2737, 127
        %vm2739 = vcmp.ge.s32.totalorder %v2738, %v2721
        %vm2740 = vcmp.ge.s32.totalorder %v2738, %v2722
        %vm2741 = vcmp.ge.s32.totalorder %v2738, %v2723
        %vm2742 = vcmp.ge.s32.totalorder %v2738, %v2724
        %vm2743 = vcmp.ge.s32.totalorder %v2738, %v2725
        %vm2744 = vcmp.ge.s32.totalorder %v2738, %v2726
        %vm2745 = vcmp.ge.s32.totalorder %v2738, %v2727
        %vm2746 = vcmp.ge.s32.totalorder %v2738, %v2728
        %vm2747 = vcmp.ge.s32.totalorder %v2738, %v2729
        %vm2748 = vcmp.ge.s32.totalorder %v2738, %v2730
        %vm2749 = vcmp.ge.s32.totalorder %v2738, %v2731
        %vm2750 = vcmp.ge.s32.totalorder %v2738, %v2732
        %vm2751 = vcmp.ge.s32.totalorder %v2738, %v2733
        %vm2752 = vcmp.ge.s32.totalorder %v2738, %v2734
        %vm2753 = vcmp.ge.s32.totalorder %v2738, %v2735
        %vm2754 = vcmp.ge.s32.totalorder %v2738, %v2736
        %v2755 = vsel %vm2739, %v2704, 0.0
        %v2756 = vsel %vm2740, %v2705, 0.0
        %v2757 = vsel %vm2741, %v2706, 0.0
        %v2758 = vsel %vm2742, %v2707, 0.0
        %v2759 = vsel %vm2743, %v2708, 0.0
        %v2760 = vsel %vm2744, %v2709, 0.0
        %v2761 = vsel %vm2745, %v2710, 0.0
        %v2762 = vsel %vm2746, %v2711, 0.0
        %v2763 = vsel %vm2747, %v2712, 0.0
        %v2764 = vsel %vm2748, %v2713, 0.0
        %v2765 = vsel %vm2749, %v2714, 0.0
        %v2766 = vsel %vm2750, %v2715, 0.0
        %v2767 = vsel %vm2751, %v2716, 0.0
        %v2768 = vsel %vm2752, %v2717, 0.0
        %v2769 = vsel %vm2753, %v2718, 0.0
        %v2770 = vsel %vm2754, %v2719, 0.0
        %vm2771 = vcmp.gt.s32.totalorder %v2738, %v2721
        %vm2772 = vcmp.gt.s32.totalorder %v2738, %v2722
        %vm2773 = vcmp.gt.s32.totalorder %v2738, %v2723
        %vm2774 = vcmp.gt.s32.totalorder %v2738, %v2724
        %vm2775 = vcmp.gt.s32.totalorder %v2738, %v2725
        %vm2776 = vcmp.gt.s32.totalorder %v2738, %v2726
        %vm2777 = vcmp.gt.s32.totalorder %v2738, %v2727
        %vm2778 = vcmp.gt.s32.totalorder %v2738, %v2728
        %vm2779 = vcmp.gt.s32.totalorder %v2738, %v2729
        %vm2780 = vcmp.gt.s32.totalorder %v2738, %v2730
        %vm2781 = vcmp.gt.s32.totalorder %v2738, %v2731
        %vm2782 = vcmp.gt.s32.totalorder %v2738, %v2732
        %vm2783 = vcmp.gt.s32.totalorder %v2738, %v2733
        %vm2784 = vcmp.gt.s32.totalorder %v2738, %v2734
        %vm2785 = vcmp.gt.s32.totalorder %v2738, %v2735
        %vm2786 = vcmp.gt.s32.totalorder %v2738, %v2736
        %v2787 = vsel %vm2771, %v2704, 0.0
        %v2788 = vsel %vm2772, %v2705, 0.0
        %v2789 = vsel %vm2773, %v2706, 0.0
        %v2790 = vsel %vm2774, %v2707, 0.0
        %v2791 = vsel %vm2775, %v2708, 0.0
        %v2792 = vsel %vm2776, %v2709, 0.0
        %v2793 = vsel %vm2777, %v2710, 0.0
        %v2794 = vsel %vm2778, %v2711, 0.0
        %v2795 = vsel %vm2779, %v2712, 0.0
        %v2796 = vsel %vm2780, %v2713, 0.0
        %v2797 = vsel %vm2781, %v2714, 0.0
        %v2798 = vsel %vm2782, %v2715, 0.0
        %v2799 = vsel %vm2783, %v2716, 0.0
        %v2800 = vsel %vm2784, %v2717, 0.0
        %v2801 = vsel %vm2785, %v2718, 0.0
        %v2802 = vsel %vm2786, %v2719, 0.0
        %2803 = vxpose.xlu0.b32.start [1/16] %v2787, 128
        %2804 = vxpose.xlu0.b32.cont [2/16] %v2788, 128
        %2805 = vxpose.xlu0.b32.cont [3/16] %v2789, 128
        %2806 = vxpose.xlu0.b32.cont [4/16] %v2790, 128
        %2807 = vxpose.xlu0.b32.cont [5/16] %v2791, 128
        %2808 = vxpose.xlu0.b32.cont [6/16] %v2792, 128
        %2809 = vxpose.xlu0.b32.cont [7/16] %v2793, 128
        %2810 = vxpose.xlu0.b32.cont [8/16] %v2794, 128
        %2811 = vxpose.xlu0.b32.cont [9/16] %v2795, 128
        %2812 = vxpose.xlu0.b32.cont [10/16] %v2796, 128
        %2813 = vxpose.xlu0.b32.cont [11/16] %v2797, 128
        %2814 = vxpose.xlu0.b32.cont [12/16] %v2798, 128
        %2815 = vxpose.xlu0.b32.cont [13/16] %v2799, 128
        %2816 = vxpose.xlu0.b32.cont [14/16] %v2800, 128
        %2817 = vxpose.xlu0.b32.cont [15/16] %v2801, 128
        %2818 = vxpose.xlu0.b32.end [16/16] %v2802, 128
        %v2819 = vpop.trf.xlu0
        %v2820 = vpop.trf.xlu0
        %v2821 = vpop.trf.xlu0
        %v2822 = vpop.trf.xlu0
        %v2823 = vpop.trf.xlu0
        %v2824 = vpop.trf.xlu0
        %v2825 = vpop.trf.xlu0
        %v2826 = vpop.trf.xlu0
        %v2827 = vpop.trf.xlu0
        %v2828 = vpop.trf.xlu0
        %v2829 = vpop.trf.xlu0
        %v2830 = vpop.trf.xlu0
        %v2831 = vpop.trf.xlu0
        %v2832 = vpop.trf.xlu0
        %v2833 = vpop.trf.xlu0
        %v2834 = vpop.trf.xlu0
        %v2835 = vadd.f32 %v2755, %v2819
        %v2836 = vadd.f32 %v2756, %v2820
        %v2837 = vadd.f32 %v2757, %v2821
        %v2838 = vadd.f32 %v2758, %v2822
        %v2839 = vadd.f32 %v2759, %v2823
        %v2840 = vadd.f32 %v2760, %v2824
        %v2841 = vadd.f32 %v2761, %v2825
        %v2842 = vadd.f32 %v2762, %v2826
        %v2843 = vadd.f32 %v2763, %v2827
        %v2844 = vadd.f32 %v2764, %v2828
        %v2845 = vadd.f32 %v2765, %v2829
        %v2846 = vadd.f32 %v2766, %v2830
        %v2847 = vadd.f32 %v2767, %v2831
        %v2848 = vadd.f32 %v2768, %v2832
        %v2849 = vadd.f32 %v2769, %v2833
        %v2850 = vadd.f32 %v2770, %v2834
        %2851 = vst [vmem:[#allocation2] sm:$0xff] %v2835
        %2852 = vst [vmem:[#allocation2 + $0x8] sm:$0xff] %v2836
        %2853 = vst [vmem:[#allocation2 + $0x10] sm:$0xff] %v2837
        %2854 = vst [vmem:[#allocation2 + $0x18] sm:$0xff] %v2838
        %2855 = vst [vmem:[#allocation2 + $0x20] sm:$0xff] %v2839
        %2856 = vst [vmem:[#allocation2 + $0x28] sm:$0xff] %v2840
        %2857 = vst [vmem:[#allocation2 + $0x30] sm:$0xff] %v2841
        %2858 = vst [vmem:[#allocation2 + $0x38] sm:$0xff] %v2842
        %2859 = vst [vmem:[#allocation2 + $0x40] sm:$0xff] %v2843
        %2860 = vst [vmem:[#allocation2 + $0x48] sm:$0xff] %v2844
        %2861 = vst [vmem:[#allocation2 + $0x50] sm:$0xff] %v2845
        %2862 = vst [vmem:[#allocation2 + $0x58] sm:$0xff] %v2846
        %2863 = vst [vmem:[#allocation2 + $0x60] sm:$0xff] %v2847
        %2864 = vst [vmem:[#allocation2 + $0x68] sm:$0xff] %v2848
        %2865 = vst [vmem:[#allocation2 + $0x70] sm:$0xff] %v2849
        %2866 = vst [vmem:[#allocation2 + $0x78] sm:$0xff] %v2850
      $region47: #{forward.3} parent=35 // pred_fallthru
        _
      %p2867 = scmp.ne.s32.totalorder %s224, %s225
      // Predicated region
      $region48: #{forward.3} parent=35 // pred_check
        %p2868 = pneg %p2867
      $region49: #{forward.3} parent=35 // pred_check_branch
        %2870 = sbr.rel (%p2868) target = $region51
      $region50: #{forward.3} parent=35 // pred_region
        %v2871 = vld [vmem:[#allocation2] sm:$0xff]
        %v2872 = vld [vmem:[#allocation2 + $0x8] sm:$0xff]
        %v2873 = vld [vmem:[#allocation2 + $0x10] sm:$0xff]
        %v2874 = vld [vmem:[#allocation2 + $0x18] sm:$0xff]
        %v2875 = vld [vmem:[#allocation2 + $0x20] sm:$0xff]
        %v2876 = vld [vmem:[#allocation2 + $0x28] sm:$0xff]
        %v2877 = vld [vmem:[#allocation2 + $0x30] sm:$0xff]
        %v2878 = vld [vmem:[#allocation2 + $0x38] sm:$0xff]
        %v2879 = vld [vmem:[#allocation2 + $0x40] sm:$0xff]
        %v2880 = vld [vmem:[#allocation2 + $0x48] sm:$0xff]
        %v2881 = vld [vmem:[#allocation2 + $0x50] sm:$0xff]
        %v2882 = vld [vmem:[#allocation2 + $0x58] sm:$0xff]
        %v2883 = vld [vmem:[#allocation2 + $0x60] sm:$0xff]
        %v2884 = vld [vmem:[#allocation2 + $0x68] sm:$0xff]
        %v2885 = vld [vmem:[#allocation2 + $0x70] sm:$0xff]
        %v2886 = vld [vmem:[#allocation2 + $0x78] sm:$0xff]
        %2887 = vxpose.xlu0.b32.start [1/16] %v2871, 128
        %2888 = vxpose.xlu0.b32.cont [2/16] %v2872, 128
        %2889 = vxpose.xlu0.b32.cont [3/16] %v2873, 128
        %2890 = vxpose.xlu0.b32.cont [4/16] %v2874, 128
        %2891 = vxpose.xlu0.b32.cont [5/16] %v2875, 128
        %2892 = vxpose.xlu0.b32.cont [6/16] %v2876, 128
        %2893 = vxpose.xlu0.b32.cont [7/16] %v2877, 128
        %2894 = vxpose.xlu0.b32.cont [8/16] %v2878, 128
        %2895 = vxpose.xlu0.b32.cont [9/16] %v2879, 128
        %2896 = vxpose.xlu0.b32.cont [10/16] %v2880, 128
        %2897 = vxpose.xlu0.b32.cont [11/16] %v2881, 128
        %2898 = vxpose.xlu0.b32.cont [12/16] %v2882, 128
        %2899 = vxpose.xlu0.b32.cont [13/16] %v2883, 128
        %2900 = vxpose.xlu0.b32.cont [14/16] %v2884, 128
        %2901 = vxpose.xlu0.b32.cont [15/16] %v2885, 128
        %2902 = vxpose.xlu0.b32.end [16/16] %v2886, 128
        %v2903 = vpop.trf.xlu0
        %v2904 = vpop.trf.xlu0
        %v2905 = vpop.trf.xlu0
        %v2906 = vpop.trf.xlu0
        %v2907 = vpop.trf.xlu0
        %v2908 = vpop.trf.xlu0
        %v2909 = vpop.trf.xlu0
        %v2910 = vpop.trf.xlu0
        %v2911 = vpop.trf.xlu0
        %v2912 = vpop.trf.xlu0
        %v2913 = vpop.trf.xlu0
        %v2914 = vpop.trf.xlu0
        %v2915 = vpop.trf.xlu0
        %v2916 = vpop.trf.xlu0
        %v2917 = vpop.trf.xlu0
        %v2918 = vpop.trf.xlu0
        %2919 = vst [vmem:[#allocation3] sm:$0xff] %v2903
        %2920 = vst [vmem:[#allocation3 + $0x8] sm:$0xff] %v2904
        %2921 = vst [vmem:[#allocation3 + $0x10] sm:$0xff] %v2905
        %2922 = vst [vmem:[#allocation3 + $0x18] sm:$0xff] %v2906
        %2923 = vst [vmem:[#allocation3 + $0x20] sm:$0xff] %v2907
        %2924 = vst [vmem:[#allocation3 + $0x28] sm:$0xff] %v2908
        %2925 = vst [vmem:[#allocation3 + $0x30] sm:$0xff] %v2909
        %2926 = vst [vmem:[#allocation3 + $0x38] sm:$0xff] %v2910
        %2927 = vst [vmem:[#allocation3 + $0x40] sm:$0xff] %v2911
        %2928 = vst [vmem:[#allocation3 + $0x48] sm:$0xff] %v2912
        %2929 = vst [vmem:[#allocation3 + $0x50] sm:$0xff] %v2913
        %2930 = vst [vmem:[#allocation3 + $0x58] sm:$0xff] %v2914
        %2931 = vst [vmem:[#allocation3 + $0x60] sm:$0xff] %v2915
        %2932 = vst [vmem:[#allocation3 + $0x68] sm:$0xff] %v2916
        %2933 = vst [vmem:[#allocation3 + $0x70] sm:$0xff] %v2917
        %2934 = vst [vmem:[#allocation3 + $0x78] sm:$0xff] %v2918
      $region51: #{forward.3} parent=35 // pred_fallthru
        _
      %s2935 = smul.u32 %s224, 128
      %s2936 = smul.u32 %s225, 128
      %s2937 = sshra.s32 %s2936, 7
      %s2938 = sand.u32 %s2936, 127
      %s2939 = sadd.s32 %s2937, %s2935
      %s2940 = smul.u32 %s223, 128
      %s2941 = sadd.s32 %s2939, %s2940
      %s2942 = scalar_lea.vmem %s7, %s2941
      %p2944 = scmp.lt.u32.totalorder 128, 8
      %p2945 = pneg %p2944
      // Predicated region
      $region52: #{forward.3} parent=35 // pred_check
        _
      $region53: #{forward.3} parent=35 // pred_check_branch
        %2947 = sbr.rel (%p2944) target = $region55
      $region54: #{forward.3} parent=35 // pred_region
        %s2962 = sand.u32 128, 7
        %p2963 = scmp.eq.s32.totalorder %s2962, 0
        // Predicated region
        $region67: #{forward.3} parent=54 // pred_check
          %p2964 = pneg %p2963
        $region68: #{forward.3} parent=54 // pred_check_branch
          %2966 = sbr.rel (%p2964) target = $region70
        $region69: #{forward.3} parent=54 // pred_region
          loop: start=0, step=1, limit=1
          $region71: #{forward.3} parent=69 // loop_pre_header
            _
          $region72: #{forward.3} parent=69 // loop_header
            %s2968 = sphi 0, %s2972
            %p2969 = scmp.ge.s32.totalorder %s2968, 1
            %s2973 = sphi [#allocation2], [#allocation2]
            %s2974 = sphi %s2942, %s2942
          $region73: #{forward.3} parent=69 // loop_header_branch
            %2971 = sbr.rel (%p2969) target = $region77
          $region74: #{forward.3} parent=69 // loop_body
            %v2975 = vld [vmem:[%s2973] sm:$0xff]
            %2976 = vst [vmem:[%s2974] sm:$0xff] %v2975
            %v2977 = vld [vmem:[%s2973 + $0x8] sm:$0xff]
            %2978 = vst [vmem:[%s2974 + $0x8] sm:$0xff] %v2977
            %v2979 = vld [vmem:[%s2973 + $0x10] sm:$0xff]
            %2980 = vst [vmem:[%s2974 + $0x10] sm:$0xff] %v2979
            %v2981 = vld [vmem:[%s2973 + $0x18] sm:$0xff]
            %2982 = vst [vmem:[%s2974 + $0x18] sm:$0xff] %v2981
            %v2983 = vld [vmem:[%s2973 + $0x20] sm:$0xff]
            %2984 = vst [vmem:[%s2974 + $0x20] sm:$0xff] %v2983
            %v2985 = vld [vmem:[%s2973 + $0x28] sm:$0xff]
            %2986 = vst [vmem:[%s2974 + $0x28] sm:$0xff] %v2985
            %v2987 = vld [vmem:[%s2973 + $0x30] sm:$0xff]
            %2988 = vst [vmem:[%s2974 + $0x30] sm:$0xff] %v2987
            %v2989 = vld [vmem:[%s2973 + $0x38] sm:$0xff]
            %2990 = vst [vmem:[%s2974 + $0x38] sm:$0xff] %v2989
            %v2991 = vld [vmem:[%s2973 + $0x40] sm:$0xff]
            %2992 = vst [vmem:[%s2974 + $0x40] sm:$0xff] %v2991
            %v2993 = vld [vmem:[%s2973 + $0x48] sm:$0xff]
            %2994 = vst [vmem:[%s2974 + $0x48] sm:$0xff] %v2993
            %v2995 = vld [vmem:[%s2973 + $0x50] sm:$0xff]
            %2996 = vst [vmem:[%s2974 + $0x50] sm:$0xff] %v2995
            %v2997 = vld [vmem:[%s2973 + $0x58] sm:$0xff]
            %2998 = vst [vmem:[%s2974 + $0x58] sm:$0xff] %v2997
            %v2999 = vld [vmem:[%s2973 + $0x60] sm:$0xff]
            %3000 = vst [vmem:[%s2974 + $0x60] sm:$0xff] %v2999
            %v3001 = vld [vmem:[%s2973 + $0x68] sm:$0xff]
            %3002 = vst [vmem:[%s2974 + $0x68] sm:$0xff] %v3001
            %v3003 = vld [vmem:[%s2973 + $0x70] sm:$0xff]
            %3004 = vst [vmem:[%s2974 + $0x70] sm:$0xff] %v3003
            %v3005 = vld [vmem:[%s2973 + $0x78] sm:$0xff]
            %3006 = vst [vmem:[%s2974 + $0x78] sm:$0xff] %v3005
          $region75: #{forward.3} parent=69 // loop_footer
            %s2972 = sadd.s32 1, %s2968
          $region76: #{forward.3} parent=69 // loop_footer_branch
            %2967 = sbr.rel target = $region72
          $region77: #{forward.3} parent=69 // loop_exit
            _
        $region70: #{forward.3} parent=54 // pred_fallthru
          _
        %p3007 = pneg %p2963
        // Predicated region
        $region78: #{forward.3} parent=54 // pred_check
          _
        $region79: #{forward.3} parent=54 // pred_check_branch
          %3009 = sbr.rel (%p2963) target = $region81
        $region80: #{forward.3} parent=54 // pred_region
          %s3010 = sand.u32 128, 7
        $region81: #{forward.3} parent=54 // pred_fallthru
          _
      $region55: #{forward.3} parent=35 // pred_fallthru
        _
      // Predicated region
      $region56: #{forward.3} parent=35 // pred_check
        %p2948 = pneg %p2944
      $region57: #{forward.3} parent=35 // pred_check_branch
        %2950 = sbr.rel (%p2948) target = $region59
      $region58: #{forward.3} parent=35 // pred_region
        %s2951 = sshllo.u32 0, 128
        loop: start=0, step=1, limit=1
        $region60: #{forward.3} parent=58 // loop_pre_header
          _
        $region61: #{forward.3} parent=58 // loop_header
          %s2953 = sphi 0, %s2957
          %p2954 = scmp.ge.s32.totalorder %s2953, 1
          %s2958 = sphi [#allocation2], [#allocation2]
          %s2959 = sphi %s2942, %s2942
        $region62: #{forward.3} parent=58 // loop_header_branch
          %2956 = sbr.rel (%p2954) target = $region66
        $region63: #{forward.3} parent=58 // loop_body
          %v2960 = vld [vmem:[%s2958] sm:%s2951]
          %2961 = vst [vmem:[%s2959] sm:%s2951] %v2960
        $region64: #{forward.3} parent=58 // loop_footer
          %s2957 = sadd.s32 1, %s2953
        $region65: #{forward.3} parent=58 // loop_footer_branch
          %2952 = sbr.rel target = $region61
        $region66: #{forward.3} parent=58 // loop_exit
          _
      $region59: #{forward.3} parent=35 // pred_fallthru
        _
      // Predicated region
      $region82: #{forward.3} parent=35 // pred_check
        _
      $region83: #{forward.3} parent=35 // pred_check_branch
        %3013 = sbr.rel (0) target = $region85
      $region84: #{forward.3} parent=35 // pred_region
        %3014 = vsyncadd [#allocation4], 2048
      $region85: #{forward.3} parent=35 // pred_fallthru
        _
      // Predicated region
      $region86: #{forward.3} parent=35 // pred_check
        %p3015 = pneg %p2867
      $region87: #{forward.3} parent=35 // pred_check_branch
        %3017 = sbr.rel (%p3015) target = $region89
      $region88: #{forward.3} parent=35 // pred_region
        %s3018 = sshra.s32 %s2935, 7
        %s3019 = sand.u32 %s2935, 127
        %s3020 = sadd.s32 %s3018, %s2936
        %s3021 = sadd.s32 %s3020, %s2940
        %s3022 = scalar_lea.vmem %s7, %s3021
        %s3023 = scalar_lea.sflag [#allocation4], 1
        %p3025 = scmp.lt.u32.totalorder 128, 8
        %p3026 = pneg %p3025
        // Predicated region
        $region90: #{forward.3} parent=88 // pred_check
          _
        $region91: #{forward.3} parent=88 // pred_check_branch
          %3028 = sbr.rel (%p3025) target = $region93
        $region92: #{forward.3} parent=88 // pred_region
          %s3043 = sand.u32 128, 7
          %p3044 = scmp.eq.s32.totalorder %s3043, 0
          // Predicated region
          $region105: #{forward.3} parent=92 // pred_check
            %p3045 = pneg %p3044
          $region106: #{forward.3} parent=92 // pred_check_branch
            %3047 = sbr.rel (%p3045) target = $region108
          $region107: #{forward.3} parent=92 // pred_region
            loop: start=0, step=1, limit=1
            $region109: #{forward.3} parent=107 // loop_pre_header
              _
            $region110: #{forward.3} parent=107 // loop_header
              %s3049 = sphi 0, %s3053
              %p3050 = scmp.ge.s32.totalorder %s3049, 1
              %s3054 = sphi [#allocation3], [#allocation3]
              %s3055 = sphi %s3022, %s3022
            $region111: #{forward.3} parent=107 // loop_header_branch
              %3052 = sbr.rel (%p3050) target = $region115
            $region112: #{forward.3} parent=107 // loop_body
              %v3056 = vld [vmem:[%s3054] sm:$0xff]
              %3057 = vst [vmem:[%s3055] sm:$0xff] %v3056
              %v3058 = vld [vmem:[%s3054 + $0x8] sm:$0xff]
              %3059 = vst [vmem:[%s3055 + $0x8] sm:$0xff] %v3058
              %v3060 = vld [vmem:[%s3054 + $0x10] sm:$0xff]
              %3061 = vst [vmem:[%s3055 + $0x10] sm:$0xff] %v3060
              %v3062 = vld [vmem:[%s3054 + $0x18] sm:$0xff]
              %3063 = vst [vmem:[%s3055 + $0x18] sm:$0xff] %v3062
              %v3064 = vld [vmem:[%s3054 + $0x20] sm:$0xff]
              %3065 = vst [vmem:[%s3055 + $0x20] sm:$0xff] %v3064
              %v3066 = vld [vmem:[%s3054 + $0x28] sm:$0xff]
              %3067 = vst [vmem:[%s3055 + $0x28] sm:$0xff] %v3066
              %v3068 = vld [vmem:[%s3054 + $0x30] sm:$0xff]
              %3069 = vst [vmem:[%s3055 + $0x30] sm:$0xff] %v3068
              %v3070 = vld [vmem:[%s3054 + $0x38] sm:$0xff]
              %3071 = vst [vmem:[%s3055 + $0x38] sm:$0xff] %v3070
              %v3072 = vld [vmem:[%s3054 + $0x40] sm:$0xff]
              %3073 = vst [vmem:[%s3055 + $0x40] sm:$0xff] %v3072
              %v3074 = vld [vmem:[%s3054 + $0x48] sm:$0xff]
              %3075 = vst [vmem:[%s3055 + $0x48] sm:$0xff] %v3074
              %v3076 = vld [vmem:[%s3054 + $0x50] sm:$0xff]
              %3077 = vst [vmem:[%s3055 + $0x50] sm:$0xff] %v3076
              %v3078 = vld [vmem:[%s3054 + $0x58] sm:$0xff]
              %3079 = vst [vmem:[%s3055 + $0x58] sm:$0xff] %v3078
              %v3080 = vld [vmem:[%s3054 + $0x60] sm:$0xff]
              %3081 = vst [vmem:[%s3055 + $0x60] sm:$0xff] %v3080
              %v3082 = vld [vmem:[%s3054 + $0x68] sm:$0xff]
              %3083 = vst [vmem:[%s3055 + $0x68] sm:$0xff] %v3082
              %v3084 = vld [vmem:[%s3054 + $0x70] sm:$0xff]
              %3085 = vst [vmem:[%s3055 + $0x70] sm:$0xff] %v3084
              %v3086 = vld [vmem:[%s3054 + $0x78] sm:$0xff]
              %3087 = vst [vmem:[%s3055 + $0x78] sm:$0xff] %v3086
            $region113: #{forward.3} parent=107 // loop_footer
              %s3053 = sadd.s32 1, %s3049
            $region114: #{forward.3} parent=107 // loop_footer_branch
              %3048 = sbr.rel target = $region110
            $region115: #{forward.3} parent=107 // loop_exit
              _
          $region108: #{forward.3} parent=92 // pred_fallthru
            _
          %p3088 = pneg %p3044
          // Predicated region
          $region116: #{forward.3} parent=92 // pred_check
            _
          $region117: #{forward.3} parent=92 // pred_check_branch
            %3090 = sbr.rel (%p3044) target = $region119
          $region118: #{forward.3} parent=92 // pred_region
            %s3091 = sand.u32 128, 7
          $region119: #{forward.3} parent=92 // pred_fallthru
            _
        $region93: #{forward.3} parent=88 // pred_fallthru
          _
        // Predicated region
        $region94: #{forward.3} parent=88 // pred_check
          %p3029 = pneg %p3025
        $region95: #{forward.3} parent=88 // pred_check_branch
          %3031 = sbr.rel (%p3029) target = $region97
        $region96: #{forward.3} parent=88 // pred_region
          %s3032 = sshllo.u32 0, 128
          loop: start=0, step=1, limit=1
          $region98: #{forward.3} parent=96 // loop_pre_header
            _
          $region99: #{forward.3} parent=96 // loop_header
            %s3034 = sphi 0, %s3038
            %p3035 = scmp.ge.s32.totalorder %s3034, 1
            %s3039 = sphi [#allocation3], [#allocation3]
            %s3040 = sphi %s3022, %s3022
          $region100: #{forward.3} parent=96 // loop_header_branch
            %3037 = sbr.rel (%p3035) target = $region104
          $region101: #{forward.3} parent=96 // loop_body
            %v3041 = vld [vmem:[%s3039] sm:%s3032]
            %3042 = vst [vmem:[%s3040] sm:%s3032] %v3041
          $region102: #{forward.3} parent=96 // loop_footer
            %s3038 = sadd.s32 1, %s3034
          $region103: #{forward.3} parent=96 // loop_footer_branch
            %3033 = sbr.rel target = $region99
          $region104: #{forward.3} parent=96 // loop_exit
            _
        $region97: #{forward.3} parent=88 // pred_fallthru
          _
        // Predicated region
        $region120: #{forward.3} parent=88 // pred_check
          _
        $region121: #{forward.3} parent=88 // pred_check_branch
          %3094 = sbr.rel (0) target = $region123
        $region122: #{forward.3} parent=88 // pred_region
          %3095 = vsyncadd %s3023, 2048
        $region123: #{forward.3} parent=88 // pred_fallthru
          _
        %s3096 = smul.u32 128, 1
        %s3097 = sshll.u32 %s3096, 4
        %3098 = dma.done %s3023, %s3097
      $region89: #{forward.3} parent=35 // pred_fallthru
        _
      %s3099 = smul.u32 128, 1
      %s3100 = sshll.u32 %s3099, 4
      %3101 = dma.done [#allocation4], %s3100
    $region36: #{forward.3} parent=5 // pred_fallthru
      _
  $region6: #{forward.3} parent=0 // loop_footer
    %s32 = sadd.s32 1, %s28
  $region7: #{forward.3} parent=0 // loop_footer_branch
    %27 = sbr.rel target = $region3
  $region8: #{forward.3} parent=0 // loop_exit
    _
  %3102 = vsyncmov [#allocation4]
  %s3103 = vpop.sfrf %3102
  %p3104 = scmp.eq.s32.totalorder %s3103, 0
  %p3105 = pneg %p3104
  %3107 = shalt.err (%p3105)
  %s3108 = scalar_lea.sflag [#allocation4], 1
  %3109 = vsyncmov %s3108
  %s3110 = vpop.sfrf %3109
  %p3111 = scmp.eq.s32.totalorder %s3110, 0
  %p3112 = pneg %p3111
  %3114 = shalt.err (%p3112)

</llo_original>
